<compile_context>
chip_gen: v5e
topology: v5e:2x2
jax: 0.10.0
libtpu: 0.0.40
codegen_flags: <defaults>
</compile_context>

<pallas_src>
import functools
import math

import jax
import jax.numpy as jnp
from jax.experimental import pallas as pl
from jax.experimental.pallas import tpu as pltpu

NUM_HEADS = 8                      # nn.MultiheadAttention(d_model, 8)
_HI = jax.lax.Precision.HIGHEST    # used only for the exact f32 reference


# --------------------------------------------------------------------------
# Fused Pallas kernel: one (batch, scale) grid step of the pyramid
# --------------------------------------------------------------------------
def _pyramid_kernel(x_ref, wqkv_ref, bqkv_ref, wout_ref, bout_ref, o_ref,
                    acc_ref, *, scales, num_heads, target):
    """pool -> MHA -> nearest-interp for ONE scale; accumulate over scales.

    x_ref:    (1, L, D)     f32   input block for this batch element
    wqkv_ref: (1, D, 3D)    bf16  [Wq|Wk|Wv]^T for the CURRENT scale only
    bqkv_ref: (1, 1, 3D)    f32   in_proj bias for the current scale
    wout_ref: (1, D, D)     bf16  Wo^T for the current scale
    bout_ref: (1, 1, D)     f32   out_proj bias for the current scale
    o_ref:    (1, target, D)      output block (written at the last scale)
    acc_ref:  (target, D)   f32   VMEM scratch accumulator (sum over scales)
    """
    si = pl.program_id(1)
    n_scales = len(scales)
    l, d = x_ref.shape[1], x_ref.shape[2]
    hd = d // num_heads
    inv_sqrt_hd = 1.0 / math.sqrt(hd)

    def bf16_dot(a, b):  # MXU matmul: bf16 operands, f32 accumulation
        return jnp.dot(a.astype(jnp.bfloat16), b.astype(jnp.bfloat16),
                       preferred_element_type=jnp.float32)

    @pl.when(si == 0)
    def _init():
        acc_ref[...] = jnp.zeros_like(acc_ref)

    x_full = x_ref[0].astype(jnp.float32)                     # (L, D)

    def do_scale(s):
        lp = l // s
        # ---- F.max_pool1d(kernel=s, stride=s) along the sequence axis ------
        # Pure VPU path: leading-dim split + max; lane layout untouched.
        # Trailing remainder truncated exactly like max_pool1d.
        if s == 1:
            xp = x_full                                        # (L, D)
        else:
            xp = jnp.max(x_full[: lp * s].reshape(lp, s, d), axis=1)   # (lp, D)

        # ---- fused QKV projection: one MXU matmul for this scale -----------
        qkv = bf16_dot(xp, wqkv_ref[0]) + bqkv_ref[0]          # (lp, 3D) f32

        # ---- multi-head attention -------------------------------------------
        # NOTE: at production d_model, 128-align (pad) head columns or index
        # heads on a leading axis to avoid sub-128 lane slices here.
        ctx_parts = []
        for h in range(num_heads):                             # static unroll
            c0 = h * hd
            qh = qkv[:, c0:c0 + hd]                            # (lp, hd)
            kh = qkv[:, d + c0:d + c0 + hd]                    # (lp, hd)
            vh = qkv[:, 2 * d + c0:2 * d + c0 + hd]            # (lp, hd)
            # q @ k^T without materializing a transpose (contract dim 1 vs 1).
            sc = jax.lax.dot_general(
                qh.astype(jnp.bfloat16), kh.astype(jnp.bfloat16),
                (((1,), (1,)), ((), ())),
                preferred_element_type=jnp.float32) * inv_sqrt_hd
            sc = sc - jnp.max(sc, axis=-1, keepdims=True)      # f32 softmax
            p = jnp.exp(sc)
            p = p * pl.reciprocal(jnp.sum(p, axis=-1, keepdims=True), approx=True)
            ctx_parts.append(bf16_dot(p, vh))                  # (lp, hd)
        # Concat heads once, then ONE full-K output projection on the MXU.
        ctx = jnp.concatenate(ctx_parts, axis=1)               # (lp, D)
        attn = bf16_dot(ctx, wout_ref[0]) + bout_ref[0]        # (lp, D)

        # ---- F.interpolate(mode='nearest', size=target) along seq ----------
        # out[t] = attn[(t*lp)//target]; when target % lp == 0 this is a plain
        # sublane repeat (data movement, no matmul).
        if target % lp == 0 and target >= lp:
            rep = target // lp
            interp = jnp.broadcast_to(attn[:, None, :], (lp, rep, d))
            interp = interp.reshape(target, d)                 # (target, D)
        else:
            # Rare shape combo: exact one-hot selection matmul (plumbing only).
            trow = jax.lax.broadcasted_iota(jnp.int32, (target, lp), 0)
            tcol = jax.lax.broadcasted_iota(jnp.int32, (target, lp), 1)
            onehot = (tcol == (trow * lp) // target).astype(jnp.float32)
            interp = jnp.dot(onehot, attn, precision=_HI,
                             preferred_element_type=jnp.float32)

        acc_ref[...] += interp

    # The scale index is a grid coordinate, but the pooled length depends on
    # it -> one statically-shaped branch per scale, gated with pl.when.
    for i, s in enumerate(scales):
        pl.when(si == i)(functools.partial(do_scale, s))

    @pl.when(si == n_scales - 1)
    def _finalize():
        o_ref[0] = (acc_ref[...] * (1.0 / n_scales)).astype(o_ref.dtype)


def pyramid_attention(x, params, scales):
    """PyramidAttention forward as one fused pallas_call."""
    b, l, d = x.shape
    target = d           # PyTorch quirk: target_size = x.shape[2] = d_model
    ns = len(scales)

    # Per-scale weights stacked on a leading "scale" axis so each grid step
    # streams in only its own scale's weights.  Matmul weights shipped as bf16
    # (halves HBM traffic + VMEM residency); biases stay f32.
    wqkv = jnp.stack([p["in_proj_weight"].T for p in params]).astype(jnp.bfloat16)   # (S, D, 3D)
    bqkv = jnp.stack([p["in_proj_bias"].reshape(1, 3 * d) for p in params])          # (S, 1, 3D)
    wout = jnp.stack([p["out_proj_weight"].T for p in params]).astype(jnp.bfloat16)  # (S, D, D)
    bout = jnp.stack([p["out_proj_bias"].reshape(1, d) for p in params])             # (S, 1, D)

    kernel = functools.partial(_pyramid_kernel, scales=tuple(scales),
                               num_heads=NUM_HEADS, target=target)

    # TODO(synk): at production sequence lengths, tile the s=1 scale's query
    # rows (online softmax) so the per-head (lp, lp) score matrix never has to
    # be fully resident in VMEM.
    return pl.pallas_call(
        kernel,
        out_shape=jax.ShapeDtypeStruct((b, target, d), x.dtype),
        grid=(b, ns),
        in_specs=[
            pl.BlockSpec((1, l, d), lambda i, s: (i, 0, 0)),          # x (per batch)
            pl.BlockSpec((1, d, 3 * d), lambda i, s: (s, 0, 0)),      # W_qkv^T (per scale)
            pl.BlockSpec((1, 1, 3 * d), lambda i, s: (s, 0, 0)),      # b_qkv
            pl.BlockSpec((1, d, d), lambda i, s: (s, 0, 0)),          # W_out^T
            pl.BlockSpec((1, 1, d), lambda i, s: (s, 0, 0)),          # b_out
        ],
        out_specs=pl.BlockSpec((1, target, d), lambda i, s: (i, 0, 0)),
        scratch_shapes=[pltpu.VMEM((target, d), jnp.float32)],
        compiler_params=pltpu.CompilerParams(
            dimension_semantics=("parallel", "arbitrary"),
            vmem_limit_bytes=64 * 1024 * 1024),
    )(x, wqkv, bqkv, wout, bout)


# --------------------------------------------------------------------------
# Pure-JAX reference (exact f32 / HIGHEST precision) for self-check
# --------------------------------------------------------------------------
def _mha_ref(x, p):
    b, l, d = x.shape
    wq, wk, wv = jnp.split(p["in_proj_weight"], 3, axis=0)
    bq, bk, bv = jnp.split(p["in_proj_bias"], 3)
    q = jnp.matmul(x, wq.T, precision=_HI) + bq
    k = jnp.matmul(x, wk.T, precision=_HI) + bk
    v = jnp.matmul(x, wv.T, precision=_HI) + bv
    hd = d // NUM_HEADS

    def split(t):
        return t.reshape(b, l, NUM_HEADS, hd).transpose(0, 2, 1, 3)

    qh, kh, vh = split(q), split(k), split(v)
    s = jnp.einsum("bhqd,bhkd->bhqk", qh, kh, precision=_HI) / math.sqrt(hd)
    pw = jax.nn.softmax(s, axis=-1)
    ctx = jnp.einsum("bhqk,bhkd->bhqd", pw, vh, precision=_HI)
    ctx = ctx.transpose(0, 2, 1, 3).reshape(b, l, d)
    return jnp.matmul(ctx, p["out_proj_weight"].T, precision=_HI) + p["out_proj_bias"]


def pyramid_attention_ref(x, params, scales):
    b, l, d = x.shape
    target = d
    outs = []
    for p, s in zip(params, scales):
        if s == 1:
            xp = x
        else:
            lp = l // s  # F.max_pool1d truncates any trailing remainder
            xp = jnp.max(x[:, :lp * s].reshape(b, lp, s, d), axis=2)
        a = _mha_ref(xp, p)
        lp = a.shape[1]
        idx = (jnp.arange(target) * lp) // target
        outs.append(a[:, idx, :])
    return jnp.mean(jnp.stack(outs), axis=0)


# --------------------------------------------------------------------------
# Deterministic parameter init (shapes per nn.MultiheadAttention)
# --------------------------------------------------------------------------
def init_params(key, d_model, scales):
    params = []
    for i, _ in enumerate(scales):
        k = jax.random.fold_in(key, i)
        k1, k2, k3, k4 = jax.random.split(k, 4)
        a = math.sqrt(6.0 / (d_model + 3 * d_model))  # xavier_uniform on (3D, D)
        in_proj_w = jax.random.uniform(k1, (3 * d_model, d_model), jnp.float32, -a, a)
        in_proj_b = 0.02 * jax.random.normal(k3, (3 * d_model,), jnp.float32)
        bound = 1.0 / math.sqrt(d_model)
        out_w = jax.random.uniform(k2, (d_model, d_model), jnp.float32, -bound, bound)
        out_b = 0.02 * jax.random.normal(k4, (d_model,), jnp.float32)
        params.append(dict(in_proj_weight=in_proj_w, in_proj_bias=in_proj_b,
                           out_proj_weight=out_w, out_proj_bias=out_b))
    return params


if __name__ == "__main__":
    B, L, D = 2, 16, 32          # x: (batch, seq, d_model); d_model % 8 == 0
    scales = [1, 2, 4]

    key = jax.random.PRNGKey(0)
    kx, kp = jax.random.split(key)
    x = jax.random.normal(kx, (B, L, D), jnp.float32)
    params = init_params(kp, D, scales)

    fwd = jax.jit(lambda xx, pp: pyramid_attention(xx, pp, scales))
    out = jax.block_until_ready(fwd(x, params))

    # output is (B, target_size, D) where target_size = x.shape[2] = d_model
    assert out.shape == (B, D, D), out.shape

    ref = pyramid_attention_ref(x, params, scales)
    max_err = float(jnp.max(jnp.abs(out - ref)))
    # bf16 MXU operands + approximate softmax reciprocal -> loosened bound.
    assert max_err < 5e-2, f"max abs error {max_err}"

    print("KERNEL_OK")
</pallas_src>

<mosaic_0001>
module attributes {stable_mosaic.version = 11 : i64} {
  func.func @_pyramid_kernel(%arg0: i32, %arg1: i32, %arg2: memref<1x16x32xf32, #tpu.memory_space<vmem>>, %arg3: memref<1x32x96xbf16, #tpu.memory_space<vmem>>, %arg4: memref<1x1x96xf32, #tpu.memory_space<vmem>>, %arg5: memref<1x32x32xbf16, #tpu.memory_space<vmem>>, %arg6: memref<1x1x32xf32, #tpu.memory_space<vmem>>, %arg7: memref<1x32x32xf32, #tpu.memory_space<vmem>>, %arg8: memref<32x32xf32, #tpu.memory_space<vmem>>) attributes {dimension_semantics = [#tpu.dimension_semantics<parallel>, #tpu.dimension_semantics<arbitrary>], iteration_bounds = array<i64: 2, 3>, scalar_prefetch = 0 : i64, scratch_operands = 1 : i64, tpu.core_type = #tpu.core_type<tc>, window_params = [{transform_indices = @transform_0, window_bounds = array<i64: 1, 16, 32>}, {transform_indices = @transform_1, window_bounds = array<i64: 1, 32, 96>}, {transform_indices = @transform_2, window_bounds = array<i64: 1, 1, 96>}, {transform_indices = @transform_3, window_bounds = array<i64: 1, 32, 32>}, {transform_indices = @transform_4, window_bounds = array<i64: 1, 1, 32>}, {transform_indices = @transform_5, window_bounds = array<i64: 1, 32, 32>}]} {
    %c0_i32 = arith.constant 0 : i32
    %0 = arith.cmpi eq, %arg1, %c0_i32 : i32
    %1 = arith.extui %0 : i1 to i32
    %c0_i32_0 = arith.constant 0 : i32
    %2 = arith.cmpi ne, %1, %c0_i32_0 : i32
    scf.if %2 {
      %cst = arith.constant 0.000000e+00 : f32
      %17 = vector.broadcast %cst : f32 to vector<32x32xf32>
      %c0_9 = arith.constant 0 : index
      %c0_10 = arith.constant 0 : index
      %18 = vector.load %arg8[%c0_9, %c0_10] : memref<32x32xf32, #tpu.memory_space<vmem>>, vector<32x32xf32>
      tpu.vector_store %arg8[%c0_9, %c0_10], %17 {strides = array<i32>} : memref<32x32xf32, #tpu.memory_space<vmem>>, vector<32x32xf32>,
    } else {
    }
    %c0 = arith.constant 0 : index
    %c0_1 = arith.constant 0 : index
    %c0_2 = arith.constant 0 : index
    %3 = vector.load %arg2[%c0, %c0_1, %c0_2] : memref<1x16x32xf32, #tpu.memory_space<vmem>>, vector<1x16x32xf32>
    %4 = vector.shape_cast %3 : vector<1x16x32xf32> to vector<16x32xf32>
    %c0_i32_3 = arith.constant 0 : i32
    %5 = arith.cmpi eq, %arg1, %c0_i32_3 : i32
    %6 = arith.extui %5 : i1 to i32
    %c0_i32_4 = arith.constant 0 : i32
    %7 = arith.cmpi ne, %6, %c0_i32_4 : i32
    scf.if %7 {
      %c0_9 = arith.constant 0 : index
      %c0_10 = arith.constant 0 : index
      %c0_11 = arith.constant 0 : index
      %17 = vector.load %arg3[%c0_9, %c0_10, %c0_11] : memref<1x32x96xbf16, #tpu.memory_space<vmem>>, vector<1x32x96xbf16>
      %18 = vector.shape_cast %17 : vector<1x32x96xbf16> to vector<32x96xbf16>
      %19 = arith.truncf %4 : vector<16x32xf32> to vector<16x32xbf16>
      %cst = arith.constant dense<0.000000e+00> : vector<16x96xf32>
      %20 = tpu.matmul %19, %18, %cst {dimension_numbers = #tpu.dot_dimension_numbers<[1], [0], [0], [1], [0, 0, 1, 1], [], []>} : vector<16x32xbf16>, vector<32x96xbf16>, vector<16x96xf32> -> vector<16x96xf32>
      %c0_12 = arith.constant 0 : index
      %c0_13 = arith.constant 0 : index
      %c0_14 = arith.constant 0 : index
      %21 = vector.load %arg4[%c0_12, %c0_13, %c0_14] : memref<1x1x96xf32, #tpu.memory_space<vmem>>, vector<1x1x96xf32>
      %22 = vector.shape_cast %21 : vector<1x1x96xf32> to vector<1x96xf32>
      %23 = vector.broadcast %22 : vector<1x96xf32> to vector<16x96xf32>
      %24 = arith.addf %20, %23 : vector<16x96xf32>
      %25 = vector.extract_strided_slice %24 {offsets = [0, 0], sizes = [16, 4], strides = [1, 1]} : vector<16x96xf32> to vector<16x4xf32>
      %26 = vector.extract_strided_slice %24 {offsets = [0, 32], sizes = [16, 4], strides = [1, 1]} : vector<16x96xf32> to vector<16x4xf32>
      %27 = vector.extract_strided_slice %24 {offsets = [0, 64], sizes = [16, 4], strides = [1, 1]} : vector<16x96xf32> to vector<16x4xf32>
      %28 = arith.truncf %25 : vector<16x4xf32> to vector<16x4xbf16>
      %29 = arith.truncf %26 : vector<16x4xf32> to vector<16x4xbf16>
      %cst_15 = arith.constant dense<0.000000e+00> : vector<16x16xf32>
      %30 = tpu.matmul %28, %29, %cst_15 {dimension_numbers = #tpu.dot_dimension_numbers<[1], [1], [0], [0], [0, 0, 1, 0], [], []>} : vector<16x4xbf16>, vector<16x4xbf16>, vector<16x16xf32> -> vector<16x16xf32>
      %cst_16 = arith.constant 5.000000e-01 : f32
      %31 = vector.broadcast %cst_16 : f32 to vector<16x16xf32>
      %32 = arith.mulf %30, %31 : vector<16x16xf32>
      %cst_17 = arith.constant dense<0xFF800000> : vector<16xf32>
      %33 = vector.multi_reduction <maximumf>, %32, %cst_17 [1] : vector<16x16xf32> to vector<16xf32>
      %34 = vector.shape_cast %33 : vector<16xf32> to vector<16x1xf32>
      %35 = vector.broadcast %34 : vector<16x1xf32> to vector<16x16xf32>
      %36 = arith.subf %32, %35 : vector<16x16xf32>
      %37 = math.exp %36 : vector<16x16xf32>
      %cst_18 = arith.constant dense<0.000000e+00> : vector<16xf32>
      %38 = vector.multi_reduction <add>, %37, %cst_18 [1] : vector<16x16xf32> to vector<16xf32>
      %39 = vector.shape_cast %38 : vector<16xf32> to vector<16x1xf32>
      %40 = tpu.reciprocal %39 {approx = true} : vector<16x1xf32> -> vector<16x1xf32>
      %41 = vector.broadcast %40 : vector<16x1xf32> to vector<16x16xf32>
      %42 = arith.mulf %37, %41 : vector<16x16xf32>
      %43 = arith.truncf %42 : vector<16x16xf32> to vector<16x16xbf16>
      %44 = arith.truncf %27 : vector<16x4xf32> to vector<16x4xbf16>
      %cst_19 = arith.constant dense<0.000000e+00> : vector<16x4xf32>
      %45 = tpu.matmul %43, %44, %cst_19 {dimension_numbers = #tpu.dot_dimension_numbers<[1], [0], [0], [1], [0, 0, 1, 1], [], []>} : vector<16x16xbf16>, vector<16x4xbf16>, vector<16x4xf32> -> vector<16x4xf32>
      %46 = vector.extract_strided_slice %24 {offsets = [0, 4], sizes = [16, 4], strides = [1, 1]} : vector<16x96xf32> to vector<16x4xf32>
      %47 = vector.extract_strided_slice %24 {offsets = [0, 36], sizes = [16, 4], strides = [1, 1]} : vector<16x96xf32> to vector<16x4xf32>
      %48 = vector.extract_strided_slice %24 {offsets = [0, 68], sizes = [16, 4], strides = [1, 1]} : vector<16x96xf32> to vector<16x4xf32>
      %49 = arith.truncf %46 : vector<16x4xf32> to vector<16x4xbf16>
      %50 = arith.truncf %47 : vector<16x4xf32> to vector<16x4xbf16>
      %cst_20 = arith.constant dense<0.000000e+00> : vector<16x16xf32>
      %51 = tpu.matmul %49, %50, %cst_20 {dimension_numbers = #tpu.dot_dimension_numbers<[1], [1], [0], [0], [0, 0, 1, 0], [], []>} : vector<16x4xbf16>, vector<16x4xbf16>, vector<16x16xf32> -> vector<16x16xf32>
      %cst_21 = arith.constant 5.000000e-01 : f32
      %52 = vector.broadcast %cst_21 : f32 to vector<16x16xf32>
      %53 = arith.mulf %51, %52 : vector<16x16xf32>
      %cst_22 = arith.constant dense<0xFF800000> : vector<16xf32>
      %54 = vector.multi_reduction <maximumf>, %53, %cst_22 [1] : vector<16x16xf32> to vector<16xf32>
      %55 = vector.shape_cast %54 : vector<16xf32> to vector<16x1xf32>
      %56 = vector.broadcast %55 : vector<16x1xf32> to vector<16x16xf32>
      %57 = arith.subf %53, %56 : vector<16x16xf32>
      %58 = math.exp %57 : vector<16x16xf32>
      %cst_23 = arith.constant dense<0.000000e+00> : vector<16xf32>
      %59 = vector.multi_reduction <add>, %58, %cst_23 [1] : vector<16x16xf32> to vector<16xf32>
      %60 = vector.shape_cast %59 : vector<16xf32> to vector<16x1xf32>
      %61 = tpu.reciprocal %60 {approx = true} : vector<16x1xf32> -> vector<16x1xf32>
      %62 = vector.broadcast %61 : vector<16x1xf32> to vector<16x16xf32>
      %63 = arith.mulf %58, %62 : vector<16x16xf32>
      %64 = arith.truncf %63 : vector<16x16xf32> to vector<16x16xbf16>
      %65 = arith.truncf %48 : vector<16x4xf32> to vector<16x4xbf16>
      %cst_24 = arith.constant dense<0.000000e+00> : vector<16x4xf32>
      %66 = tpu.matmul %64, %65, %cst_24 {dimension_numbers = #tpu.dot_dimension_numbers<[1], [0], [0], [1], [0, 0, 1, 1], [], []>} : vector<16x16xbf16>, vector<16x4xbf16>, vector<16x4xf32> -> vector<16x4xf32>
      %67 = vector.extract_strided_slice %24 {offsets = [0, 8], sizes = [16, 4], strides = [1, 1]} : vector<16x96xf32> to vector<16x4xf32>
      %68 = vector.extract_strided_slice %24 {offsets = [0, 40], sizes = [16, 4], strides = [1, 1]} : vector<16x96xf32> to vector<16x4xf32>
      %69 = vector.extract_strided_slice %24 {offsets = [0, 72], sizes = [16, 4], strides = [1, 1]} : vector<16x96xf32> to vector<16x4xf32>
      %70 = arith.truncf %67 : vector<16x4xf32> to vector<16x4xbf16>
      %71 = arith.truncf %68 : vector<16x4xf32> to vector<16x4xbf16>
      %cst_25 = arith.constant dense<0.000000e+00> : vector<16x16xf32>
      %72 = tpu.matmul %70, %71, %cst_25 {dimension_numbers = #tpu.dot_dimension_numbers<[1], [1], [0], [0], [0, 0, 1, 0], [], []>} : vector<16x4xbf16>, vector<16x4xbf16>, vector<16x16xf32> -> vector<16x16xf32>
      %cst_26 = arith.constant 5.000000e-01 : f32
      %73 = vector.broadcast %cst_26 : f32 to vector<16x16xf32>
      %74 = arith.mulf %72, %73 : vector<16x16xf32>
      %cst_27 = arith.constant dense<0xFF800000> : vector<16xf32>
      %75 = vector.multi_reduction <maximumf>, %74, %cst_27 [1] : vector<16x16xf32> to vector<16xf32>
      %76 = vector.shape_cast %75 : vector<16xf32> to vector<16x1xf32>
      %77 = vector.broadcast %76 : vector<16x1xf32> to vector<16x16xf32>
      %78 = arith.subf %74, %77 : vector<16x16xf32>
      %79 = math.exp %78 : vector<16x16xf32>
      %cst_28 = arith.constant dense<0.000000e+00> : vector<16xf32>
      %80 = vector.multi_reduction <add>, %79, %cst_28 [1] : vector<16x16xf32> to vector<16xf32>
      %81 = vector.shape_cast %80 : vector<16xf32> to vector<16x1xf32>
      %82 = tpu.reciprocal %81 {approx = true} : vector<16x1xf32> -> vector<16x1xf32>
      %83 = vector.broadcast %82 : vector<16x1xf32> to vector<16x16xf32>
      %84 = arith.mulf %79, %83 : vector<16x16xf32>
      %85 = arith.truncf %84 : vector<16x16xf32> to vector<16x16xbf16>
      %86 = arith.truncf %69 : vector<16x4xf32> to vector<16x4xbf16>
      %cst_29 = arith.constant dense<0.000000e+00> : vector<16x4xf32>
      %87 = tpu.matmul %85, %86, %cst_29 {dimension_numbers = #tpu.dot_dimension_numbers<[1], [0], [0], [1], [0, 0, 1, 1], [], []>} : vector<16x16xbf16>, vector<16x4xbf16>, vector<16x4xf32> -> vector<16x4xf32>
      %88 = vector.extract_strided_slice %24 {offsets = [0, 12], sizes = [16, 4], strides = [1, 1]} : vector<16x96xf32> to vector<16x4xf32>
      %89 = vector.extract_strided_slice %24 {offsets = [0, 44], sizes = [16, 4], strides = [1, 1]} : vector<16x96xf32> to vector<16x4xf32>
      %90 = vector.extract_strided_slice %24 {offsets = [0, 76], sizes = [16, 4], strides = [1, 1]} : vector<16x96xf32> to vector<16x4xf32>
      %91 = arith.truncf %88 : vector<16x4xf32> to vector<16x4xbf16>
      %92 = arith.truncf %89 : vector<16x4xf32> to vector<16x4xbf16>
      %cst_30 = arith.constant dense<0.000000e+00> : vector<16x16xf32>
      %93 = tpu.matmul %91, %92, %cst_30 {dimension_numbers = #tpu.dot_dimension_numbers<[1], [1], [0], [0], [0, 0, 1, 0], [], []>} : vector<16x4xbf16>, vector<16x4xbf16>, vector<16x16xf32> -> vector<16x16xf32>
      %cst_31 = arith.constant 5.000000e-01 : f32
      %94 = vector.broadcast %cst_31 : f32 to vector<16x16xf32>
      %95 = arith.mulf %93, %94 : vector<16x16xf32>
      %cst_32 = arith.constant dense<0xFF800000> : vector<16xf32>
      %96 = vector.multi_reduction <maximumf>, %95, %cst_32 [1] : vector<16x16xf32> to vector<16xf32>
      %97 = vector.shape_cast %96 : vector<16xf32> to vector<16x1xf32>
      %98 = vector.broadcast %97 : vector<16x1xf32> to vector<16x16xf32>
      %99 = arith.subf %95, %98 : vector<16x16xf32>
      %100 = math.exp %99 : vector<16x16xf32>
      %cst_33 = arith.constant dense<0.000000e+00> : vector<16xf32>
      %101 = vector.multi_reduction <add>, %100, %cst_33 [1] : vector<16x16xf32> to vector<16xf32>
      %102 = vector.shape_cast %101 : vector<16xf32> to vector<16x1xf32>
      %103 = tpu.reciprocal %102 {approx = true} : vector<16x1xf32> -> vector<16x1xf32>
      %104 = vector.broadcast %103 : vector<16x1xf32> to vector<16x16xf32>
      %105 = arith.mulf %100, %104 : vector<16x16xf32>
      %106 = arith.truncf %105 : vector<16x16xf32> to vector<16x16xbf16>
      %107 = arith.truncf %90 : vector<16x4xf32> to vector<16x4xbf16>
      %cst_34 = arith.constant dense<0.000000e+00> : vector<16x4xf32>
      %108 = tpu.matmul %106, %107, %cst_34 {dimension_numbers = #tpu.dot_dimension_numbers<[1], [0], [0], [1], [0, 0, 1, 1], [], []>} : vector<16x16xbf16>, vector<16x4xbf16>, vector<16x4xf32> -> vector<16x4xf32>
      %109 = vector.extract_strided_slice %24 {offsets = [0, 16], sizes = [16, 4], strides = [1, 1]} : vector<16x96xf32> to vector<16x4xf32>
      %110 = vector.extract_strided_slice %24 {offsets = [0, 48], sizes = [16, 4], strides = [1, 1]} : vector<16x96xf32> to vector<16x4xf32>
      %111 = vector.extract_strided_slice %24 {offsets = [0, 80], sizes = [16, 4], strides = [1, 1]} : vector<16x96xf32> to vector<16x4xf32>
      %112 = arith.truncf %109 : vector<16x4xf32> to vector<16x4xbf16>
      %113 = arith.truncf %110 : vector<16x4xf32> to vector<16x4xbf16>
      %cst_35 = arith.constant dense<0.000000e+00> : vector<16x16xf32>
      %114 = tpu.matmul %112, %113, %cst_35 {dimension_numbers = #tpu.dot_dimension_numbers<[1], [1], [0], [0], [0, 0, 1, 0], [], []>} : vector<16x4xbf16>, vector<16x4xbf16>, vector<16x16xf32> -> vector<16x16xf32>
      %cst_36 = arith.constant 5.000000e-01 : f32
      %115 = vector.broadcast %cst_36 : f32 to vector<16x16xf32>
      %116 = arith.mulf %114, %115 : vector<16x16xf32>
      %cst_37 = arith.constant dense<0xFF800000> : vector<16xf32>
      %117 = vector.multi_reduction <maximumf>, %116, %cst_37 [1] : vector<16x16xf32> to vector<16xf32>
      %118 = vector.shape_cast %117 : vector<16xf32> to vector<16x1xf32>
      %119 = vector.broadcast %118 : vector<16x1xf32> to vector<16x16xf32>
      %120 = arith.subf %116, %119 : vector<16x16xf32>
      %121 = math.exp %120 : vector<16x16xf32>
      %cst_38 = arith.constant dense<0.000000e+00> : vector<16xf32>
      %122 = vector.multi_reduction <add>, %121, %cst_38 [1] : vector<16x16xf32> to vector<16xf32>
      %123 = vector.shape_cast %122 : vector<16xf32> to vector<16x1xf32>
      %124 = tpu.reciprocal %123 {approx = true} : vector<16x1xf32> -> vector<16x1xf32>
      %125 = vector.broadcast %124 : vector<16x1xf32> to vector<16x16xf32>
      %126 = arith.mulf %121, %125 : vector<16x16xf32>
      %127 = arith.truncf %126 : vector<16x16xf32> to vector<16x16xbf16>
      %128 = arith.truncf %111 : vector<16x4xf32> to vector<16x4xbf16>
      %cst_39 = arith.constant dense<0.000000e+00> : vector<16x4xf32>
      %129 = tpu.matmul %127, %128, %cst_39 {dimension_numbers = #tpu.dot_dimension_numbers<[1], [0], [0], [1], [0, 0, 1, 1], [], []>} : vector<16x16xbf16>, vector<16x4xbf16>, vector<16x4xf32> -> vector<16x4xf32>
      %130 = vector.extract_strided_slice %24 {offsets = [0, 20], sizes = [16, 4], strides = [1, 1]} : vector<16x96xf32> to vector<16x4xf32>
      %131 = vector.extract_strided_slice %24 {offsets = [0, 52], sizes = [16, 4], strides = [1, 1]} : vector<16x96xf32> to vector<16x4xf32>
      %132 = vector.extract_strided_slice %24 {offsets = [0, 84], sizes = [16, 4], strides = [1, 1]} : vector<16x96xf32> to vector<16x4xf32>
      %133 = arith.truncf %130 : vector<16x4xf32> to vector<16x4xbf16>
      %134 = arith.truncf %131 : vector<16x4xf32> to vector<16x4xbf16>
      %cst_40 = arith.constant dense<0.000000e+00> : vector<16x16xf32>
      %135 = tpu.matmul %133, %134, %cst_40 {dimension_numbers = #tpu.dot_dimension_numbers<[1], [1], [0], [0], [0, 0, 1, 0], [], []>} : vector<16x4xbf16>, vector<16x4xbf16>, vector<16x16xf32> -> vector<16x16xf32>
      %cst_41 = arith.constant 5.000000e-01 : f32
      %136 = vector.broadcast %cst_41 : f32 to vector<16x16xf32>
      %137 = arith.mulf %135, %136 : vector<16x16xf32>
      %cst_42 = arith.constant dense<0xFF800000> : vector<16xf32>
      %138 = vector.multi_reduction <maximumf>, %137, %cst_42 [1] : vector<16x16xf32> to vector<16xf32>
      %139 = vector.shape_cast %138 : vector<16xf32> to vector<16x1xf32>
      %140 = vector.broadcast %139 : vector<16x1xf32> to vector<16x16xf32>
      %141 = arith.subf %137, %140 : vector<16x16xf32>
      %142 = math.exp %141 : vector<16x16xf32>
      %cst_43 = arith.constant dense<0.000000e+00> : vector<16xf32>
      %143 = vector.multi_reduction <add>, %142, %cst_43 [1] : vector<16x16xf32> to vector<16xf32>
      %144 = vector.shape_cast %143 : vector<16xf32> to vector<16x1xf32>
      %145 = tpu.reciprocal %144 {approx = true} : vector<16x1xf32> -> vector<16x1xf32>
      %146 = vector.broadcast %145 : vector<16x1xf32> to vector<16x16xf32>
      %147 = arith.mulf %142, %146 : vector<16x16xf32>
      %148 = arith.truncf %147 : vector<16x16xf32> to vector<16x16xbf16>
      %149 = arith.truncf %132 : vector<16x4xf32> to vector<16x4xbf16>
      %cst_44 = arith.constant dense<0.000000e+00> : vector<16x4xf32>
      %150 = tpu.matmul %148, %149, %cst_44 {dimension_numbers = #tpu.dot_dimension_numbers<[1], [0], [0], [1], [0, 0, 1, 1], [], []>} : vector<16x16xbf16>, vector<16x4xbf16>, vector<16x4xf32> -> vector<16x4xf32>
      %151 = vector.extract_strided_slice %24 {offsets = [0, 24], sizes = [16, 4], strides = [1, 1]} : vector<16x96xf32> to vector<16x4xf32>
      %152 = vector.extract_strided_slice %24 {offsets = [0, 56], sizes = [16, 4], strides = [1, 1]} : vector<16x96xf32> to vector<16x4xf32>
      %153 = vector.extract_strided_slice %24 {offsets = [0, 88], sizes = [16, 4], strides = [1, 1]} : vector<16x96xf32> to vector<16x4xf32>
      %154 = arith.truncf %151 : vector<16x4xf32> to vector<16x4xbf16>
      %155 = arith.truncf %152 : vector<16x4xf32> to vector<16x4xbf16>
      %cst_45 = arith.constant dense<0.000000e+00> : vector<16x16xf32>
      %156 = tpu.matmul %154, %155, %cst_45 {dimension_numbers = #tpu.dot_dimension_numbers<[1], [1], [0], [0], [0, 0, 1, 0], [], []>} : vector<16x4xbf16>, vector<16x4xbf16>, vector<16x16xf32> -> vector<16x16xf32>
      %cst_46 = arith.constant 5.000000e-01 : f32
      %157 = vector.broadcast %cst_46 : f32 to vector<16x16xf32>
      %158 = arith.mulf %156, %157 : vector<16x16xf32>
      %cst_47 = arith.constant dense<0xFF800000> : vector<16xf32>
      %159 = vector.multi_reduction <maximumf>, %158, %cst_47 [1] : vector<16x16xf32> to vector<16xf32>
      %160 = vector.shape_cast %159 : vector<16xf32> to vector<16x1xf32>
      %161 = vector.broadcast %160 : vector<16x1xf32> to vector<16x16xf32>
      %162 = arith.subf %158, %161 : vector<16x16xf32>
      %163 = math.exp %162 : vector<16x16xf32>
      %cst_48 = arith.constant dense<0.000000e+00> : vector<16xf32>
      %164 = vector.multi_reduction <add>, %163, %cst_48 [1] : vector<16x16xf32> to vector<16xf32>
      %165 = vector.shape_cast %164 : vector<16xf32> to vector<16x1xf32>
      %166 = tpu.reciprocal %165 {approx = true} : vector<16x1xf32> -> vector<16x1xf32>
      %167 = vector.broadcast %166 : vector<16x1xf32> to vector<16x16xf32>
      %168 = arith.mulf %163, %167 : vector<16x16xf32>
      %169 = arith.truncf %168 : vector<16x16xf32> to vector<16x16xbf16>
      %170 = arith.truncf %153 : vector<16x4xf32> to vector<16x4xbf16>
      %cst_49 = arith.constant dense<0.000000e+00> : vector<16x4xf32>
      %171 = tpu.matmul %169, %170, %cst_49 {dimension_numbers = #tpu.dot_dimension_numbers<[1], [0], [0], [1], [0, 0, 1, 1], [], []>} : vector<16x16xbf16>, vector<16x4xbf16>, vector<16x4xf32> -> vector<16x4xf32>
      %172 = vector.extract_strided_slice %24 {offsets = [0, 28], sizes = [16, 4], strides = [1, 1]} : vector<16x96xf32> to vector<16x4xf32>
      %173 = vector.extract_strided_slice %24 {offsets = [0, 60], sizes = [16, 4], strides = [1, 1]} : vector<16x96xf32> to vector<16x4xf32>
      %174 = vector.extract_strided_slice %24 {offsets = [0, 92], sizes = [16, 4], strides = [1, 1]} : vector<16x96xf32> to vector<16x4xf32>
      %175 = arith.truncf %172 : vector<16x4xf32> to vector<16x4xbf16>
      %176 = arith.truncf %173 : vector<16x4xf32> to vector<16x4xbf16>
      %cst_50 = arith.constant dense<0.000000e+00> : vector<16x16xf32>
      %177 = tpu.matmul %175, %176, %cst_50 {dimension_numbers = #tpu.dot_dimension_numbers<[1], [1], [0], [0], [0, 0, 1, 0], [], []>} : vector<16x4xbf16>, vector<16x4xbf16>, vector<16x16xf32> -> vector<16x16xf32>
      %cst_51 = arith.constant 5.000000e-01 : f32
      %178 = vector.broadcast %cst_51 : f32 to vector<16x16xf32>
      %179 = arith.mulf %177, %178 : vector<16x16xf32>
      %cst_52 = arith.constant dense<0xFF800000> : vector<16xf32>
      %180 = vector.multi_reduction <maximumf>, %179, %cst_52 [1] : vector<16x16xf32> to vector<16xf32>
      %181 = vector.shape_cast %180 : vector<16xf32> to vector<16x1xf32>
      %182 = vector.broadcast %181 : vector<16x1xf32> to vector<16x16xf32>
      %183 = arith.subf %179, %182 : vector<16x16xf32>
      %184 = math.exp %183 : vector<16x16xf32>
      %cst_53 = arith.constant dense<0.000000e+00> : vector<16xf32>
      %185 = vector.multi_reduction <add>, %184, %cst_53 [1] : vector<16x16xf32> to vector<16xf32>
      %186 = vector.shape_cast %185 : vector<16xf32> to vector<16x1xf32>
      %187 = tpu.reciprocal %186 {approx = true} : vector<16x1xf32> -> vector<16x1xf32>
      %188 = vector.broadcast %187 : vector<16x1xf32> to vector<16x16xf32>
      %189 = arith.mulf %184, %188 : vector<16x16xf32>
      %190 = arith.truncf %189 : vector<16x16xf32> to vector<16x16xbf16>
      %191 = arith.truncf %174 : vector<16x4xf32> to vector<16x4xbf16>
      %cst_54 = arith.constant dense<0.000000e+00> : vector<16x4xf32>
      %192 = tpu.matmul %190, %191, %cst_54 {dimension_numbers = #tpu.dot_dimension_numbers<[1], [0], [0], [1], [0, 0, 1, 1], [], []>} : vector<16x16xbf16>, vector<16x4xbf16>, vector<16x4xf32> -> vector<16x4xf32>
      %193 = tpu.concatenate %45, %66, %87, %108, %129, %150, %171, %192 in 1 : vector<16x4xf32>, vector<16x4xf32>, vector<16x4xf32>, vector<16x4xf32>, vector<16x4xf32>, vector<16x4xf32>, vector<16x4xf32>, vector<16x4xf32> -> vector<16x32xf32>
      %c0_55 = arith.constant 0 : index
      %c0_56 = arith.constant 0 : index
      %c0_57 = arith.constant 0 : index
      %194 = vector.load %arg5[%c0_55, %c0_56, %c0_57] : memref<1x32x32xbf16, #tpu.memory_space<vmem>>, vector<1x32x32xbf16>
      %195 = vector.shape_cast %194 : vector<1x32x32xbf16> to vector<32x32xbf16>
      %196 = arith.truncf %193 : vector<16x32xf32> to vector<16x32xbf16>
      %cst_58 = arith.constant dense<0.000000e+00> : vector<16x32xf32>
      %197 = tpu.matmul %196, %195, %cst_58 {dimension_numbers = #tpu.dot_dimension_numbers<[1], [0], [0], [1], [0, 0, 1, 1], [], []>} : vector<16x32xbf16>, vector<32x32xbf16>, vector<16x32xf32> -> vector<16x32xf32>
      %c0_59 = arith.constant 0 : index
      %c0_60 = arith.constant 0 : index
      %c0_61 = arith.constant 0 : index
      %198 = vector.load %arg6[%c0_59, %c0_60, %c0_61] : memref<1x1x32xf32, #tpu.memory_space<vmem>>, vector<1x1x32xf32>
      %199 = vector.shape_cast %198 : vector<1x1x32xf32> to vector<1x32xf32>
      %200 = vector.broadcast %199 : vector<1x32xf32> to vector<16x32xf32>
      %201 = arith.addf %197, %200 : vector<16x32xf32>
      %202 = vector.shape_cast %201 : vector<16x32xf32> to vector<16x1x32xf32>
      %203 = vector.shape_cast %202 : vector<16x1x32xf32> to vector<16x1x32xf32>
      %204 = vector.broadcast %203 : vector<16x1x32xf32> to vector<16x2x32xf32>
      %205 = vector.shape_cast %204 : vector<16x2x32xf32> to vector<32x32xf32>
      %c0_62 = arith.constant 0 : index
      %c0_63 = arith.constant 0 : index
      %206 = vector.load %arg8[%c0_62, %c0_63] : memref<32x32xf32, #tpu.memory_space<vmem>>, vector<32x32xf32>
      %207 = arith.addf %206, %205 : vector<32x32xf32>
      %c0_64 = arith.constant 0 : index
      %c0_65 = arith.constant 0 : index
      %208 = vector.load %arg8[%c0_64, %c0_65] : memref<32x32xf32, #tpu.memory_space<vmem>>, vector<32x32xf32>
      tpu.vector_store %arg8[%c0_64, %c0_65], %207 {strides = array<i32>} : memref<32x32xf32, #tpu.memory_space<vmem>>, vector<32x32xf32>,
    } else {
    }
    %c1_i32 = arith.constant 1 : i32
    %8 = arith.cmpi eq, %arg1, %c1_i32 : i32
    %9 = arith.extui %8 : i1 to i32
    %c0_i32_5 = arith.constant 0 : i32
    %10 = arith.cmpi ne, %9, %c0_i32_5 : i32
    scf.if %10 {
      %17 = vector.shape_cast %4 : vector<16x32xf32> to vector<8x2x32xf32>
      %cst = arith.constant dense<0xFF800000> : vector<8x32xf32>
      %18 = vector.multi_reduction <maximumf>, %17, %cst [1] : vector<8x2x32xf32> to vector<8x32xf32>
      %c0_9 = arith.constant 0 : index
      %c0_10 = arith.constant 0 : index
      %c0_11 = arith.constant 0 : index
      %19 = vector.load %arg3[%c0_9, %c0_10, %c0_11] : memref<1x32x96xbf16, #tpu.memory_space<vmem>>, vector<1x32x96xbf16>
      %20 = vector.shape_cast %19 : vector<1x32x96xbf16> to vector<32x96xbf16>
      %21 = arith.truncf %18 : vector<8x32xf32> to vector<8x32xbf16>
      %cst_12 = arith.constant dense<0.000000e+00> : vector<8x96xf32>
      %22 = tpu.matmul %21, %20, %cst_12 {dimension_numbers = #tpu.dot_dimension_numbers<[1], [0], [0], [1], [0, 0, 1, 1], [], []>} : vector<8x32xbf16>, vector<32x96xbf16>, vector<8x96xf32> -> vector<8x96xf32>
      %c0_13 = arith.constant 0 : index
      %c0_14 = arith.constant 0 : index
      %c0_15 = arith.constant 0 : index
      %23 = vector.load %arg4[%c0_13, %c0_14, %c0_15] : memref<1x1x96xf32, #tpu.memory_space<vmem>>, vector<1x1x96xf32>
      %24 = vector.shape_cast %23 : vector<1x1x96xf32> to vector<1x96xf32>
      %25 = vector.broadcast %24 : vector<1x96xf32> to vector<8x96xf32>
      %26 = arith.addf %22, %25 : vector<8x96xf32>
      %27 = vector.extract_strided_slice %26 {offsets = [0, 0], sizes = [8, 4], strides = [1, 1]} : vector<8x96xf32> to vector<8x4xf32>
      %28 = vector.extract_strided_slice %26 {offsets = [0, 32], sizes = [8, 4], strides = [1, 1]} : vector<8x96xf32> to vector<8x4xf32>
      %29 = vector.extract_strided_slice %26 {offsets = [0, 64], sizes = [8, 4], strides = [1, 1]} : vector<8x96xf32> to vector<8x4xf32>
      %30 = arith.truncf %27 : vector<8x4xf32> to vector<8x4xbf16>
      %31 = arith.truncf %28 : vector<8x4xf32> to vector<8x4xbf16>
      %cst_16 = arith.constant dense<0.000000e+00> : vector<8x8xf32>
      %32 = tpu.matmul %30, %31, %cst_16 {dimension_numbers = #tpu.dot_dimension_numbers<[1], [1], [0], [0], [0, 0, 1, 0], [], []>} : vector<8x4xbf16>, vector<8x4xbf16>, vector<8x8xf32> -> vector<8x8xf32>
      %cst_17 = arith.constant 5.000000e-01 : f32
      %33 = vector.broadcast %cst_17 : f32 to vector<8x8xf32>
      %34 = arith.mulf %32, %33 : vector<8x8xf32>
      %cst_18 = arith.constant dense<0xFF800000> : vector<8xf32>
      %35 = vector.multi_reduction <maximumf>, %34, %cst_18 [1] : vector<8x8xf32> to vector<8xf32>
      %36 = vector.shape_cast %35 : vector<8xf32> to vector<8x1xf32>
      %37 = vector.broadcast %36 : vector<8x1xf32> to vector<8x8xf32>
      %38 = arith.subf %34, %37 : vector<8x8xf32>
      %39 = math.exp %38 : vector<8x8xf32>
      %cst_19 = arith.constant dense<0.000000e+00> : vector<8xf32>
      %40 = vector.multi_reduction <add>, %39, %cst_19 [1] : vector<8x8xf32> to vector<8xf32>
      %41 = vector.shape_cast %40 : vector<8xf32> to vector<8x1xf32>
      %42 = tpu.reciprocal %41 {approx = true} : vector<8x1xf32> -> vector<8x1xf32>
      %43 = vector.broadcast %42 : vector<8x1xf32> to vector<8x8xf32>
      %44 = arith.mulf %39, %43 : vector<8x8xf32>
      %45 = arith.truncf %44 : vector<8x8xf32> to vector<8x8xbf16>
      %46 = arith.truncf %29 : vector<8x4xf32> to vector<8x4xbf16>
      %cst_20 = arith.constant dense<0.000000e+00> : vector<8x4xf32>
      %47 = tpu.matmul %45, %46, %cst_20 {dimension_numbers = #tpu.dot_dimension_numbers<[1], [0], [0], [1], [0, 0, 1, 1], [], []>} : vector<8x8xbf16>, vector<8x4xbf16>, vector<8x4xf32> -> vector<8x4xf32>
      %48 = vector.extract_strided_slice %26 {offsets = [0, 4], sizes = [8, 4], strides = [1, 1]} : vector<8x96xf32> to vector<8x4xf32>
      %49 = vector.extract_strided_slice %26 {offsets = [0, 36], sizes = [8, 4], strides = [1, 1]} : vector<8x96xf32> to vector<8x4xf32>
      %50 = vector.extract_strided_slice %26 {offsets = [0, 68], sizes = [8, 4], strides = [1, 1]} : vector<8x96xf32> to vector<8x4xf32>
      %51 = arith.truncf %48 : vector<8x4xf32> to vector<8x4xbf16>
      %52 = arith.truncf %49 : vector<8x4xf32> to vector<8x4xbf16>
      %cst_21 = arith.constant dense<0.000000e+00> : vector<8x8xf32>
      %53 = tpu.matmul %51, %52, %cst_21 {dimension_numbers = #tpu.dot_dimension_numbers<[1], [1], [0], [0], [0, 0, 1, 0], [], []>} : vector<8x4xbf16>, vector<8x4xbf16>, vector<8x8xf32> -> vector<8x8xf32>
      %cst_22 = arith.constant 5.000000e-01 : f32
      %54 = vector.broadcast %cst_22 : f32 to vector<8x8xf32>
      %55 = arith.mulf %53, %54 : vector<8x8xf32>
      %cst_23 = arith.constant dense<0xFF800000> : vector<8xf32>
      %56 = vector.multi_reduction <maximumf>, %55, %cst_23 [1] : vector<8x8xf32> to vector<8xf32>
      %57 = vector.shape_cast %56 : vector<8xf32> to vector<8x1xf32>
      %58 = vector.broadcast %57 : vector<8x1xf32> to vector<8x8xf32>
      %59 = arith.subf %55, %58 : vector<8x8xf32>
      %60 = math.exp %59 : vector<8x8xf32>
      %cst_24 = arith.constant dense<0.000000e+00> : vector<8xf32>
      %61 = vector.multi_reduction <add>, %60, %cst_24 [1] : vector<8x8xf32> to vector<8xf32>
      %62 = vector.shape_cast %61 : vector<8xf32> to vector<8x1xf32>
      %63 = tpu.reciprocal %62 {approx = true} : vector<8x1xf32> -> vector<8x1xf32>
      %64 = vector.broadcast %63 : vector<8x1xf32> to vector<8x8xf32>
      %65 = arith.mulf %60, %64 : vector<8x8xf32>
      %66 = arith.truncf %65 : vector<8x8xf32> to vector<8x8xbf16>
      %67 = arith.truncf %50 : vector<8x4xf32> to vector<8x4xbf16>
      %cst_25 = arith.constant dense<0.000000e+00> : vector<8x4xf32>
      %68 = tpu.matmul %66, %67, %cst_25 {dimension_numbers = #tpu.dot_dimension_numbers<[1], [0], [0], [1], [0, 0, 1, 1], [], []>} : vector<8x8xbf16>, vector<8x4xbf16>, vector<8x4xf32> -> vector<8x4xf32>
      %69 = vector.extract_strided_slice %26 {offsets = [0, 8], sizes = [8, 4], strides = [1, 1]} : vector<8x96xf32> to vector<8x4xf32>
      %70 = vector.extract_strided_slice %26 {offsets = [0, 40], sizes = [8, 4], strides = [1, 1]} : vector<8x96xf32> to vector<8x4xf32>
      %71 = vector.extract_strided_slice %26 {offsets = [0, 72], sizes = [8, 4], strides = [1, 1]} : vector<8x96xf32> to vector<8x4xf32>
      %72 = arith.truncf %69 : vector<8x4xf32> to vector<8x4xbf16>
      %73 = arith.truncf %70 : vector<8x4xf32> to vector<8x4xbf16>
      %cst_26 = arith.constant dense<0.000000e+00> : vector<8x8xf32>
      %74 = tpu.matmul %72, %73, %cst_26 {dimension_numbers = #tpu.dot_dimension_numbers<[1], [1], [0], [0], [0, 0, 1, 0], [], []>} : vector<8x4xbf16>, vector<8x4xbf16>, vector<8x8xf32> -> vector<8x8xf32>
      %cst_27 = arith.constant 5.000000e-01 : f32
      %75 = vector.broadcast %cst_27 : f32 to vector<8x8xf32>
      %76 = arith.mulf %74, %75 : vector<8x8xf32>
      %cst_28 = arith.constant dense<0xFF800000> : vector<8xf32>
      %77 = vector.multi_reduction <maximumf>, %76, %cst_28 [1] : vector<8x8xf32> to vector<8xf32>
      %78 = vector.shape_cast %77 : vector<8xf32> to vector<8x1xf32>
      %79 = vector.broadcast %78 : vector<8x1xf32> to vector<8x8xf32>
      %80 = arith.subf %76, %79 : vector<8x8xf32>
      %81 = math.exp %80 : vector<8x8xf32>
      %cst_29 = arith.constant dense<0.000000e+00> : vector<8xf32>
      %82 = vector.multi_reduction <add>, %81, %cst_29 [1] : vector<8x8xf32> to vector<8xf32>
      %83 = vector.shape_cast %82 : vector<8xf32> to vector<8x1xf32>
      %84 = tpu.reciprocal %83 {approx = true} : vector<8x1xf32> -> vector<8x1xf32>
      %85 = vector.broadcast %84 : vector<8x1xf32> to vector<8x8xf32>
      %86 = arith.mulf %81, %85 : vector<8x8xf32>
      %87 = arith.truncf %86 : vector<8x8xf32> to vector<8x8xbf16>
      %88 = arith.truncf %71 : vector<8x4xf32> to vector<8x4xbf16>
      %cst_30 = arith.constant dense<0.000000e+00> : vector<8x4xf32>
      %89 = tpu.matmul %87, %88, %cst_30 {dimension_numbers = #tpu.dot_dimension_numbers<[1], [0], [0], [1], [0, 0, 1, 1], [], []>} : vector<8x8xbf16>, vector<8x4xbf16>, vector<8x4xf32> -> vector<8x4xf32>
      %90 = vector.extract_strided_slice %26 {offsets = [0, 12], sizes = [8, 4], strides = [1, 1]} : vector<8x96xf32> to vector<8x4xf32>
      %91 = vector.extract_strided_slice %26 {offsets = [0, 44], sizes = [8, 4], strides = [1, 1]} : vector<8x96xf32> to vector<8x4xf32>
      %92 = vector.extract_strided_slice %26 {offsets = [0, 76], sizes = [8, 4], strides = [1, 1]} : vector<8x96xf32> to vector<8x4xf32>
      %93 = arith.truncf %90 : vector<8x4xf32> to vector<8x4xbf16>
      %94 = arith.truncf %91 : vector<8x4xf32> to vector<8x4xbf16>
      %cst_31 = arith.constant dense<0.000000e+00> : vector<8x8xf32>
      %95 = tpu.matmul %93, %94, %cst_31 {dimension_numbers = #tpu.dot_dimension_numbers<[1], [1], [0], [0], [0, 0, 1, 0], [], []>} : vector<8x4xbf16>, vector<8x4xbf16>, vector<8x8xf32> -> vector<8x8xf32>
      %cst_32 = arith.constant 5.000000e-01 : f32
      %96 = vector.broadcast %cst_32 : f32 to vector<8x8xf32>
      %97 = arith.mulf %95, %96 : vector<8x8xf32>
      %cst_33 = arith.constant dense<0xFF800000> : vector<8xf32>
      %98 = vector.multi_reduction <maximumf>, %97, %cst_33 [1] : vector<8x8xf32> to vector<8xf32>
      %99 = vector.shape_cast %98 : vector<8xf32> to vector<8x1xf32>
      %100 = vector.broadcast %99 : vector<8x1xf32> to vector<8x8xf32>
      %101 = arith.subf %97, %100 : vector<8x8xf32>
      %102 = math.exp %101 : vector<8x8xf32>
      %cst_34 = arith.constant dense<0.000000e+00> : vector<8xf32>
      %103 = vector.multi_reduction <add>, %102, %cst_34 [1] : vector<8x8xf32> to vector<8xf32>
      %104 = vector.shape_cast %103 : vector<8xf32> to vector<8x1xf32>
      %105 = tpu.reciprocal %104 {approx = true} : vector<8x1xf32> -> vector<8x1xf32>
      %106 = vector.broadcast %105 : vector<8x1xf32> to vector<8x8xf32>
      %107 = arith.mulf %102, %106 : vector<8x8xf32>
      %108 = arith.truncf %107 : vector<8x8xf32> to vector<8x8xbf16>
      %109 = arith.truncf %92 : vector<8x4xf32> to vector<8x4xbf16>
      %cst_35 = arith.constant dense<0.000000e+00> : vector<8x4xf32>
      %110 = tpu.matmul %108, %109, %cst_35 {dimension_numbers = #tpu.dot_dimension_numbers<[1], [0], [0], [1], [0, 0, 1, 1], [], []>} : vector<8x8xbf16>, vector<8x4xbf16>, vector<8x4xf32> -> vector<8x4xf32>
      %111 = vector.extract_strided_slice %26 {offsets = [0, 16], sizes = [8, 4], strides = [1, 1]} : vector<8x96xf32> to vector<8x4xf32>
      %112 = vector.extract_strided_slice %26 {offsets = [0, 48], sizes = [8, 4], strides = [1, 1]} : vector<8x96xf32> to vector<8x4xf32>
      %113 = vector.extract_strided_slice %26 {offsets = [0, 80], sizes = [8, 4], strides = [1, 1]} : vector<8x96xf32> to vector<8x4xf32>
      %114 = arith.truncf %111 : vector<8x4xf32> to vector<8x4xbf16>
      %115 = arith.truncf %112 : vector<8x4xf32> to vector<8x4xbf16>
      %cst_36 = arith.constant dense<0.000000e+00> : vector<8x8xf32>
      %116 = tpu.matmul %114, %115, %cst_36 {dimension_numbers = #tpu.dot_dimension_numbers<[1], [1], [0], [0], [0, 0, 1, 0], [], []>} : vector<8x4xbf16>, vector<8x4xbf16>, vector<8x8xf32> -> vector<8x8xf32>
      %cst_37 = arith.constant 5.000000e-01 : f32
      %117 = vector.broadcast %cst_37 : f32 to vector<8x8xf32>
      %118 = arith.mulf %116, %117 : vector<8x8xf32>
      %cst_38 = arith.constant dense<0xFF800000> : vector<8xf32>
      %119 = vector.multi_reduction <maximumf>, %118, %cst_38 [1] : vector<8x8xf32> to vector<8xf32>
      %120 = vector.shape_cast %119 : vector<8xf32> to vector<8x1xf32>
      %121 = vector.broadcast %120 : vector<8x1xf32> to vector<8x8xf32>
      %122 = arith.subf %118, %121 : vector<8x8xf32>
      %123 = math.exp %122 : vector<8x8xf32>
      %cst_39 = arith.constant dense<0.000000e+00> : vector<8xf32>
      %124 = vector.multi_reduction <add>, %123, %cst_39 [1] : vector<8x8xf32> to vector<8xf32>
      %125 = vector.shape_cast %124 : vector<8xf32> to vector<8x1xf32>
      %126 = tpu.reciprocal %125 {approx = true} : vector<8x1xf32> -> vector<8x1xf32>
      %127 = vector.broadcast %126 : vector<8x1xf32> to vector<8x8xf32>
      %128 = arith.mulf %123, %127 : vector<8x8xf32>
      %129 = arith.truncf %128 : vector<8x8xf32> to vector<8x8xbf16>
      %130 = arith.truncf %113 : vector<8x4xf32> to vector<8x4xbf16>
      %cst_40 = arith.constant dense<0.000000e+00> : vector<8x4xf32>
      %131 = tpu.matmul %129, %130, %cst_40 {dimension_numbers = #tpu.dot_dimension_numbers<[1], [0], [0], [1], [0, 0, 1, 1], [], []>} : vector<8x8xbf16>, vector<8x4xbf16>, vector<8x4xf32> -> vector<8x4xf32>
      %132 = vector.extract_strided_slice %26 {offsets = [0, 20], sizes = [8, 4], strides = [1, 1]} : vector<8x96xf32> to vector<8x4xf32>
      %133 = vector.extract_strided_slice %26 {offsets = [0, 52], sizes = [8, 4], strides = [1, 1]} : vector<8x96xf32> to vector<8x4xf32>
      %134 = vector.extract_strided_slice %26 {offsets = [0, 84], sizes = [8, 4], strides = [1, 1]} : vector<8x96xf32> to vector<8x4xf32>
      %135 = arith.truncf %132 : vector<8x4xf32> to vector<8x4xbf16>
      %136 = arith.truncf %133 : vector<8x4xf32> to vector<8x4xbf16>
      %cst_41 = arith.constant dense<0.000000e+00> : vector<8x8xf32>
      %137 = tpu.matmul %135, %136, %cst_41 {dimension_numbers = #tpu.dot_dimension_numbers<[1], [1], [0], [0], [0, 0, 1, 0], [], []>} : vector<8x4xbf16>, vector<8x4xbf16>, vector<8x8xf32> -> vector<8x8xf32>
      %cst_42 = arith.constant 5.000000e-01 : f32
      %138 = vector.broadcast %cst_42 : f32 to vector<8x8xf32>
      %139 = arith.mulf %137, %138 : vector<8x8xf32>
      %cst_43 = arith.constant dense<0xFF800000> : vector<8xf32>
      %140 = vector.multi_reduction <maximumf>, %139, %cst_43 [1] : vector<8x8xf32> to vector<8xf32>
      %141 = vector.shape_cast %140 : vector<8xf32> to vector<8x1xf32>
      %142 = vector.broadcast %141 : vector<8x1xf32> to vector<8x8xf32>
      %143 = arith.subf %139, %142 : vector<8x8xf32>
      %144 = math.exp %143 : vector<8x8xf32>
      %cst_44 = arith.constant dense<0.000000e+00> : vector<8xf32>
      %145 = vector.multi_reduction <add>, %144, %cst_44 [1] : vector<8x8xf32> to vector<8xf32>
      %146 = vector.shape_cast %145 : vector<8xf32> to vector<8x1xf32>
      %147 = tpu.reciprocal %146 {approx = true} : vector<8x1xf32> -> vector<8x1xf32>
      %148 = vector.broadcast %147 : vector<8x1xf32> to vector<8x8xf32>
      %149 = arith.mulf %144, %148 : vector<8x8xf32>
      %150 = arith.truncf %149 : vector<8x8xf32> to vector<8x8xbf16>
      %151 = arith.truncf %134 : vector<8x4xf32> to vector<8x4xbf16>
      %cst_45 = arith.constant dense<0.000000e+00> : vector<8x4xf32>
      %152 = tpu.matmul %150, %151, %cst_45 {dimension_numbers = #tpu.dot_dimension_numbers<[1], [0], [0], [1], [0, 0, 1, 1], [], []>} : vector<8x8xbf16>, vector<8x4xbf16>, vector<8x4xf32> -> vector<8x4xf32>
      %153 = vector.extract_strided_slice %26 {offsets = [0, 24], sizes = [8, 4], strides = [1, 1]} : vector<8x96xf32> to vector<8x4xf32>
      %154 = vector.extract_strided_slice %26 {offsets = [0, 56], sizes = [8, 4], strides = [1, 1]} : vector<8x96xf32> to vector<8x4xf32>
      %155 = vector.extract_strided_slice %26 {offsets = [0, 88], sizes = [8, 4], strides = [1, 1]} : vector<8x96xf32> to vector<8x4xf32>
      %156 = arith.truncf %153 : vector<8x4xf32> to vector<8x4xbf16>
      %157 = arith.truncf %154 : vector<8x4xf32> to vector<8x4xbf16>
      %cst_46 = arith.constant dense<0.000000e+00> : vector<8x8xf32>
      %158 = tpu.matmul %156, %157, %cst_46 {dimension_numbers = #tpu.dot_dimension_numbers<[1], [1], [0], [0], [0, 0, 1, 0], [], []>} : vector<8x4xbf16>, vector<8x4xbf16>, vector<8x8xf32> -> vector<8x8xf32>
      %cst_47 = arith.constant 5.000000e-01 : f32
      %159 = vector.broadcast %cst_47 : f32 to vector<8x8xf32>
      %160 = arith.mulf %158, %159 : vector<8x8xf32>
      %cst_48 = arith.constant dense<0xFF800000> : vector<8xf32>
      %161 = vector.multi_reduction <maximumf>, %160, %cst_48 [1] : vector<8x8xf32> to vector<8xf32>
      %162 = vector.shape_cast %161 : vector<8xf32> to vector<8x1xf32>
      %163 = vector.broadcast %162 : vector<8x1xf32> to vector<8x8xf32>
      %164 = arith.subf %160, %163 : vector<8x8xf32>
      %165 = math.exp %164 : vector<8x8xf32>
      %cst_49 = arith.constant dense<0.000000e+00> : vector<8xf32>
      %166 = vector.multi_reduction <add>, %165, %cst_49 [1] : vector<8x8xf32> to vector<8xf32>
      %167 = vector.shape_cast %166 : vector<8xf32> to vector<8x1xf32>
      %168 = tpu.reciprocal %167 {approx = true} : vector<8x1xf32> -> vector<8x1xf32>
      %169 = vector.broadcast %168 : vector<8x1xf32> to vector<8x8xf32>
      %170 = arith.mulf %165, %169 : vector<8x8xf32>
      %171 = arith.truncf %170 : vector<8x8xf32> to vector<8x8xbf16>
      %172 = arith.truncf %155 : vector<8x4xf32> to vector<8x4xbf16>
      %cst_50 = arith.constant dense<0.000000e+00> : vector<8x4xf32>
      %173 = tpu.matmul %171, %172, %cst_50 {dimension_numbers = #tpu.dot_dimension_numbers<[1], [0], [0], [1], [0, 0, 1, 1], [], []>} : vector<8x8xbf16>, vector<8x4xbf16>, vector<8x4xf32> -> vector<8x4xf32>
      %174 = vector.extract_strided_slice %26 {offsets = [0, 28], sizes = [8, 4], strides = [1, 1]} : vector<8x96xf32> to vector<8x4xf32>
      %175 = vector.extract_strided_slice %26 {offsets = [0, 60], sizes = [8, 4], strides = [1, 1]} : vector<8x96xf32> to vector<8x4xf32>
      %176 = vector.extract_strided_slice %26 {offsets = [0, 92], sizes = [8, 4], strides = [1, 1]} : vector<8x96xf32> to vector<8x4xf32>
      %177 = arith.truncf %174 : vector<8x4xf32> to vector<8x4xbf16>
      %178 = arith.truncf %175 : vector<8x4xf32> to vector<8x4xbf16>
      %cst_51 = arith.constant dense<0.000000e+00> : vector<8x8xf32>
      %179 = tpu.matmul %177, %178, %cst_51 {dimension_numbers = #tpu.dot_dimension_numbers<[1], [1], [0], [0], [0, 0, 1, 0], [], []>} : vector<8x4xbf16>, vector<8x4xbf16>, vector<8x8xf32> -> vector<8x8xf32>
      %cst_52 = arith.constant 5.000000e-01 : f32
      %180 = vector.broadcast %cst_52 : f32 to vector<8x8xf32>
      %181 = arith.mulf %179, %180 : vector<8x8xf32>
      %cst_53 = arith.constant dense<0xFF800000> : vector<8xf32>
      %182 = vector.multi_reduction <maximumf>, %181, %cst_53 [1] : vector<8x8xf32> to vector<8xf32>
      %183 = vector.shape_cast %182 : vector<8xf32> to vector<8x1xf32>
      %184 = vector.broadcast %183 : vector<8x1xf32> to vector<8x8xf32>
      %185 = arith.subf %181, %184 : vector<8x8xf32>
      %186 = math.exp %185 : vector<8x8xf32>
      %cst_54 = arith.constant dense<0.000000e+00> : vector<8xf32>
      %187 = vector.multi_reduction <add>, %186, %cst_54 [1] : vector<8x8xf32> to vector<8xf32>
      %188 = vector.shape_cast %187 : vector<8xf32> to vector<8x1xf32>
      %189 = tpu.reciprocal %188 {approx = true} : vector<8x1xf32> -> vector<8x1xf32>
      %190 = vector.broadcast %189 : vector<8x1xf32> to vector<8x8xf32>
      %191 = arith.mulf %186, %190 : vector<8x8xf32>
      %192 = arith.truncf %191 : vector<8x8xf32> to vector<8x8xbf16>
      %193 = arith.truncf %176 : vector<8x4xf32> to vector<8x4xbf16>
      %cst_55 = arith.constant dense<0.000000e+00> : vector<8x4xf32>
      %194 = tpu.matmul %192, %193, %cst_55 {dimension_numbers = #tpu.dot_dimension_numbers<[1], [0], [0], [1], [0, 0, 1, 1], [], []>} : vector<8x8xbf16>, vector<8x4xbf16>, vector<8x4xf32> -> vector<8x4xf32>
      %195 = tpu.concatenate %47, %68, %89, %110, %131, %152, %173, %194 in 1 : vector<8x4xf32>, vector<8x4xf32>, vector<8x4xf32>, vector<8x4xf32>, vector<8x4xf32>, vector<8x4xf32>, vector<8x4xf32>, vector<8x4xf32> -> vector<8x32xf32>
      %c0_56 = arith.constant 0 : index
      %c0_57 = arith.constant 0 : index
      %c0_58 = arith.constant 0 : index
      %196 = vector.load %arg5[%c0_56, %c0_57, %c0_58] : memref<1x32x32xbf16, #tpu.memory_space<vmem>>, vector<1x32x32xbf16>
      %197 = vector.shape_cast %196 : vector<1x32x32xbf16> to vector<32x32xbf16>
      %198 = arith.truncf %195 : vector<8x32xf32> to vector<8x32xbf16>
      %cst_59 = arith.constant dense<0.000000e+00> : vector<8x32xf32>
      %199 = tpu.matmul %198, %197, %cst_59 {dimension_numbers = #tpu.dot_dimension_numbers<[1], [0], [0], [1], [0, 0, 1, 1], [], []>} : vector<8x32xbf16>, vector<32x32xbf16>, vector<8x32xf32> -> vector<8x32xf32>
      %c0_60 = arith.constant 0 : index
      %c0_61 = arith.constant 0 : index
      %c0_62 = arith.constant 0 : index
      %200 = vector.load %arg6[%c0_60, %c0_61, %c0_62] : memref<1x1x32xf32, #tpu.memory_space<vmem>>, vector<1x1x32xf32>
      %201 = vector.shape_cast %200 : vector<1x1x32xf32> to vector<1x32xf32>
      %202 = vector.broadcast %201 : vector<1x32xf32> to vector<8x32xf32>
      %203 = arith.addf %199, %202 : vector<8x32xf32>
      %204 = vector.shape_cast %203 : vector<8x32xf32> to vector<8x1x32xf32>
      %205 = vector.shape_cast %204 : vector<8x1x32xf32> to vector<8x1x32xf32>
      %206 = vector.broadcast %205 : vector<8x1x32xf32> to vector<8x4x32xf32>
      %207 = vector.shape_cast %206 : vector<8x4x32xf32> to vector<32x32xf32>
      %c0_63 = arith.constant 0 : index
      %c0_64 = arith.constant 0 : index
      %208 = vector.load %arg8[%c0_63, %c0_64] : memref<32x32xf32, #tpu.memory_space<vmem>>, vector<32x32xf32>
      %209 = arith.addf %208, %207 : vector<32x32xf32>
      %c0_65 = arith.constant 0 : index
      %c0_66 = arith.constant 0 : index
      %210 = vector.load %arg8[%c0_65, %c0_66] : memref<32x32xf32, #tpu.memory_space<vmem>>, vector<32x32xf32>
      tpu.vector_store %arg8[%c0_65, %c0_66], %209 {strides = array<i32>} : memref<32x32xf32, #tpu.memory_space<vmem>>, vector<32x32xf32>,
    } else {
    }
    %c2_i32 = arith.constant 2 : i32
    %11 = arith.cmpi eq, %arg1, %c2_i32 : i32
    %12 = arith.extui %11 : i1 to i32
    %c0_i32_6 = arith.constant 0 : i32
    %13 = arith.cmpi ne, %12, %c0_i32_6 : i32
    scf.if %13 {
      %17 = vector.shape_cast %4 : vector<16x32xf32> to vector<4x4x32xf32>
      %cst = arith.constant dense<0xFF800000> : vector<4x32xf32>
      %18 = vector.multi_reduction <maximumf>, %17, %cst [1] : vector<4x4x32xf32> to vector<4x32xf32>
      %c0_9 = arith.constant 0 : index
      %c0_10 = arith.constant 0 : index
      %c0_11 = arith.constant 0 : index
      %19 = vector.load %arg3[%c0_9, %c0_10, %c0_11] : memref<1x32x96xbf16, #tpu.memory_space<vmem>>, vector<1x32x96xbf16>
      %20 = vector.shape_cast %19 : vector<1x32x96xbf16> to vector<32x96xbf16>
      %21 = arith.truncf %18 : vector<4x32xf32> to vector<4x32xbf16>
      %cst_12 = arith.constant dense<0.000000e+00> : vector<4x96xf32>
      %22 = tpu.matmul %21, %20, %cst_12 {dimension_numbers = #tpu.dot_dimension_numbers<[1], [0], [0], [1], [0, 0, 1, 1], [], []>} : vector<4x32xbf16>, vector<32x96xbf16>, vector<4x96xf32> -> vector<4x96xf32>
      %c0_13 = arith.constant 0 : index
      %c0_14 = arith.constant 0 : index
      %c0_15 = arith.constant 0 : index
      %23 = vector.load %arg4[%c0_13, %c0_14, %c0_15] : memref<1x1x96xf32, #tpu.memory_space<vmem>>, vector<1x1x96xf32>
      %24 = vector.shape_cast %23 : vector<1x1x96xf32> to vector<1x96xf32>
      %25 = vector.broadcast %24 : vector<1x96xf32> to vector<4x96xf32>
      %26 = arith.addf %22, %25 : vector<4x96xf32>
      %27 = vector.extract_strided_slice %26 {offsets = [0, 0], sizes = [4, 4], strides = [1, 1]} : vector<4x96xf32> to vector<4x4xf32>
      %28 = vector.extract_strided_slice %26 {offsets = [0, 32], sizes = [4, 4], strides = [1, 1]} : vector<4x96xf32> to vector<4x4xf32>
      %29 = vector.extract_strided_slice %26 {offsets = [0, 64], sizes = [4, 4], strides = [1, 1]} : vector<4x96xf32> to vector<4x4xf32>
      %30 = arith.truncf %27 : vector<4x4xf32> to vector<4x4xbf16>
      %31 = arith.truncf %28 : vector<4x4xf32> to vector<4x4xbf16>
      %cst_16 = arith.constant dense<0.000000e+00> : vector<4x4xf32>
      %32 = tpu.matmul %30, %31, %cst_16 {dimension_numbers = #tpu.dot_dimension_numbers<[1], [1], [0], [0], [0, 0, 1, 0], [], []>} : vector<4x4xbf16>, vector<4x4xbf16>, vector<4x4xf32> -> vector<4x4xf32>
      %cst_17 = arith.constant 5.000000e-01 : f32
      %33 = vector.broadcast %cst_17 : f32 to vector<4x4xf32>
      %34 = arith.mulf %32, %33 : vector<4x4xf32>
      %cst_18 = arith.constant dense<0xFF800000> : vector<4xf32>
      %35 = vector.multi_reduction <maximumf>, %34, %cst_18 [1] : vector<4x4xf32> to vector<4xf32>
      %36 = vector.shape_cast %35 : vector<4xf32> to vector<4x1xf32>
      %37 = vector.broadcast %36 : vector<4x1xf32> to vector<4x4xf32>
      %38 = arith.subf %34, %37 : vector<4x4xf32>
      %39 = math.exp %38 : vector<4x4xf32>
      %cst_19 = arith.constant dense<0.000000e+00> : vector<4xf32>
      %40 = vector.multi_reduction <add>, %39, %cst_19 [1] : vector<4x4xf32> to vector<4xf32>
      %41 = vector.shape_cast %40 : vector<4xf32> to vector<4x1xf32>
      %42 = tpu.reciprocal %41 {approx = true} : vector<4x1xf32> -> vector<4x1xf32>
      %43 = vector.broadcast %42 : vector<4x1xf32> to vector<4x4xf32>
      %44 = arith.mulf %39, %43 : vector<4x4xf32>
      %45 = arith.truncf %44 : vector<4x4xf32> to vector<4x4xbf16>
      %46 = arith.truncf %29 : vector<4x4xf32> to vector<4x4xbf16>
      %cst_20 = arith.constant dense<0.000000e+00> : vector<4x4xf32>
      %47 = tpu.matmul %45, %46, %cst_20 {dimension_numbers = #tpu.dot_dimension_numbers<[1], [0], [0], [1], [0, 0, 1, 1], [], []>} : vector<4x4xbf16>, vector<4x4xbf16>, vector<4x4xf32> -> vector<4x4xf32>
      %48 = vector.extract_strided_slice %26 {offsets = [0, 4], sizes = [4, 4], strides = [1, 1]} : vector<4x96xf32> to vector<4x4xf32>
      %49 = vector.extract_strided_slice %26 {offsets = [0, 36], sizes = [4, 4], strides = [1, 1]} : vector<4x96xf32> to vector<4x4xf32>
      %50 = vector.extract_strided_slice %26 {offsets = [0, 68], sizes = [4, 4], strides = [1, 1]} : vector<4x96xf32> to vector<4x4xf32>
      %51 = arith.truncf %48 : vector<4x4xf32> to vector<4x4xbf16>
      %52 = arith.truncf %49 : vector<4x4xf32> to vector<4x4xbf16>
      %cst_21 = arith.constant dense<0.000000e+00> : vector<4x4xf32>
      %53 = tpu.matmul %51, %52, %cst_21 {dimension_numbers = #tpu.dot_dimension_numbers<[1], [1], [0], [0], [0, 0, 1, 0], [], []>} : vector<4x4xbf16>, vector<4x4xbf16>, vector<4x4xf32> -> vector<4x4xf32>
      %cst_22 = arith.constant 5.000000e-01 : f32
      %54 = vector.broadcast %cst_22 : f32 to vector<4x4xf32>
      %55 = arith.mulf %53, %54 : vector<4x4xf32>
      %cst_23 = arith.constant dense<0xFF800000> : vector<4xf32>
      %56 = vector.multi_reduction <maximumf>, %55, %cst_23 [1] : vector<4x4xf32> to vector<4xf32>
      %57 = vector.shape_cast %56 : vector<4xf32> to vector<4x1xf32>
      %58 = vector.broadcast %57 : vector<4x1xf32> to vector<4x4xf32>
      %59 = arith.subf %55, %58 : vector<4x4xf32>
      %60 = math.exp %59 : vector<4x4xf32>
      %cst_24 = arith.constant dense<0.000000e+00> : vector<4xf32>
      %61 = vector.multi_reduction <add>, %60, %cst_24 [1] : vector<4x4xf32> to vector<4xf32>
      %62 = vector.shape_cast %61 : vector<4xf32> to vector<4x1xf32>
      %63 = tpu.reciprocal %62 {approx = true} : vector<4x1xf32> -> vector<4x1xf32>
      %64 = vector.broadcast %63 : vector<4x1xf32> to vector<4x4xf32>
      %65 = arith.mulf %60, %64 : vector<4x4xf32>
      %66 = arith.truncf %65 : vector<4x4xf32> to vector<4x4xbf16>
      %67 = arith.truncf %50 : vector<4x4xf32> to vector<4x4xbf16>
      %cst_25 = arith.constant dense<0.000000e+00> : vector<4x4xf32>
      %68 = tpu.matmul %66, %67, %cst_25 {dimension_numbers = #tpu.dot_dimension_numbers<[1], [0], [0], [1], [0, 0, 1, 1], [], []>} : vector<4x4xbf16>, vector<4x4xbf16>, vector<4x4xf32> -> vector<4x4xf32>
      %69 = vector.extract_strided_slice %26 {offsets = [0, 8], sizes = [4, 4], strides = [1, 1]} : vector<4x96xf32> to vector<4x4xf32>
      %70 = vector.extract_strided_slice %26 {offsets = [0, 40], sizes = [4, 4], strides = [1, 1]} : vector<4x96xf32> to vector<4x4xf32>
      %71 = vector.extract_strided_slice %26 {offsets = [0, 72], sizes = [4, 4], strides = [1, 1]} : vector<4x96xf32> to vector<4x4xf32>
      %72 = arith.truncf %69 : vector<4x4xf32> to vector<4x4xbf16>
      %73 = arith.truncf %70 : vector<4x4xf32> to vector<4x4xbf16>
      %cst_26 = arith.constant dense<0.000000e+00> : vector<4x4xf32>
      %74 = tpu.matmul %72, %73, %cst_26 {dimension_numbers = #tpu.dot_dimension_numbers<[1], [1], [0], [0], [0, 0, 1, 0], [], []>} : vector<4x4xbf16>, vector<4x4xbf16>, vector<4x4xf32> -> vector<4x4xf32>
      %cst_27 = arith.constant 5.000000e-01 : f32
      %75 = vector.broadcast %cst_27 : f32 to vector<4x4xf32>
      %76 = arith.mulf %74, %75 : vector<4x4xf32>
      %cst_28 = arith.constant dense<0xFF800000> : vector<4xf32>
      %77 = vector.multi_reduction <maximumf>, %76, %cst_28 [1] : vector<4x4xf32> to vector<4xf32>
      %78 = vector.shape_cast %77 : vector<4xf32> to vector<4x1xf32>
      %79 = vector.broadcast %78 : vector<4x1xf32> to vector<4x4xf32>
      %80 = arith.subf %76, %79 : vector<4x4xf32>
      %81 = math.exp %80 : vector<4x4xf32>
      %cst_29 = arith.constant dense<0.000000e+00> : vector<4xf32>
      %82 = vector.multi_reduction <add>, %81, %cst_29 [1] : vector<4x4xf32> to vector<4xf32>
      %83 = vector.shape_cast %82 : vector<4xf32> to vector<4x1xf32>
      %84 = tpu.reciprocal %83 {approx = true} : vector<4x1xf32> -> vector<4x1xf32>
      %85 = vector.broadcast %84 : vector<4x1xf32> to vector<4x4xf32>
      %86 = arith.mulf %81, %85 : vector<4x4xf32>
      %87 = arith.truncf %86 : vector<4x4xf32> to vector<4x4xbf16>
      %88 = arith.truncf %71 : vector<4x4xf32> to vector<4x4xbf16>
      %cst_30 = arith.constant dense<0.000000e+00> : vector<4x4xf32>
      %89 = tpu.matmul %87, %88, %cst_30 {dimension_numbers = #tpu.dot_dimension_numbers<[1], [0], [0], [1], [0, 0, 1, 1], [], []>} : vector<4x4xbf16>, vector<4x4xbf16>, vector<4x4xf32> -> vector<4x4xf32>
      %90 = vector.extract_strided_slice %26 {offsets = [0, 12], sizes = [4, 4], strides = [1, 1]} : vector<4x96xf32> to vector<4x4xf32>
      %91 = vector.extract_strided_slice %26 {offsets = [0, 44], sizes = [4, 4], strides = [1, 1]} : vector<4x96xf32> to vector<4x4xf32>
      %92 = vector.extract_strided_slice %26 {offsets = [0, 76], sizes = [4, 4], strides = [1, 1]} : vector<4x96xf32> to vector<4x4xf32>
      %93 = arith.truncf %90 : vector<4x4xf32> to vector<4x4xbf16>
      %94 = arith.truncf %91 : vector<4x4xf32> to vector<4x4xbf16>
      %cst_31 = arith.constant dense<0.000000e+00> : vector<4x4xf32>
      %95 = tpu.matmul %93, %94, %cst_31 {dimension_numbers = #tpu.dot_dimension_numbers<[1], [1], [0], [0], [0, 0, 1, 0], [], []>} : vector<4x4xbf16>, vector<4x4xbf16>, vector<4x4xf32> -> vector<4x4xf32>
      %cst_32 = arith.constant 5.000000e-01 : f32
      %96 = vector.broadcast %cst_32 : f32 to vector<4x4xf32>
      %97 = arith.mulf %95, %96 : vector<4x4xf32>
      %cst_33 = arith.constant dense<0xFF800000> : vector<4xf32>
      %98 = vector.multi_reduction <maximumf>, %97, %cst_33 [1] : vector<4x4xf32> to vector<4xf32>
      %99 = vector.shape_cast %98 : vector<4xf32> to vector<4x1xf32>
      %100 = vector.broadcast %99 : vector<4x1xf32> to vector<4x4xf32>
      %101 = arith.subf %97, %100 : vector<4x4xf32>
      %102 = math.exp %101 : vector<4x4xf32>
      %cst_34 = arith.constant dense<0.000000e+00> : vector<4xf32>
      %103 = vector.multi_reduction <add>, %102, %cst_34 [1] : vector<4x4xf32> to vector<4xf32>
      %104 = vector.shape_cast %103 : vector<4xf32> to vector<4x1xf32>
      %105 = tpu.reciprocal %104 {approx = true} : vector<4x1xf32> -> vector<4x1xf32>
      %106 = vector.broadcast %105 : vector<4x1xf32> to vector<4x4xf32>
      %107 = arith.mulf %102, %106 : vector<4x4xf32>
      %108 = arith.truncf %107 : vector<4x4xf32> to vector<4x4xbf16>
      %109 = arith.truncf %92 : vector<4x4xf32> to vector<4x4xbf16>
      %cst_35 = arith.constant dense<0.000000e+00> : vector<4x4xf32>
      %110 = tpu.matmul %108, %109, %cst_35 {dimension_numbers = #tpu.dot_dimension_numbers<[1], [0], [0], [1], [0, 0, 1, 1], [], []>} : vector<4x4xbf16>, vector<4x4xbf16>, vector<4x4xf32> -> vector<4x4xf32>
      %111 = vector.extract_strided_slice %26 {offsets = [0, 16], sizes = [4, 4], strides = [1, 1]} : vector<4x96xf32> to vector<4x4xf32>
      %112 = vector.extract_strided_slice %26 {offsets = [0, 48], sizes = [4, 4], strides = [1, 1]} : vector<4x96xf32> to vector<4x4xf32>
      %113 = vector.extract_strided_slice %26 {offsets = [0, 80], sizes = [4, 4], strides = [1, 1]} : vector<4x96xf32> to vector<4x4xf32>
      %114 = arith.truncf %111 : vector<4x4xf32> to vector<4x4xbf16>
      %115 = arith.truncf %112 : vector<4x4xf32> to vector<4x4xbf16>
      %cst_36 = arith.constant dense<0.000000e+00> : vector<4x4xf32>
      %116 = tpu.matmul %114, %115, %cst_36 {dimension_numbers = #tpu.dot_dimension_numbers<[1], [1], [0], [0], [0, 0, 1, 0], [], []>} : vector<4x4xbf16>, vector<4x4xbf16>, vector<4x4xf32> -> vector<4x4xf32>
      %cst_37 = arith.constant 5.000000e-01 : f32
      %117 = vector.broadcast %cst_37 : f32 to vector<4x4xf32>
      %118 = arith.mulf %116, %117 : vector<4x4xf32>
      %cst_38 = arith.constant dense<0xFF800000> : vector<4xf32>
      %119 = vector.multi_reduction <maximumf>, %118, %cst_38 [1] : vector<4x4xf32> to vector<4xf32>
      %120 = vector.shape_cast %119 : vector<4xf32> to vector<4x1xf32>
      %121 = vector.broadcast %120 : vector<4x1xf32> to vector<4x4xf32>
      %122 = arith.subf %118, %121 : vector<4x4xf32>
      %123 = math.exp %122 : vector<4x4xf32>
      %cst_39 = arith.constant dense<0.000000e+00> : vector<4xf32>
      %124 = vector.multi_reduction <add>, %123, %cst_39 [1] : vector<4x4xf32> to vector<4xf32>
      %125 = vector.shape_cast %124 : vector<4xf32> to vector<4x1xf32>
      %126 = tpu.reciprocal %125 {approx = true} : vector<4x1xf32> -> vector<4x1xf32>
      %127 = vector.broadcast %126 : vector<4x1xf32> to vector<4x4xf32>
      %128 = arith.mulf %123, %127 : vector<4x4xf32>
      %129 = arith.truncf %128 : vector<4x4xf32> to vector<4x4xbf16>
      %130 = arith.truncf %113 : vector<4x4xf32> to vector<4x4xbf16>
      %cst_40 = arith.constant dense<0.000000e+00> : vector<4x4xf32>
      %131 = tpu.matmul %129, %130, %cst_40 {dimension_numbers = #tpu.dot_dimension_numbers<[1], [0], [0], [1], [0, 0, 1, 1], [], []>} : vector<4x4xbf16>, vector<4x4xbf16>, vector<4x4xf32> -> vector<4x4xf32>
      %132 = vector.extract_strided_slice %26 {offsets = [0, 20], sizes = [4, 4], strides = [1, 1]} : vector<4x96xf32> to vector<4x4xf32>
      %133 = vector.extract_strided_slice %26 {offsets = [0, 52], sizes = [4, 4], strides = [1, 1]} : vector<4x96xf32> to vector<4x4xf32>
      %134 = vector.extract_strided_slice %26 {offsets = [0, 84], sizes = [4, 4], strides = [1, 1]} : vector<4x96xf32> to vector<4x4xf32>
      %135 = arith.truncf %132 : vector<4x4xf32> to vector<4x4xbf16>
      %136 = arith.truncf %133 : vector<4x4xf32> to vector<4x4xbf16>
      %cst_41 = arith.constant dense<0.000000e+00> : vector<4x4xf32>
      %137 = tpu.matmul %135, %136, %cst_41 {dimension_numbers = #tpu.dot_dimension_numbers<[1], [1], [0], [0], [0, 0, 1, 0], [], []>} : vector<4x4xbf16>, vector<4x4xbf16>, vector<4x4xf32> -> vector<4x4xf32>
      %cst_42 = arith.constant 5.000000e-01 : f32
      %138 = vector.broadcast %cst_42 : f32 to vector<4x4xf32>
      %139 = arith.mulf %137, %138 : vector<4x4xf32>
      %cst_43 = arith.constant dense<0xFF800000> : vector<4xf32>
      %140 = vector.multi_reduction <maximumf>, %139, %cst_43 [1] : vector<4x4xf32> to vector<4xf32>
      %141 = vector.shape_cast %140 : vector<4xf32> to vector<4x1xf32>
      %142 = vector.broadcast %141 : vector<4x1xf32> to vector<4x4xf32>
      %143 = arith.subf %139, %142 : vector<4x4xf32>
      %144 = math.exp %143 : vector<4x4xf32>
      %cst_44 = arith.constant dense<0.000000e+00> : vector<4xf32>
      %145 = vector.multi_reduction <add>, %144, %cst_44 [1] : vector<4x4xf32> to vector<4xf32>
      %146 = vector.shape_cast %145 : vector<4xf32> to vector<4x1xf32>
      %147 = tpu.reciprocal %146 {approx = true} : vector<4x1xf32> -> vector<4x1xf32>
      %148 = vector.broadcast %147 : vector<4x1xf32> to vector<4x4xf32>
      %149 = arith.mulf %144, %148 : vector<4x4xf32>
      %150 = arith.truncf %149 : vector<4x4xf32> to vector<4x4xbf16>
      %151 = arith.truncf %134 : vector<4x4xf32> to vector<4x4xbf16>
      %cst_45 = arith.constant dense<0.000000e+00> : vector<4x4xf32>
      %152 = tpu.matmul %150, %151, %cst_45 {dimension_numbers = #tpu.dot_dimension_numbers<[1], [0], [0], [1], [0, 0, 1, 1], [], []>} : vector<4x4xbf16>, vector<4x4xbf16>, vector<4x4xf32> -> vector<4x4xf32>
      %153 = vector.extract_strided_slice %26 {offsets = [0, 24], sizes = [4, 4], strides = [1, 1]} : vector<4x96xf32> to vector<4x4xf32>
      %154 = vector.extract_strided_slice %26 {offsets = [0, 56], sizes = [4, 4], strides = [1, 1]} : vector<4x96xf32> to vector<4x4xf32>
      %155 = vector.extract_strided_slice %26 {offsets = [0, 88], sizes = [4, 4], strides = [1, 1]} : vector<4x96xf32> to vector<4x4xf32>
      %156 = arith.truncf %153 : vector<4x4xf32> to vector<4x4xbf16>
      %157 = arith.truncf %154 : vector<4x4xf32> to vector<4x4xbf16>
      %cst_46 = arith.constant dense<0.000000e+00> : vector<4x4xf32>
      %158 = tpu.matmul %156, %157, %cst_46 {dimension_numbers = #tpu.dot_dimension_numbers<[1], [1], [0], [0], [0, 0, 1, 0], [], []>} : vector<4x4xbf16>, vector<4x4xbf16>, vector<4x4xf32> -> vector<4x4xf32>
      %cst_47 = arith.constant 5.000000e-01 : f32
      %159 = vector.broadcast %cst_47 : f32 to vector<4x4xf32>
      %160 = arith.mulf %158, %159 : vector<4x4xf32>
      %cst_48 = arith.constant dense<0xFF800000> : vector<4xf32>
      %161 = vector.multi_reduction <maximumf>, %160, %cst_48 [1] : vector<4x4xf32> to vector<4xf32>
      %162 = vector.shape_cast %161 : vector<4xf32> to vector<4x1xf32>
      %163 = vector.broadcast %162 : vector<4x1xf32> to vector<4x4xf32>
      %164 = arith.subf %160, %163 : vector<4x4xf32>
      %165 = math.exp %164 : vector<4x4xf32>
      %cst_49 = arith.constant dense<0.000000e+00> : vector<4xf32>
      %166 = vector.multi_reduction <add>, %165, %cst_49 [1] : vector<4x4xf32> to vector<4xf32>
      %167 = vector.shape_cast %166 : vector<4xf32> to vector<4x1xf32>
      %168 = tpu.reciprocal %167 {approx = true} : vector<4x1xf32> -> vector<4x1xf32>
      %169 = vector.broadcast %168 : vector<4x1xf32> to vector<4x4xf32>
      %170 = arith.mulf %165, %169 : vector<4x4xf32>
      %171 = arith.truncf %170 : vector<4x4xf32> to vector<4x4xbf16>
      %172 = arith.truncf %155 : vector<4x4xf32> to vector<4x4xbf16>
      %cst_50 = arith.constant dense<0.000000e+00> : vector<4x4xf32>
      %173 = tpu.matmul %171, %172, %cst_50 {dimension_numbers = #tpu.dot_dimension_numbers<[1], [0], [0], [1], [0, 0, 1, 1], [], []>} : vector<4x4xbf16>, vector<4x4xbf16>, vector<4x4xf32> -> vector<4x4xf32>
      %174 = vector.extract_strided_slice %26 {offsets = [0, 28], sizes = [4, 4], strides = [1, 1]} : vector<4x96xf32> to vector<4x4xf32>
      %175 = vector.extract_strided_slice %26 {offsets = [0, 60], sizes = [4, 4], strides = [1, 1]} : vector<4x96xf32> to vector<4x4xf32>
      %176 = vector.extract_strided_slice %26 {offsets = [0, 92], sizes = [4, 4], strides = [1, 1]} : vector<4x96xf32> to vector<4x4xf32>
      %177 = arith.truncf %174 : vector<4x4xf32> to vector<4x4xbf16>
      %178 = arith.truncf %175 : vector<4x4xf32> to vector<4x4xbf16>
      %cst_51 = arith.constant dense<0.000000e+00> : vector<4x4xf32>
      %179 = tpu.matmul %177, %178, %cst_51 {dimension_numbers = #tpu.dot_dimension_numbers<[1], [1], [0], [0], [0, 0, 1, 0], [], []>} : vector<4x4xbf16>, vector<4x4xbf16>, vector<4x4xf32> -> vector<4x4xf32>
      %cst_52 = arith.constant 5.000000e-01 : f32
      %180 = vector.broadcast %cst_52 : f32 to vector<4x4xf32>
      %181 = arith.mulf %179, %180 : vector<4x4xf32>
      %cst_53 = arith.constant dense<0xFF800000> : vector<4xf32>
      %182 = vector.multi_reduction <maximumf>, %181, %cst_53 [1] : vector<4x4xf32> to vector<4xf32>
      %183 = vector.shape_cast %182 : vector<4xf32> to vector<4x1xf32>
      %184 = vector.broadcast %183 : vector<4x1xf32> to vector<4x4xf32>
      %185 = arith.subf %181, %184 : vector<4x4xf32>
      %186 = math.exp %185 : vector<4x4xf32>
      %cst_54 = arith.constant dense<0.000000e+00> : vector<4xf32>
      %187 = vector.multi_reduction <add>, %186, %cst_54 [1] : vector<4x4xf32> to vector<4xf32>
      %188 = vector.shape_cast %187 : vector<4xf32> to vector<4x1xf32>
      %189 = tpu.reciprocal %188 {approx = true} : vector<4x1xf32> -> vector<4x1xf32>
      %190 = vector.broadcast %189 : vector<4x1xf32> to vector<4x4xf32>
      %191 = arith.mulf %186, %190 : vector<4x4xf32>
      %192 = arith.truncf %191 : vector<4x4xf32> to vector<4x4xbf16>
      %193 = arith.truncf %176 : vector<4x4xf32> to vector<4x4xbf16>
      %cst_55 = arith.constant dense<0.000000e+00> : vector<4x4xf32>
      %194 = tpu.matmul %192, %193, %cst_55 {dimension_numbers = #tpu.dot_dimension_numbers<[1], [0], [0], [1], [0, 0, 1, 1], [], []>} : vector<4x4xbf16>, vector<4x4xbf16>, vector<4x4xf32> -> vector<4x4xf32>
      %195 = tpu.concatenate %47, %68, %89, %110, %131, %152, %173, %194 in 1 : vector<4x4xf32>, vector<4x4xf32>, vector<4x4xf32>, vector<4x4xf32>, vector<4x4xf32>, vector<4x4xf32>, vector<4x4xf32>, vector<4x4xf32> -> vector<4x32xf32>
      %c0_56 = arith.constant 0 : index
      %c0_57 = arith.constant 0 : index
      %c0_58 = arith.constant 0 : index
      %196 = vector.load %arg5[%c0_56, %c0_57, %c0_58] : memref<1x32x32xbf16, #tpu.memory_space<vmem>>, vector<1x32x32xbf16>
      %197 = vector.shape_cast %196 : vector<1x32x32xbf16> to vector<32x32xbf16>
      %198 = arith.truncf %195 : vector<4x32xf32> to vector<4x32xbf16>
      %cst_59 = arith.constant dense<0.000000e+00> : vector<4x32xf32>
      %199 = tpu.matmul %198, %197, %cst_59 {dimension_numbers = #tpu.dot_dimension_numbers<[1], [0], [0], [1], [0, 0, 1, 1], [], []>} : vector<4x32xbf16>, vector<32x32xbf16>, vector<4x32xf32> -> vector<4x32xf32>
      %c0_60 = arith.constant 0 : index
      %c0_61 = arith.constant 0 : index
      %c0_62 = arith.constant 0 : index
      %200 = vector.load %arg6[%c0_60, %c0_61, %c0_62] : memref<1x1x32xf32, #tpu.memory_space<vmem>>, vector<1x1x32xf32>
      %201 = vector.shape_cast %200 : vector<1x1x32xf32> to vector<1x32xf32>
      %202 = vector.broadcast %201 : vector<1x32xf32> to vector<4x32xf32>
      %203 = arith.addf %199, %202 : vector<4x32xf32>
      %204 = vector.shape_cast %203 : vector<4x32xf32> to vector<4x1x32xf32>
      %205 = vector.shape_cast %204 : vector<4x1x32xf32> to vector<4x1x32xf32>
      %206 = vector.broadcast %205 : vector<4x1x32xf32> to vector<4x8x32xf32>
      %207 = vector.shape_cast %206 : vector<4x8x32xf32> to vector<32x32xf32>
      %c0_63 = arith.constant 0 : index
      %c0_64 = arith.constant 0 : index
      %208 = vector.load %arg8[%c0_63, %c0_64] : memref<32x32xf32, #tpu.memory_space<vmem>>, vector<32x32xf32>
      %209 = arith.addf %208, %207 : vector<32x32xf32>
      %c0_65 = arith.constant 0 : index
      %c0_66 = arith.constant 0 : index
      %210 = vector.load %arg8[%c0_65, %c0_66] : memref<32x32xf32, #tpu.memory_space<vmem>>, vector<32x32xf32>
      tpu.vector_store %arg8[%c0_65, %c0_66], %209 {strides = array<i32>} : memref<32x32xf32, #tpu.memory_space<vmem>>, vector<32x32xf32>,
    } else {
    }
    %c2_i32_7 = arith.constant 2 : i32
    %14 = arith.cmpi eq, %arg1, %c2_i32_7 : i32
    %15 = arith.extui %14 : i1 to i32
    %c0_i32_8 = arith.constant 0 : i32
    %16 = arith.cmpi ne, %15, %c0_i32_8 : i32
    scf.if %16 {
      %c0_9 = arith.constant 0 : index
      %c0_10 = arith.constant 0 : index
      %17 = vector.load %arg8[%c0_9, %c0_10] : memref<32x32xf32, #tpu.memory_space<vmem>>, vector<32x32xf32>
      %cst = arith.constant 0.333333343 : f32
      %18 = vector.broadcast %cst : f32 to vector<32x32xf32>
      %19 = arith.mulf %17, %18 : vector<32x32xf32>
      %c0_11 = arith.constant 0 : index
      %c0_12 = arith.constant 0 : index
      %c0_13 = arith.constant 0 : index
      %20 = vector.load %arg7[%c0_11, %c0_12, %c0_13] : memref<1x32x32xf32, #tpu.memory_space<vmem>>, vector<1x32x32xf32>
      %21 = vector.shape_cast %20 : vector<1x32x32xf32> to vector<32x32xf32>
      %22 = vector.shape_cast %19 : vector<32x32xf32> to vector<1x32x32xf32>
      tpu.vector_store %arg7[%c0_11, %c0_12, %c0_13], %22 {strides = array<i32>} : memref<1x32x32xf32, #tpu.memory_space<vmem>>, vector<1x32x32xf32>,
    } else {
    }
    return
  }
  func.func @transform_0(%arg0: i32, %arg1: i32) -> (i32, i32, i32) {
    %c0_i32 = arith.constant 0 : i32
    %c0_i32_0 = arith.constant 0 : i32
    %c0_i32_1 = arith.constant 0 : i32
    return %arg0, %c0_i32, %c0_i32_0 : i32, i32, i32
  }
  func.func @transform_1(%arg0: i32, %arg1: i32) -> (i32, i32, i32) {
    %c0_i32 = arith.constant 0 : i32
    %c0_i32_0 = arith.constant 0 : i32
    %c0_i32_1 = arith.constant 0 : i32
    return %arg1, %c0_i32, %c0_i32_0 : i32, i32, i32
  }
  func.func @transform_2(%arg0: i32, %arg1: i32) -> (i32, i32, i32) {
    %c0_i32 = arith.constant 0 : i32
    %c0_i32_0 = arith.constant 0 : i32
    %c0_i32_1 = arith.constant 0 : i32
    return %arg1, %c0_i32, %c0_i32_0 : i32, i32, i32
  }
  func.func @transform_3(%arg0: i32, %arg1: i32) -> (i32, i32, i32) {
    %c0_i32 = arith.constant 0 : i32
    %c0_i32_0 = arith.constant 0 : i32
    %c0_i32_1 = arith.constant 0 : i32
    return %arg1, %c0_i32, %c0_i32_0 : i32, i32, i32
  }
  func.func @transform_4(%arg0: i32, %arg1: i32) -> (i32, i32, i32) {
    %c0_i32 = arith.constant 0 : i32
    %c0_i32_0 = arith.constant 0 : i32
    %c0_i32_1 = arith.constant 0 : i32
    return %arg1, %c0_i32, %c0_i32_0 : i32, i32, i32
  }
  func.func @transform_5(%arg0: i32, %arg1: i32) -> (i32, i32, i32) {
    %c0_i32 = arith.constant 0 : i32
    %c0_i32_0 = arith.constant 0 : i32
    %c0_i32_1 = arith.constant 0 : i32
    return %arg0, %c0_i32, %c0_i32_0 : i32, i32, i32
  }
}

</mosaic_0001>

<llo_original>
// kernel: _lambda_.1
$region0: #{_lambda_.1}
  #allocation0 [shape = 'u32[]', space=smem, size = 0x4, offset = 0x4, fixed_abs, tag = 'smem constant byte address 0x4 - core index']
  #allocation1 [shape = 'u32[72,128]{1,0:T(1,128)}', space=vmem, size = 0x9000, scoped, tag = 'internal scratch']
  #allocation2 [shape = 'f32[32,32]{1,0:T(8,128)}', space=vmem, size = 0x4000, scoped, tag = 'scratch operand']
  %s0 = inlined_call_operand.vmem [shape: f32[2,16,32], index: 0, kind: input, shape index: {}]
  %s1 = inlined_call_operand.vmem [shape: bf16[3,32,96], index: 1, kind: input, shape index: {}]
  %s2 = inlined_call_operand.vmem [shape: f32[3,1,96], index: 2, kind: input, shape index: {}]
  %s3 = inlined_call_operand.vmem [shape: bf16[3,32,32], index: 3, kind: input, shape index: {}]
  %s4 = inlined_call_operand.vmem [shape: f32[3,1,32], index: 4, kind: input, shape index: {}]
  %s5 = inlined_call_operand.hbm [shape: f32[2,32,32], index: 5, kind: output, shape index: {}]
  %s6 = sld [smem:[#allocation0]]
  $region69: #{_lambda_.1} parent=0
    _
  %s8 = ssub.s32 1, %s6
  %s9 = scalar_select 0, %s8, %s6
  $region1: #{_lambda_.1} parent=0
    #allocation3 [shape = 'u8[32768]{0}', space=vmem, size = 0x8000, scoped, tag = 'output window, operand 0']
    #allocation4 [shape = 's32[2]{0}', space=sflag, size = 0x8, scoped, tag = 'scoped memory for _lambda_.1']
    %10 = vsyncpa [#allocation4], 0
    %s11 = scalar_lea.sflag [#allocation4], 1
    %12 = vsyncpa %s11, 0
    loop: start=0, step=1, limit=8
    $region2: #{_lambda_.1} parent=1 // loop_pre_header
      _
    $region3: #{_lambda_.1} parent=1 // loop_header
      %s14 = sphi 0, %s18
      %p15 = scmp.ge.s32.totalorder %s14, 8
      %s21 = sphi 0, %s33
      %s22 = sphi 0, %s29
      %s23 = sphi 0, %s21
      %s24 = sphi 0, %s22
      %s25 = sphi 0, %s23
      %s26 = sphi 0, %s24
      %s36 = sphi 0, %s38
      %s39 = sphi 0, %s36
      %s40 = sphi 0, %s39
      %s56 = sphi 0, %s40
      %s62 = sphi 0, %s64
      %s65 = sphi 0, %s62
      %s66 = sphi 0, %s65
      %s82 = sphi 0, %s66
      %s88 = sphi 0, %s90
      %s91 = sphi 0, %s88
      %s92 = sphi 0, %s91
      %s108 = sphi 0, %s92
      %s114 = sphi 0, %s116
      %s117 = sphi 0, %s114
      %s118 = sphi 0, %s117
      %s134 = sphi 0, %s118
      %s140 = sphi 0, %s142
      %s143 = sphi 0, %s140
      %s144 = sphi 0, %s143
      %s160 = sphi 0, %s144
      %s166 = sphi 0, %s168
      %s169 = sphi 0, %s166
      %s170 = sphi 0, %s169
      %s186 = sphi 0, %s170
    $region4: #{_lambda_.1} parent=1 // loop_header_branch
      %17 = sbr.rel (%p15) target = $region8
    $region5: #{_lambda_.1} parent=1 // loop_body
      %s19 = ssub.s32 %s14, 1
      %s20 = ssub.s32 %s14, 2
      %s27 = sadd.s32 1, %s22
      %p28 = scmp.ge.s32.totalorder %s27, 3
      %s29 = scalar_select %p28, 0, %s27
      %s30 = sadd.s32 1, %s21
      %s31 = scalar_select %p28, %s30, %s21
      %p32 = scmp.ge.s32.totalorder %s31, 2
      %s33 = scalar_select %p32, 0, %s31
      %s34 = ssub.s32 %s21, %s33
      %p35 = scmp.eq.s32.totalorder %s34, 0
      %s37 = sadd.s32 %s36, 1
      %s38 = scalar_select %p35, %s36, %s37
      %p41 = pneg %p35
      %p42 = scmp.eq.s32.totalorder %s14, 5
      %p43 = por %p41, %p42
      %p44 = scmp.ne.s32.totalorder %s36, %s39
      %p45 = scmp.eq.s32.totalorder %s14, 0
      %p46 = por %p44, %p45
      %p47 = scmp.ne.s32.totalorder %s36, %s39
      %p48 = scmp.eq.s32.totalorder %s19, 5
      %p49 = por %p47, %p48
      %p50 = scmp.ne.s32.totalorder %s39, %s40
      %p51 = scmp.eq.s32.totalorder %s19, 0
      %p52 = por %p50, %p51
      %p53 = scmp.ne.s32.totalorder %s39, %s40
      %p54 = scmp.eq.s32.totalorder %s20, 5
      %p55 = por %p53, %p54
      %p57 = scmp.ne.s32.totalorder %s40, %s56
      %p58 = scmp.eq.s32.totalorder %s20, 0
      %p59 = por %p57, %p58
      %s60 = ssub.s32 %s22, %s29
      %p61 = scmp.eq.s32.totalorder %s60, 0
      %s63 = sadd.s32 %s62, 1
      %s64 = scalar_select %p61, %s62, %s63
      %p67 = pneg %p61
      %p68 = scmp.eq.s32.totalorder %s14, 5
      %p69 = por %p67, %p68
      %p70 = scmp.ne.s32.totalorder %s62, %s65
      %p71 = scmp.eq.s32.totalorder %s14, 0
      %p72 = por %p70, %p71
      %p73 = scmp.ne.s32.totalorder %s62, %s65
      %p74 = scmp.eq.s32.totalorder %s19, 5
      %p75 = por %p73, %p74
      %p76 = scmp.ne.s32.totalorder %s65, %s66
      %p77 = scmp.eq.s32.totalorder %s19, 0
      %p78 = por %p76, %p77
      %p79 = scmp.ne.s32.totalorder %s65, %s66
      %p80 = scmp.eq.s32.totalorder %s20, 5
      %p81 = por %p79, %p80
      %p83 = scmp.ne.s32.totalorder %s66, %s82
      %p84 = scmp.eq.s32.totalorder %s20, 0
      %p85 = por %p83, %p84
      %s86 = ssub.s32 %s22, %s29
      %p87 = scmp.eq.s32.totalorder %s86, 0
      %s89 = sadd.s32 %s88, 1
      %s90 = scalar_select %p87, %s88, %s89
      %p93 = pneg %p87
      %p94 = scmp.eq.s32.totalorder %s14, 5
      %p95 = por %p93, %p94
      %p96 = scmp.ne.s32.totalorder %s88, %s91
      %p97 = scmp.eq.s32.totalorder %s14, 0
      %p98 = por %p96, %p97
      %p99 = scmp.ne.s32.totalorder %s88, %s91
      %p100 = scmp.eq.s32.totalorder %s19, 5
      %p101 = por %p99, %p100
      %p102 = scmp.ne.s32.totalorder %s91, %s92
      %p103 = scmp.eq.s32.totalorder %s19, 0
      %p104 = por %p102, %p103
      %p105 = scmp.ne.s32.totalorder %s91, %s92
      %p106 = scmp.eq.s32.totalorder %s20, 5
      %p107 = por %p105, %p106
      %p109 = scmp.ne.s32.totalorder %s92, %s108
      %p110 = scmp.eq.s32.totalorder %s20, 0
      %p111 = por %p109, %p110
      %s112 = ssub.s32 %s22, %s29
      %p113 = scmp.eq.s32.totalorder %s112, 0
      %s115 = sadd.s32 %s114, 1
      %s116 = scalar_select %p113, %s114, %s115
      %p119 = pneg %p113
      %p120 = scmp.eq.s32.totalorder %s14, 5
      %p121 = por %p119, %p120
      %p122 = scmp.ne.s32.totalorder %s114, %s117
      %p123 = scmp.eq.s32.totalorder %s14, 0
      %p124 = por %p122, %p123
      %p125 = scmp.ne.s32.totalorder %s114, %s117
      %p126 = scmp.eq.s32.totalorder %s19, 5
      %p127 = por %p125, %p126
      %p128 = scmp.ne.s32.totalorder %s117, %s118
      %p129 = scmp.eq.s32.totalorder %s19, 0
      %p130 = por %p128, %p129
      %p131 = scmp.ne.s32.totalorder %s117, %s118
      %p132 = scmp.eq.s32.totalorder %s20, 5
      %p133 = por %p131, %p132
      %p135 = scmp.ne.s32.totalorder %s118, %s134
      %p136 = scmp.eq.s32.totalorder %s20, 0
      %p137 = por %p135, %p136
      %s138 = ssub.s32 %s22, %s29
      %p139 = scmp.eq.s32.totalorder %s138, 0
      %s141 = sadd.s32 %s140, 1
      %s142 = scalar_select %p139, %s140, %s141
      %p145 = pneg %p139
      %p146 = scmp.eq.s32.totalorder %s14, 5
      %p147 = por %p145, %p146
      %p148 = scmp.ne.s32.totalorder %s140, %s143
      %p149 = scmp.eq.s32.totalorder %s14, 0
      %p150 = por %p148, %p149
      %p151 = scmp.ne.s32.totalorder %s140, %s143
      %p152 = scmp.eq.s32.totalorder %s19, 5
      %p153 = por %p151, %p152
      %p154 = scmp.ne.s32.totalorder %s143, %s144
      %p155 = scmp.eq.s32.totalorder %s19, 0
      %p156 = por %p154, %p155
      %p157 = scmp.ne.s32.totalorder %s143, %s144
      %p158 = scmp.eq.s32.totalorder %s20, 5
      %p159 = por %p157, %p158
      %p161 = scmp.ne.s32.totalorder %s144, %s160
      %p162 = scmp.eq.s32.totalorder %s20, 0
      %p163 = por %p161, %p162
      %s164 = ssub.s32 %s21, %s33
      %p165 = scmp.eq.s32.totalorder %s164, 0
      %s167 = sadd.s32 %s166, 1
      %s168 = scalar_select %p165, %s166, %s167
      %p171 = pneg %p165
      %p172 = scmp.eq.s32.totalorder %s14, 5
      %p173 = por %p171, %p172
      %p174 = scmp.ne.s32.totalorder %s166, %s169
      %p175 = scmp.eq.s32.totalorder %s14, 0
      %p176 = por %p174, %p175
      %p177 = scmp.ne.s32.totalorder %s166, %s169
      %p178 = scmp.eq.s32.totalorder %s19, 5
      %p179 = por %p177, %p178
      %p180 = scmp.ne.s32.totalorder %s169, %s170
      %p181 = scmp.eq.s32.totalorder %s19, 0
      %p182 = por %p180, %p181
      %p183 = scmp.ne.s32.totalorder %s169, %s170
      %p184 = scmp.eq.s32.totalorder %s20, 5
      %p185 = por %p183, %p184
      %p187 = scmp.ne.s32.totalorder %s170, %s186
      %p188 = scmp.eq.s32.totalorder %s20, 0
      %p189 = por %p187, %p188
      %p190 = scmp.le.s32.totalorder 1, %s14
      %p191 = scmp.lt.s32.totalorder %s14, 7
      %p192 = pnand %p190, %p191
      %p193 = pneg %p192
      // Predicated region
      $region9: #{_lambda_.1} parent=5 // pred_check
        _
      $region10: #{_lambda_.1} parent=5 // pred_check_branch
        %195 = sbr.rel (%p192) target = $region12
      $region11: #{_lambda_.1} parent=5 // pred_region
        %s196 = ssub.s32 %s14, 1
      $region12: #{_lambda_.1} parent=5 // pred_fallthru
        _
      %p197 = scmp.lt.s32.totalorder %s14, 6
      // Predicated region
      $region13: #{_lambda_.1} parent=5 // pred_check
        %p198 = pneg %p197
      $region14: #{_lambda_.1} parent=5 // pred_check_branch
        %200 = sbr.rel (%p198) target = $region16
      $region15: #{_lambda_.1} parent=5 // pred_region
        // Predicated region
        $region17: #{_lambda_.1} parent=15 // pred_check
          %p201 = pneg %p46
        $region18: #{_lambda_.1} parent=15 // pred_check_branch
          %203 = sbr.rel (%p201) target = $region20
        $region19: #{_lambda_.1} parent=15 // pred_region
          %p204 = scmp.lt.s32.totalorder %s21, 1
          %s205 = scalar_select %p204, %s21, 1
          %s206 = smul.addr %s205, 2
          %s207 = smul.addr %s206, 8
          %s208 = scalar_lea.vmem %s0, %s207
        $region20: #{_lambda_.1} parent=15 // pred_fallthru
          _
        // Predicated region
        $region21: #{_lambda_.1} parent=15 // pred_check
          %p209 = pneg %p72
        $region22: #{_lambda_.1} parent=15 // pred_check_branch
          %211 = sbr.rel (%p209) target = $region24
        $region23: #{_lambda_.1} parent=15 // pred_region
          %p212 = scmp.lt.s32.totalorder %s22, 2
          %s213 = scalar_select %p212, %s22, 2
          %s214 = smul.addr %s213, 4
          %s215 = smul.addr %s214, 4
          %s216 = scalar_lea.vmem %s1, %s215
        $region24: #{_lambda_.1} parent=15 // pred_fallthru
          _
        // Predicated region
        $region25: #{_lambda_.1} parent=15 // pred_check
          %p217 = pneg %p98
        $region26: #{_lambda_.1} parent=15 // pred_check_branch
          %219 = sbr.rel (%p217) target = $region28
        $region27: #{_lambda_.1} parent=15 // pred_region
          %p220 = scmp.lt.s32.totalorder %s22, 2
          %s221 = scalar_select %p220, %s22, 2
          %s222 = scalar_lea.vmem %s2, %s221
        $region28: #{_lambda_.1} parent=15 // pred_fallthru
          _
        // Predicated region
        $region29: #{_lambda_.1} parent=15 // pred_check
          %p223 = pneg %p124
        $region30: #{_lambda_.1} parent=15 // pred_check_branch
          %225 = sbr.rel (%p223) target = $region32
        $region31: #{_lambda_.1} parent=15 // pred_region
          %p226 = scmp.lt.s32.totalorder %s22, 2
          %s227 = scalar_select %p226, %s22, 2
          %s228 = smul.addr %s227, 4
          %s229 = smul.addr %s228, 4
          %s230 = scalar_lea.vmem %s3, %s229
        $region32: #{_lambda_.1} parent=15 // pred_fallthru
          _
        // Predicated region
        $region33: #{_lambda_.1} parent=15 // pred_check
          %p231 = pneg %p150
        $region34: #{_lambda_.1} parent=15 // pred_check_branch
          %233 = sbr.rel (%p231) target = $region36
        $region35: #{_lambda_.1} parent=15 // pred_region
          %p234 = scmp.lt.s32.totalorder %s22, 2
          %s235 = scalar_select %p234, %s22, 2
          %s236 = scalar_lea.vmem %s4, %s235
        $region36: #{_lambda_.1} parent=15 // pred_fallthru
          _
      $region16: #{_lambda_.1} parent=5 // pred_fallthru
        _
      %p237 = scmp.le.s32.totalorder 1, %s14
      %p238 = scmp.lt.s32.totalorder %s14, 7
      %p239 = pnand %p237, %p238
      %p240 = pneg %p239
      // Predicated region
      $region37: #{_lambda_.1} parent=5 // pred_check
        _
      $region38: #{_lambda_.1} parent=5 // pred_check_branch
        %242 = sbr.rel (%p239) target = $region40
      $region39: #{_lambda_.1} parent=5 // pred_region
        %s243 = ssub.s32 %s14, 1
        %p244 = scmp.lt.s32.totalorder %s23, 1
        %s245 = scalar_select %p244, %s23, 1
        %s246 = smul.addr %s245, 2
        %s247 = smul.addr %s246, 8
        %s248 = scalar_lea.vmem %s0, %s247
        %p249 = pneg %p52
        %p250 = pneg %p49
        %p251 = scmp.lt.s32.totalorder %s24, 2
        %s252 = scalar_select %p251, %s24, 2
        %s253 = smul.addr %s252, 4
        %s254 = smul.addr %s253, 4
        %s255 = scalar_lea.vmem %s1, %s254
        %p256 = pneg %p78
        %p257 = pneg %p75
        %p258 = scmp.lt.s32.totalorder %s24, 2
        %s259 = scalar_select %p258, %s24, 2
        %s260 = scalar_lea.vmem %s2, %s259
        %p261 = pneg %p104
        %p262 = pneg %p101
        %p263 = scmp.lt.s32.totalorder %s24, 2
        %s264 = scalar_select %p263, %s24, 2
        %s265 = smul.addr %s264, 4
        %s266 = smul.addr %s265, 4
        %s267 = scalar_lea.vmem %s3, %s266
        %p268 = pneg %p130
        %p269 = pneg %p127
        %p270 = scmp.lt.s32.totalorder %s24, 2
        %s271 = scalar_select %p270, %s24, 2
        %s272 = scalar_lea.vmem %s4, %s271
        %p273 = pneg %p156
        %p274 = pneg %p153
        %p275 = pneg %p182
        %p276 = pneg %p179
        %s277 = sand.u32 %s169, 1
        %s278 = scalar_lea.sflag [#allocation4], %s277
        %s279 = sand.u32 %s169, 1
        %s280 = smul.addr %s279, 32
        %s281 = scalar_lea.vmem [#allocation3], %s280
        %p282 = scmp.lt.s32.totalorder %s23, 1
        %s283 = scalar_select %p282, %s23, 1
        %s284 = smul.addr %s283, 2
        %s285 = smul.addr %s284, 8
        %s286 = scalar_lea.vmem %s0, %s285
        %p287 = scmp.lt.s32.totalorder %s24, 2
        %s288 = scalar_select %p287, %s24, 2
        %s289 = smul.addr %s288, 4
        %s290 = smul.addr %s289, 4
        %s291 = scalar_lea.vmem %s1, %s290
        %p292 = scmp.lt.s32.totalorder %s24, 2
        %s293 = scalar_select %p292, %s24, 2
        %s294 = scalar_lea.vmem %s2, %s293
        %p295 = scmp.lt.s32.totalorder %s24, 2
        %s296 = scalar_select %p295, %s24, 2
        %s297 = smul.addr %s296, 4
        %s298 = smul.addr %s297, 4
        %s299 = scalar_lea.vmem %s3, %s298
        %p300 = scmp.lt.s32.totalorder %s24, 2
        %s301 = scalar_select %p300, %s24, 2
        %s302 = scalar_lea.vmem %s4, %s301
        %p304 = scmp.eq.s32.totalorder %s24, 0
        // Predicated region
        $region41: #{_lambda_.1} parent=39 // pred_check
          %p305 = pneg %p304
        $region42: #{_lambda_.1} parent=39 // pred_check_branch
          %307 = sbr.rel (%p305) target = $region44
        $region43: #{_lambda_.1} parent=39 // pred_region
          %vm308 = vcmask 261120
          %309 = vst.msk [vmem:[#allocation2] sm:$0xff] %vm308, 0.0
          %310 = vst.msk [vmem:[#allocation2 + $0x8] sm:$0xff] %vm308, 0.0
          %311 = vst.msk [vmem:[#allocation2 + $0x10] sm:$0xff] %vm308, 0.0
          %312 = vst.msk [vmem:[#allocation2 + $0x18] sm:$0xff] %vm308, 0.0
        $region44: #{_lambda_.1} parent=39 // pred_fallthru
          _
        %v313 = vld [vmem:[%s286] sm:$0xff]
        %v314 = vld [vmem:[%s286 + $0x8] sm:$0xff]
        // Predicated region
        $region45: #{_lambda_.1} parent=39 // pred_check
          %p315 = pneg %p304
        $region46: #{_lambda_.1} parent=39 // pred_check_branch
          %317 = sbr.rel (%p315) target = $region48
        $region47: #{_lambda_.1} parent=39 // pred_region
          %v318 = vld [vmem:[%s291] sm:$0xf]
          %v319 = vld [vmem:[%s291 + $0x4] sm:$0xf]
          %v320 = vld [vmem:[%s291 + $0x8] sm:$0xf]
          %v321 = vld [vmem:[%s291 + $0xc] sm:$0xf]
          %v322 = vpack.c.bf16 %v314, %v313
          %v323 = vld [vmem:[%s294] sm:$0x1]
          %v325 = vperm.slane %v323, 0
          %v331 = vunpack.c.l.b16 %v318
          %v332 = vunpack.c.l.b16 %v319
          %v333 = vunpack.c.l.b16 %v320
          %v334 = vunpack.c.l.b16 %v321
          %v335 = vpack.c.b16 %v332, %v331
          %v336 = vpack.c.b16 %v334, %v333
          %vm339 = vcmask 261120
          %v341 = vsel %vm339, %v322, 0
          %343 = vmatpush.bf16.msra.mxu0 0
          %344 = vmatpush.bf16.msra.mxu0 0
          %345 = vmatpush.bf16.msra.mxu0 0
          %346 = vmatpush.bf16.msra.mxu0 0
          %347 = vmatpush.bf16.msra.mxu0 0
          %348 = vmatpush.bf16.msra.mxu0 0
          %349 = vmatpush.bf16.msra.mxu0 %v336
          %350 = vmatpush.bf16.msra.mxu0 %v335
          %351 = vmatmul.bf16.gmra.mxu0 %v341
          %v352 = vpop.f32.mrf.mxu0
          %v353 = vadd.f32 %v325, %v352
          %v354 = vpop.f32.mrf.mxu0
          %v355 = vadd.f32 %v325, %v354
          %356 = vdwg.mxu0
          %v357 = vpack.c.bf16 %v355, %v353
          %359 = vrot.lane.b32.xlu0 %v357, 96
          %v360 = vpop.permute.xlu0 %359
          %vm361 = vcmask 31744
          %v363 = vsel %vm361, %v357, 0
          %v366 = vsel %vm361, %v360, 0
          %368 = vmatpush.bf16.xpose.msra.mxu0 0
          %369 = vmatpush.bf16.xpose.msra.mxu0 0
          %370 = vmatpush.bf16.xpose.msra.mxu0 0
          %371 = vmatpush.bf16.xpose.msra.mxu0 0
          %372 = vmatpush.bf16.xpose.msra.mxu0 0
          %373 = vmatpush.bf16.xpose.msra.mxu0 0
          %374 = vmatpush.bf16.xpose.msra.mxu0 0
          %375 = vmatpush.bf16.xpose.msra.mxu0 %v366
          %376 = vmatmul.bf16.gmra.mxu0 %v363
          %v377 = vpop.f32.mrf.mxu0
          %v378 = vadd.f32 0.0, %v377
          %v379 = vpop.f32.mrf.mxu0
          %v380 = vadd.f32 0.0, %v379
          %381 = vdwg.mxu0
          %v382 = vmul.f32 %v378, 0.5
          %v383 = vmul.f32 %v380, 0.5
          %vm384 = vcmask 130048
          %v385 = vsel %vm384, %v382, -inf
          %386 = vmax.xlane.f32.xlu0 %v385
          %v387 = vpop.xlane.xlu0 %386
          %v388 = vsel %vm384, %v383, -inf
          %389 = vmax.xlane.f32.xlu0 %v388
          %v390 = vpop.xlane.xlu0 %389
          %v391 = vsub.f32 %v382, %v387
          %v392 = vsub.f32 %v383, %v390
          %v393 = vmul.f32 %v391, 1.442695
          %v394 = vpow.pop %v393
          %v395 = vmul.f32 %v392, 1.442695
          %v396 = vpow.pop %v395
          %v397 = vsel %vm384, %v394, 0.0
          %398 = vadd.xlane.f32.xlu0 %v397
          %v399 = vpop.xlane.xlu0 %398
          %v400 = vsel %vm384, %v396, 0.0
          %401 = vadd.xlane.f32.xlu0 %v400
          %v402 = vpop.xlane.xlu0 %401
          %v403 = vrcp.pop %v399
          %v404 = vrcp.pop %v402
          %v405 = vmul.f32 %v394, %v403
          %v406 = vmul.f32 %v396, %v404
          %v407 = vpack.c.bf16 %v406, %v405
          %408 = vrot.lane.b32.xlu0 %v357, 64
          %v409 = vpop.permute.xlu0 %408
          %v412 = vsel %vm384, %v407, 0
          %414 = vmatpush.bf16.msra.mxu0 0
          %415 = vmatpush.bf16.msra.mxu0 0
          %416 = vmatpush.bf16.msra.mxu0 0
          %417 = vmatpush.bf16.msra.mxu0 0
          %418 = vmatpush.bf16.msra.mxu0 0
          %419 = vmatpush.bf16.msra.mxu0 0
          %420 = vmatpush.bf16.msra.mxu0 0
          %421 = vmatpush.bf16.msra.mxu0 %v409
          %422 = vmatmul.bf16.gmra.mxu0 %v412
          %v423 = vpop.f32.mrf.mxu0
          %v424 = vadd.f32 0.0, %v423
          %v425 = vpop.f32.mrf.mxu0
          %v426 = vadd.f32 0.0, %v425
          %427 = vdwg.mxu0
          %428 = vrot.lane.b32.xlu0 %v357, 124
          %v429 = vpop.permute.xlu0 %428
          %430 = vrot.lane.b32.xlu0 %v357, 92
          %v431 = vpop.permute.xlu0 %430
          %v433 = vsel %vm361, %v429, 0
          %v436 = vsel %vm361, %v431, 0
          %438 = vmatpush.bf16.xpose.msra.mxu0 0
          %439 = vmatpush.bf16.xpose.msra.mxu0 0
          %440 = vmatpush.bf16.xpose.msra.mxu0 0
          %441 = vmatpush.bf16.xpose.msra.mxu0 0
          %442 = vmatpush.bf16.xpose.msra.mxu0 0
          %443 = vmatpush.bf16.xpose.msra.mxu0 0
          %444 = vmatpush.bf16.xpose.msra.mxu0 0
          %445 = vmatpush.bf16.xpose.msra.mxu0 %v436
          %446 = vmatmul.bf16.gmra.mxu0 %v433
          %v447 = vpop.f32.mrf.mxu0
          %v448 = vadd.f32 0.0, %v447
          %v449 = vpop.f32.mrf.mxu0
          %v450 = vadd.f32 0.0, %v449
          %451 = vdwg.mxu0
          %v452 = vmul.f32 %v448, 0.5
          %v453 = vmul.f32 %v450, 0.5
          %v454 = vsel %vm384, %v452, -inf
          %455 = vmax.xlane.f32.xlu0 %v454
          %v456 = vpop.xlane.xlu0 %455
          %v457 = vsel %vm384, %v453, -inf
          %458 = vmax.xlane.f32.xlu0 %v457
          %v459 = vpop.xlane.xlu0 %458
          %v460 = vsub.f32 %v452, %v456
          %v461 = vsub.f32 %v453, %v459
          %v462 = vmul.f32 %v460, 1.442695
          %v463 = vpow.pop %v462
          %v464 = vmul.f32 %v461, 1.442695
          %v465 = vpow.pop %v464
          %v466 = vsel %vm384, %v463, 0.0
          %467 = vadd.xlane.f32.xlu0 %v466
          %v468 = vpop.xlane.xlu0 %467
          %v469 = vsel %vm384, %v465, 0.0
          %470 = vadd.xlane.f32.xlu0 %v469
          %v471 = vpop.xlane.xlu0 %470
          %v472 = vrcp.pop %v468
          %v473 = vrcp.pop %v471
          %v474 = vmul.f32 %v463, %v472
          %v475 = vmul.f32 %v465, %v473
          %v476 = vpack.c.bf16 %v475, %v474
          %477 = vrot.lane.b32.xlu0 %v357, 60
          %v478 = vpop.permute.xlu0 %477
          %v481 = vsel %vm384, %v476, 0
          %483 = vmatpush.bf16.msra.mxu0 0
          %484 = vmatpush.bf16.msra.mxu0 0
          %485 = vmatpush.bf16.msra.mxu0 0
          %486 = vmatpush.bf16.msra.mxu0 0
          %487 = vmatpush.bf16.msra.mxu0 0
          %488 = vmatpush.bf16.msra.mxu0 0
          %489 = vmatpush.bf16.msra.mxu0 0
          %490 = vmatpush.bf16.msra.mxu0 %v478
          %491 = vmatmul.bf16.gmra.mxu0 %v481
          %v492 = vpop.f32.mrf.mxu0
          %v493 = vadd.f32 0.0, %v492
          %v494 = vpop.f32.mrf.mxu0
          %v495 = vadd.f32 0.0, %v494
          %496 = vdwg.mxu0
          %497 = vrot.lane.b32.xlu0 %v357, 120
          %v498 = vpop.permute.xlu0 %497
          %499 = vrot.lane.b32.xlu0 %v357, 88
          %v500 = vpop.permute.xlu0 %499
          %v502 = vsel %vm361, %v498, 0
          %v505 = vsel %vm361, %v500, 0
          %507 = vmatpush.bf16.xpose.msra.mxu0 0
          %508 = vmatpush.bf16.xpose.msra.mxu0 0
          %509 = vmatpush.bf16.xpose.msra.mxu0 0
          %510 = vmatpush.bf16.xpose.msra.mxu0 0
          %511 = vmatpush.bf16.xpose.msra.mxu0 0
          %512 = vmatpush.bf16.xpose.msra.mxu0 0
          %513 = vmatpush.bf16.xpose.msra.mxu0 0
          %514 = vmatpush.bf16.xpose.msra.mxu0 %v505
          %515 = vmatmul.bf16.gmra.mxu0 %v502
          %v516 = vpop.f32.mrf.mxu0
          %v517 = vadd.f32 0.0, %v516
          %v518 = vpop.f32.mrf.mxu0
          %v519 = vadd.f32 0.0, %v518
          %520 = vdwg.mxu0
          %v521 = vmul.f32 %v517, 0.5
          %v522 = vmul.f32 %v519, 0.5
          %v523 = vsel %vm384, %v521, -inf
          %524 = vmax.xlane.f32.xlu0 %v523
          %v525 = vpop.xlane.xlu0 %524
          %v526 = vsel %vm384, %v522, -inf
          %527 = vmax.xlane.f32.xlu0 %v526
          %v528 = vpop.xlane.xlu0 %527
          %v529 = vsub.f32 %v521, %v525
          %v530 = vsub.f32 %v522, %v528
          %v531 = vmul.f32 %v529, 1.442695
          %v532 = vpow.pop %v531
          %v533 = vmul.f32 %v530, 1.442695
          %v534 = vpow.pop %v533
          %v535 = vsel %vm384, %v532, 0.0
          %536 = vadd.xlane.f32.xlu0 %v535
          %v537 = vpop.xlane.xlu0 %536
          %v538 = vsel %vm384, %v534, 0.0
          %539 = vadd.xlane.f32.xlu0 %v538
          %v540 = vpop.xlane.xlu0 %539
          %v541 = vrcp.pop %v537
          %v542 = vrcp.pop %v540
          %v543 = vmul.f32 %v532, %v541
          %v544 = vmul.f32 %v534, %v542
          %v545 = vpack.c.bf16 %v544, %v543
          %546 = vrot.lane.b32.xlu0 %v357, 56
          %v547 = vpop.permute.xlu0 %546
          %v550 = vsel %vm384, %v545, 0
          %552 = vmatpush.bf16.msra.mxu0 0
          %553 = vmatpush.bf16.msra.mxu0 0
          %554 = vmatpush.bf16.msra.mxu0 0
          %555 = vmatpush.bf16.msra.mxu0 0
          %556 = vmatpush.bf16.msra.mxu0 0
          %557 = vmatpush.bf16.msra.mxu0 0
          %558 = vmatpush.bf16.msra.mxu0 0
          %559 = vmatpush.bf16.msra.mxu0 %v547
          %560 = vmatmul.bf16.gmra.mxu0 %v550
          %v561 = vpop.f32.mrf.mxu0
          %v562 = vadd.f32 0.0, %v561
          %v563 = vpop.f32.mrf.mxu0
          %v564 = vadd.f32 0.0, %v563
          %565 = vdwg.mxu0
          %566 = vrot.lane.b32.xlu0 %v357, 116
          %v567 = vpop.permute.xlu0 %566
          %568 = vrot.lane.b32.xlu0 %v357, 84
          %v569 = vpop.permute.xlu0 %568
          %v571 = vsel %vm361, %v567, 0
          %v574 = vsel %vm361, %v569, 0
          %576 = vmatpush.bf16.xpose.msra.mxu0 0
          %577 = vmatpush.bf16.xpose.msra.mxu0 0
          %578 = vmatpush.bf16.xpose.msra.mxu0 0
          %579 = vmatpush.bf16.xpose.msra.mxu0 0
          %580 = vmatpush.bf16.xpose.msra.mxu0 0
          %581 = vmatpush.bf16.xpose.msra.mxu0 0
          %582 = vmatpush.bf16.xpose.msra.mxu0 0
          %583 = vmatpush.bf16.xpose.msra.mxu0 %v574
          %584 = vmatmul.bf16.gmra.mxu0 %v571
          %v585 = vpop.f32.mrf.mxu0
          %v586 = vadd.f32 0.0, %v585
          %v587 = vpop.f32.mrf.mxu0
          %v588 = vadd.f32 0.0, %v587
          %589 = vdwg.mxu0
          %v590 = vmul.f32 %v586, 0.5
          %v591 = vmul.f32 %v588, 0.5
          %v592 = vsel %vm384, %v590, -inf
          %593 = vmax.xlane.f32.xlu0 %v592
          %v594 = vpop.xlane.xlu0 %593
          %v595 = vsel %vm384, %v591, -inf
          %596 = vmax.xlane.f32.xlu0 %v595
          %v597 = vpop.xlane.xlu0 %596
          %v598 = vsub.f32 %v590, %v594
          %v599 = vsub.f32 %v591, %v597
          %v600 = vmul.f32 %v598, 1.442695
          %v601 = vpow.pop %v600
          %v602 = vmul.f32 %v599, 1.442695
          %v603 = vpow.pop %v602
          %v604 = vsel %vm384, %v601, 0.0
          %605 = vadd.xlane.f32.xlu0 %v604
          %v606 = vpop.xlane.xlu0 %605
          %v607 = vsel %vm384, %v603, 0.0
          %608 = vadd.xlane.f32.xlu0 %v607
          %v609 = vpop.xlane.xlu0 %608
          %v610 = vrcp.pop %v606
          %v611 = vrcp.pop %v609
          %v612 = vmul.f32 %v601, %v610
          %v613 = vmul.f32 %v603, %v611
          %v614 = vpack.c.bf16 %v613, %v612
          %615 = vrot.lane.b32.xlu0 %v357, 52
          %v616 = vpop.permute.xlu0 %615
          %v619 = vsel %vm384, %v614, 0
          %621 = vmatpush.bf16.msra.mxu0 0
          %622 = vmatpush.bf16.msra.mxu0 0
          %623 = vmatpush.bf16.msra.mxu0 0
          %624 = vmatpush.bf16.msra.mxu0 0
          %625 = vmatpush.bf16.msra.mxu0 0
          %626 = vmatpush.bf16.msra.mxu0 0
          %627 = vmatpush.bf16.msra.mxu0 0
          %628 = vmatpush.bf16.msra.mxu0 %v616
          %629 = vmatmul.bf16.gmra.mxu0 %v619
          %v630 = vpop.f32.mrf.mxu0
          %v631 = vadd.f32 0.0, %v630
          %v632 = vpop.f32.mrf.mxu0
          %v633 = vadd.f32 0.0, %v632
          %634 = vdwg.mxu0
          %635 = vrot.lane.b32.xlu0 %v357, 112
          %v636 = vpop.permute.xlu0 %635
          %637 = vrot.lane.b32.xlu0 %v357, 80
          %v638 = vpop.permute.xlu0 %637
          %v640 = vsel %vm361, %v636, 0
          %v643 = vsel %vm361, %v638, 0
          %645 = vmatpush.bf16.xpose.msra.mxu0 0
          %646 = vmatpush.bf16.xpose.msra.mxu0 0
          %647 = vmatpush.bf16.xpose.msra.mxu0 0
          %648 = vmatpush.bf16.xpose.msra.mxu0 0
          %649 = vmatpush.bf16.xpose.msra.mxu0 0
          %650 = vmatpush.bf16.xpose.msra.mxu0 0
          %651 = vmatpush.bf16.xpose.msra.mxu0 0
          %652 = vmatpush.bf16.xpose.msra.mxu0 %v643
          %653 = vmatmul.bf16.gmra.mxu0 %v640
          %v654 = vpop.f32.mrf.mxu0
          %v655 = vadd.f32 0.0, %v654
          %v656 = vpop.f32.mrf.mxu0
          %v657 = vadd.f32 0.0, %v656
          %658 = vdwg.mxu0
          %v659 = vmul.f32 %v655, 0.5
          %v660 = vmul.f32 %v657, 0.5
          %v661 = vsel %vm384, %v659, -inf
          %662 = vmax.xlane.f32.xlu0 %v661
          %v663 = vpop.xlane.xlu0 %662
          %v664 = vsel %vm384, %v660, -inf
          %665 = vmax.xlane.f32.xlu0 %v664
          %v666 = vpop.xlane.xlu0 %665
          %v667 = vsub.f32 %v659, %v663
          %v668 = vsub.f32 %v660, %v666
          %v669 = vmul.f32 %v667, 1.442695
          %v670 = vpow.pop %v669
          %v671 = vmul.f32 %v668, 1.442695
          %v672 = vpow.pop %v671
          %v673 = vsel %vm384, %v670, 0.0
          %674 = vadd.xlane.f32.xlu0 %v673
          %v675 = vpop.xlane.xlu0 %674
          %v676 = vsel %vm384, %v672, 0.0
          %677 = vadd.xlane.f32.xlu0 %v676
          %v678 = vpop.xlane.xlu0 %677
          %v679 = vrcp.pop %v675
          %v680 = vrcp.pop %v678
          %v681 = vmul.f32 %v670, %v679
          %v682 = vmul.f32 %v672, %v680
          %v683 = vpack.c.bf16 %v682, %v681
          %684 = vrot.lane.b32.xlu0 %v357, 48
          %v685 = vpop.permute.xlu0 %684
          %v688 = vsel %vm384, %v683, 0
          %690 = vmatpush.bf16.msra.mxu0 0
          %691 = vmatpush.bf16.msra.mxu0 0
          %692 = vmatpush.bf16.msra.mxu0 0
          %693 = vmatpush.bf16.msra.mxu0 0
          %694 = vmatpush.bf16.msra.mxu0 0
          %695 = vmatpush.bf16.msra.mxu0 0
          %696 = vmatpush.bf16.msra.mxu0 0
          %697 = vmatpush.bf16.msra.mxu0 %v685
          %698 = vmatmul.bf16.gmra.mxu0 %v688
          %v699 = vpop.f32.mrf.mxu0
          %v700 = vadd.f32 0.0, %v699
          %v701 = vpop.f32.mrf.mxu0
          %v702 = vadd.f32 0.0, %v701
          %703 = vdwg.mxu0
          %704 = vrot.lane.b32.xlu0 %v357, 108
          %v705 = vpop.permute.xlu0 %704
          %706 = vrot.lane.b32.xlu0 %v357, 76
          %v707 = vpop.permute.xlu0 %706
          %v709 = vsel %vm361, %v705, 0
          %v712 = vsel %vm361, %v707, 0
          %714 = vmatpush.bf16.xpose.msra.mxu0 0
          %715 = vmatpush.bf16.xpose.msra.mxu0 0
          %716 = vmatpush.bf16.xpose.msra.mxu0 0
          %717 = vmatpush.bf16.xpose.msra.mxu0 0
          %718 = vmatpush.bf16.xpose.msra.mxu0 0
          %719 = vmatpush.bf16.xpose.msra.mxu0 0
          %720 = vmatpush.bf16.xpose.msra.mxu0 0
          %721 = vmatpush.bf16.xpose.msra.mxu0 %v712
          %722 = vmatmul.bf16.gmra.mxu0 %v709
          %v723 = vpop.f32.mrf.mxu0
          %v724 = vadd.f32 0.0, %v723
          %v725 = vpop.f32.mrf.mxu0
          %v726 = vadd.f32 0.0, %v725
          %727 = vdwg.mxu0
          %v728 = vmul.f32 %v724, 0.5
          %v729 = vmul.f32 %v726, 0.5
          %v730 = vsel %vm384, %v728, -inf
          %731 = vmax.xlane.f32.xlu0 %v730
          %v732 = vpop.xlane.xlu0 %731
          %v733 = vsel %vm384, %v729, -inf
          %734 = vmax.xlane.f32.xlu0 %v733
          %v735 = vpop.xlane.xlu0 %734
          %v736 = vsub.f32 %v728, %v732
          %v737 = vsub.f32 %v729, %v735
          %v738 = vmul.f32 %v736, 1.442695
          %v739 = vpow.pop %v738
          %v740 = vmul.f32 %v737, 1.442695
          %v741 = vpow.pop %v740
          %v742 = vsel %vm384, %v739, 0.0
          %743 = vadd.xlane.f32.xlu0 %v742
          %v744 = vpop.xlane.xlu0 %743
          %v745 = vsel %vm384, %v741, 0.0
          %746 = vadd.xlane.f32.xlu0 %v745
          %v747 = vpop.xlane.xlu0 %746
          %v748 = vrcp.pop %v744
          %v749 = vrcp.pop %v747
          %v750 = vmul.f32 %v739, %v748
          %v751 = vmul.f32 %v741, %v749
          %v752 = vpack.c.bf16 %v751, %v750
          %753 = vrot.lane.b32.xlu0 %v357, 44
          %v754 = vpop.permute.xlu0 %753
          %v757 = vsel %vm384, %v752, 0
          %759 = vmatpush.bf16.msra.mxu0 0
          %760 = vmatpush.bf16.msra.mxu0 0
          %761 = vmatpush.bf16.msra.mxu0 0
          %762 = vmatpush.bf16.msra.mxu0 0
          %763 = vmatpush.bf16.msra.mxu0 0
          %764 = vmatpush.bf16.msra.mxu0 0
          %765 = vmatpush.bf16.msra.mxu0 0
          %766 = vmatpush.bf16.msra.mxu0 %v754
          %767 = vmatmul.bf16.gmra.mxu0 %v757
          %v768 = vpop.f32.mrf.mxu0
          %v769 = vadd.f32 0.0, %v768
          %v770 = vpop.f32.mrf.mxu0
          %v771 = vadd.f32 0.0, %v770
          %772 = vdwg.mxu0
          %773 = vrot.lane.b32.xlu0 %v357, 104
          %v774 = vpop.permute.xlu0 %773
          %775 = vrot.lane.b32.xlu0 %v357, 72
          %v776 = vpop.permute.xlu0 %775
          %v778 = vsel %vm361, %v774, 0
          %v781 = vsel %vm361, %v776, 0
          %783 = vmatpush.bf16.xpose.msra.mxu0 0
          %784 = vmatpush.bf16.xpose.msra.mxu0 0
          %785 = vmatpush.bf16.xpose.msra.mxu0 0
          %786 = vmatpush.bf16.xpose.msra.mxu0 0
          %787 = vmatpush.bf16.xpose.msra.mxu0 0
          %788 = vmatpush.bf16.xpose.msra.mxu0 0
          %789 = vmatpush.bf16.xpose.msra.mxu0 0
          %790 = vmatpush.bf16.xpose.msra.mxu0 %v781
          %791 = vmatmul.bf16.gmra.mxu0 %v778
          %v792 = vpop.f32.mrf.mxu0
          %v793 = vadd.f32 0.0, %v792
          %v794 = vpop.f32.mrf.mxu0
          %v795 = vadd.f32 0.0, %v794
          %796 = vdwg.mxu0
          %v797 = vmul.f32 %v793, 0.5
          %v798 = vmul.f32 %v795, 0.5
          %v799 = vsel %vm384, %v797, -inf
          %800 = vmax.xlane.f32.xlu0 %v799
          %v801 = vpop.xlane.xlu0 %800
          %v802 = vsel %vm384, %v798, -inf
          %803 = vmax.xlane.f32.xlu0 %v802
          %v804 = vpop.xlane.xlu0 %803
          %v805 = vsub.f32 %v797, %v801
          %v806 = vsub.f32 %v798, %v804
          %v807 = vmul.f32 %v805, 1.442695
          %v808 = vpow.pop %v807
          %v809 = vmul.f32 %v806, 1.442695
          %v810 = vpow.pop %v809
          %v811 = vsel %vm384, %v808, 0.0
          %812 = vadd.xlane.f32.xlu0 %v811
          %v813 = vpop.xlane.xlu0 %812
          %v814 = vsel %vm384, %v810, 0.0
          %815 = vadd.xlane.f32.xlu0 %v814
          %v816 = vpop.xlane.xlu0 %815
          %v817 = vrcp.pop %v813
          %v818 = vrcp.pop %v816
          %v819 = vmul.f32 %v808, %v817
          %v820 = vmul.f32 %v810, %v818
          %v821 = vpack.c.bf16 %v820, %v819
          %822 = vrot.lane.b32.xlu0 %v357, 40
          %v823 = vpop.permute.xlu0 %822
          %v826 = vsel %vm384, %v821, 0
          %828 = vmatpush.bf16.msra.mxu0 0
          %829 = vmatpush.bf16.msra.mxu0 0
          %830 = vmatpush.bf16.msra.mxu0 0
          %831 = vmatpush.bf16.msra.mxu0 0
          %832 = vmatpush.bf16.msra.mxu0 0
          %833 = vmatpush.bf16.msra.mxu0 0
          %834 = vmatpush.bf16.msra.mxu0 0
          %835 = vmatpush.bf16.msra.mxu0 %v823
          %836 = vmatmul.bf16.gmra.mxu0 %v826
          %v837 = vpop.f32.mrf.mxu0
          %v838 = vadd.f32 0.0, %v837
          %v839 = vpop.f32.mrf.mxu0
          %v840 = vadd.f32 0.0, %v839
          %841 = vdwg.mxu0
          %842 = vrot.lane.b32.xlu0 %v357, 100
          %v843 = vpop.permute.xlu0 %842
          %844 = vrot.lane.b32.xlu0 %v357, 68
          %v845 = vpop.permute.xlu0 %844
          %v847 = vsel %vm361, %v843, 0
          %v850 = vsel %vm361, %v845, 0
          %852 = vmatpush.bf16.xpose.msra.mxu0 0
          %853 = vmatpush.bf16.xpose.msra.mxu0 0
          %854 = vmatpush.bf16.xpose.msra.mxu0 0
          %855 = vmatpush.bf16.xpose.msra.mxu0 0
          %856 = vmatpush.bf16.xpose.msra.mxu0 0
          %857 = vmatpush.bf16.xpose.msra.mxu0 0
          %858 = vmatpush.bf16.xpose.msra.mxu0 0
          %859 = vmatpush.bf16.xpose.msra.mxu0 %v850
          %860 = vmatmul.bf16.gmra.mxu0 %v847
          %v861 = vpop.f32.mrf.mxu0
          %v862 = vadd.f32 0.0, %v861
          %v863 = vpop.f32.mrf.mxu0
          %v864 = vadd.f32 0.0, %v863
          %865 = vdwg.mxu0
          %v866 = vmul.f32 %v862, 0.5
          %v867 = vmul.f32 %v864, 0.5
          %v868 = vsel %vm384, %v866, -inf
          %869 = vmax.xlane.f32.xlu0 %v868
          %v870 = vpop.xlane.xlu0 %869
          %v871 = vsel %vm384, %v867, -inf
          %872 = vmax.xlane.f32.xlu0 %v871
          %v873 = vpop.xlane.xlu0 %872
          %v874 = vsub.f32 %v866, %v870
          %v875 = vsub.f32 %v867, %v873
          %v876 = vmul.f32 %v874, 1.442695
          %v877 = vpow.pop %v876
          %v878 = vmul.f32 %v875, 1.442695
          %v879 = vpow.pop %v878
          %v880 = vsel %vm384, %v877, 0.0
          %881 = vadd.xlane.f32.xlu0 %v880
          %v882 = vpop.xlane.xlu0 %881
          %v883 = vsel %vm384, %v879, 0.0
          %884 = vadd.xlane.f32.xlu0 %v883
          %v885 = vpop.xlane.xlu0 %884
          %v886 = vrcp.pop %v882
          %v887 = vrcp.pop %v885
          %v888 = vmul.f32 %v877, %v886
          %v889 = vmul.f32 %v879, %v887
          %v890 = vpack.c.bf16 %v889, %v888
          %891 = vrot.lane.b32.xlu0 %v357, 36
          %v892 = vpop.permute.xlu0 %891
          %v895 = vsel %vm384, %v890, 0
          %897 = vmatpush.bf16.msra.mxu0 0
          %898 = vmatpush.bf16.msra.mxu0 0
          %899 = vmatpush.bf16.msra.mxu0 0
          %900 = vmatpush.bf16.msra.mxu0 0
          %901 = vmatpush.bf16.msra.mxu0 0
          %902 = vmatpush.bf16.msra.mxu0 0
          %903 = vmatpush.bf16.msra.mxu0 0
          %904 = vmatpush.bf16.msra.mxu0 %v892
          %905 = vmatmul.bf16.gmra.mxu0 %v895
          %v906 = vpop.f32.mrf.mxu0
          %v907 = vadd.f32 0.0, %v906
          %v908 = vpop.f32.mrf.mxu0
          %v909 = vadd.f32 0.0, %v908
          %910 = vdwg.mxu0
          %913 = vrot.lane.b32.xlu0 %v493, 4
          %v914 = vpop.permute.xlu0 %913
          %915 = vrot.lane.b32.xlu0 %v495, 4
          %v916 = vpop.permute.xlu0 %915
          %921 = vrot.lane.b32.xlu0 %v562, 8
          %v922 = vpop.permute.xlu0 %921
          %923 = vrot.lane.b32.xlu0 %v564, 8
          %v924 = vpop.permute.xlu0 %923
          %929 = vrot.lane.b32.xlu0 %v631, 12
          %v930 = vpop.permute.xlu0 %929
          %931 = vrot.lane.b32.xlu0 %v633, 12
          %v932 = vpop.permute.xlu0 %931
          %937 = vrot.lane.b32.xlu0 %v700, 16
          %v938 = vpop.permute.xlu0 %937
          %939 = vrot.lane.b32.xlu0 %v702, 16
          %v940 = vpop.permute.xlu0 %939
          %945 = vrot.lane.b32.xlu0 %v769, 20
          %v946 = vpop.permute.xlu0 %945
          %947 = vrot.lane.b32.xlu0 %v771, 20
          %v948 = vpop.permute.xlu0 %947
          %953 = vrot.lane.b32.xlu0 %v838, 24
          %v954 = vpop.permute.xlu0 %953
          %955 = vrot.lane.b32.xlu0 %v840, 24
          %v956 = vpop.permute.xlu0 %955
          %961 = vrot.lane.b32.xlu0 %v907, 28
          %v962 = vpop.permute.xlu0 %961
          %963 = vrot.lane.b32.xlu0 %v909, 28
          %v964 = vpop.permute.xlu0 %963
          %v967 = vsel %vm361, %v424, %v914
          %v968 = vsel %vm361, %v426, %v916
          %vm969 = vcmask 64512
          %v970 = vsel %vm969, %v967, %v922
          %v971 = vsel %vm969, %v968, %v924
          %vm972 = vcmask 97280
          %v973 = vsel %vm972, %v970, %v930
          %v974 = vsel %vm972, %v971, %v932
          %v975 = vsel %vm384, %v973, %v938
          %v976 = vsel %vm384, %v974, %v940
          %vm977 = vcmask 162816
          %v978 = vsel %vm977, %v975, %v946
          %v979 = vsel %vm977, %v976, %v948
          %vm980 = vcmask 195584
          %v981 = vsel %vm980, %v978, %v954
          %v982 = vsel %vm980, %v979, %v956
          %vm983 = vcmask 228352
          %v984 = vsel %vm983, %v981, %v962
          %v985 = vsel %vm983, %v982, %v964
          %v986 = vld [vmem:[%s299] sm:$0xf]
          %v987 = vld [vmem:[%s299 + $0x4] sm:$0xf]
          %v988 = vld [vmem:[%s299 + $0x8] sm:$0xf]
          %v989 = vld [vmem:[%s299 + $0xc] sm:$0xf]
          %v990 = vpack.c.bf16 %v985, %v984
          %v991 = vld [vmem:[%s302] sm:$0x1]
          %v993 = vperm.slane %v991, 0
          %v999 = vunpack.c.l.b16 %v986
          %v1000 = vunpack.c.l.b16 %v987
          %v1001 = vunpack.c.l.b16 %v988
          %v1002 = vunpack.c.l.b16 %v989
          %v1003 = vpack.c.b16 %v1000, %v999
          %v1004 = vpack.c.b16 %v1002, %v1001
          %v1008 = vsel %vm339, %v990, 0
          %1010 = vmatpush.bf16.msra.mxu0 0
          %1011 = vmatpush.bf16.msra.mxu0 0
          %1012 = vmatpush.bf16.msra.mxu0 0
          %1013 = vmatpush.bf16.msra.mxu0 0
          %1014 = vmatpush.bf16.msra.mxu0 0
          %1015 = vmatpush.bf16.msra.mxu0 0
          %1016 = vmatpush.bf16.msra.mxu0 %v1004
          %1017 = vmatpush.bf16.msra.mxu0 %v1003
          %1018 = vmatmul.bf16.gmra.mxu0 %v1008
          %v1019 = vpop.f32.mrf.mxu0
          %v1020 = vadd.f32 %v993, %v1019
          %v1021 = vpop.f32.mrf.mxu0
          %v1022 = vadd.f32 %v993, %v1021
          %1023 = vdwg.mxu0
          %v1026 = vrot.slane %v1020, 1
          %v1027 = vrot.slane %v1020, 2
          %v1028 = vrot.slane %v1020, 3
          %v1029 = vrot.slane %v1020, 4
          %v1030 = vrot.slane %v1020, 5
          %v1031 = vrot.slane %v1020, 6
          %v1032 = vrot.slane %v1020, 7
          %v1033 = vrot.slane %v1022, 1
          %v1034 = vrot.slane %v1022, 2
          %v1035 = vrot.slane %v1022, 3
          %v1036 = vrot.slane %v1022, 4
          %v1037 = vrot.slane %v1022, 5
          %v1038 = vrot.slane %v1022, 6
          %v1039 = vrot.slane %v1022, 7
          %v1040 = vperm.slane %v1020, 0
          %v1041 = vperm.slane %v1026, 0
          %v1042 = vperm.slane %v1027, 0
          %v1043 = vperm.slane %v1028, 0
          %v1044 = vperm.slane %v1029, 0
          %v1045 = vperm.slane %v1030, 0
          %v1046 = vperm.slane %v1031, 0
          %v1047 = vperm.slane %v1032, 0
          %v1048 = vperm.slane %v1022, 0
          %v1049 = vperm.slane %v1033, 0
          %v1050 = vperm.slane %v1034, 0
          %v1051 = vperm.slane %v1035, 0
          %v1052 = vperm.slane %v1036, 0
          %v1053 = vperm.slane %v1037, 0
          %v1054 = vperm.slane %v1038, 0
          %v1055 = vperm.slane %v1039, 0
          %v1056 = vld [vmem:[#allocation2] sm:$0xff]
          %v1057 = vld [vmem:[#allocation2 + $0x8] sm:$0xff]
          %v1058 = vld [vmem:[#allocation2 + $0x10] sm:$0xff]
          %v1059 = vld [vmem:[#allocation2 + $0x18] sm:$0xff]
          %1060 = vst [vmem:[#allocation1] ss:$4 sm:$0xff] %v1040
          %s1061 = scalar_lea.vmem [#allocation1], 1
          %1062 = vst [vmem:[%s1061] ss:$4 sm:$0xff] %v1041
          %s1063 = scalar_lea.vmem [#allocation1], 2
          %1064 = vst [vmem:[%s1063] ss:$4 sm:$0xff] %v1042
          %s1065 = scalar_lea.vmem [#allocation1], 3
          %1066 = vst [vmem:[%s1065] ss:$4 sm:$0xff] %v1043
          %s1067 = scalar_lea.vmem [#allocation1], 32
          %1068 = vst [vmem:[%s1067] ss:$4 sm:$0xff] %v1044
          %s1069 = scalar_lea.vmem [#allocation1], 33
          %1070 = vst [vmem:[%s1069] ss:$4 sm:$0xff] %v1045
          %s1071 = scalar_lea.vmem [#allocation1], 34
          %1072 = vst [vmem:[%s1071] ss:$4 sm:$0xff] %v1046
          %s1073 = scalar_lea.vmem [#allocation1], 35
          %1074 = vst [vmem:[%s1073] ss:$4 sm:$0xff] %v1047
          %v1075 = vld.sshfl [vmem:[#allocation1] sm:$0xff pattern:$0x73625140]
          %v1076 = vld.sshfl [vmem:[#allocation1 + $0x20] sm:$0xff pattern:$0x73625140]
          %1077 = vst [vmem:[#allocation1] ss:$4 sm:$0xff] %v1048
          %1078 = vst [vmem:[%s1061] ss:$4 sm:$0xff] %v1049
          %1079 = vst [vmem:[%s1063] ss:$4 sm:$0xff] %v1050
          %1080 = vst [vmem:[%s1065] ss:$4 sm:$0xff] %v1051
          %1081 = vst [vmem:[%s1067] ss:$4 sm:$0xff] %v1052
          %1082 = vst [vmem:[%s1069] ss:$4 sm:$0xff] %v1053
          %1083 = vst [vmem:[%s1071] ss:$4 sm:$0xff] %v1054
          %1084 = vst [vmem:[%s1073] ss:$4 sm:$0xff] %v1055
          %v1085 = vld.sshfl [vmem:[#allocation1] sm:$0xff pattern:$0x73625140]
          %v1086 = vld.sshfl [vmem:[#allocation1 + $0x20] sm:$0xff pattern:$0x73625140]
          %v1091 = vadd.f32 %v1056, %v1075
          %v1092 = vadd.f32 %v1057, %v1076
          %v1093 = vadd.f32 %v1058, %v1085
          %v1094 = vadd.f32 %v1059, %v1086
          %1095 = vst.msk [vmem:[#allocation2] sm:$0xff] %vm339, %v1091
          %1096 = vst.msk [vmem:[#allocation2 + $0x8] sm:$0xff] %vm339, %v1092
          %1097 = vst.msk [vmem:[#allocation2 + $0x10] sm:$0xff] %vm339, %v1093
          %1098 = vst.msk [vmem:[#allocation2 + $0x18] sm:$0xff] %vm339, %v1094
        $region48: #{_lambda_.1} parent=39 // pred_fallthru
          _
        %p1099 = scmp.eq.s32.totalorder %s24, 1
        // Predicated region
        $region49: #{_lambda_.1} parent=39 // pred_check
          %p1100 = pneg %p1099
        $region50: #{_lambda_.1} parent=39 // pred_check_branch
          %1102 = sbr.rel (%p1100) target = $region52
        $region51: #{_lambda_.1} parent=39 // pred_region
          %v1105 = vrot.slane %v313, 2
          %v1106 = vrot.slane %v313, 4
          %v1107 = vrot.slane %v313, 6
          %v1108 = vrot.slane %v314, 2
          %v1109 = vrot.slane %v314, 4
          %v1110 = vrot.slane %v314, 6
          %vm1117 = vcmask 254976
          %v1118 = vsel %vm1117, %v313, -inf
          %v1119 = vrot.slane %v1118, 4
          %v1120 = vmax.f32 %v1118, %v1119
          %v1121 = vrot.slane %v1120, 2
          %v1122 = vmax.f32 %v1120, %v1121
          %v1123 = vrot.slane %v1122, 1
          %v1124 = vmax.f32 %v1122, %v1123
          %v1125 = vsel %vm1117, %v1105, -inf
          %v1126 = vrot.slane %v1125, 4
          %v1127 = vmax.f32 %v1125, %v1126
          %v1128 = vrot.slane %v1127, 2
          %v1129 = vmax.f32 %v1127, %v1128
          %v1130 = vrot.slane %v1129, 1
          %v1131 = vmax.f32 %v1129, %v1130
          %v1132 = vsel %vm1117, %v1106, -inf
          %v1133 = vrot.slane %v1132, 4
          %v1134 = vmax.f32 %v1132, %v1133
          %v1135 = vrot.slane %v1134, 2
          %v1136 = vmax.f32 %v1134, %v1135
          %v1137 = vrot.slane %v1136, 1
          %v1138 = vmax.f32 %v1136, %v1137
          %v1139 = vsel %vm1117, %v1107, -inf
          %v1140 = vrot.slane %v1139, 4
          %v1141 = vmax.f32 %v1139, %v1140
          %v1142 = vrot.slane %v1141, 2
          %v1143 = vmax.f32 %v1141, %v1142
          %v1144 = vrot.slane %v1143, 1
          %v1145 = vmax.f32 %v1143, %v1144
          %v1146 = vsel %vm1117, %v314, -inf
          %v1147 = vrot.slane %v1146, 4
          %v1148 = vmax.f32 %v1146, %v1147
          %v1149 = vrot.slane %v1148, 2
          %v1150 = vmax.f32 %v1148, %v1149
          %v1151 = vrot.slane %v1150, 1
          %v1152 = vmax.f32 %v1150, %v1151
          %v1153 = vsel %vm1117, %v1108, -inf
          %v1154 = vrot.slane %v1153, 4
          %v1155 = vmax.f32 %v1153, %v1154
          %v1156 = vrot.slane %v1155, 2
          %v1157 = vmax.f32 %v1155, %v1156
          %v1158 = vrot.slane %v1157, 1
          %v1159 = vmax.f32 %v1157, %v1158
          %v1160 = vsel %vm1117, %v1109, -inf
          %v1161 = vrot.slane %v1160, 4
          %v1162 = vmax.f32 %v1160, %v1161
          %v1163 = vrot.slane %v1162, 2
          %v1164 = vmax.f32 %v1162, %v1163
          %v1165 = vrot.slane %v1164, 1
          %v1166 = vmax.f32 %v1164, %v1165
          %v1167 = vsel %vm1117, %v1110, -inf
          %v1168 = vrot.slane %v1167, 4
          %v1169 = vmax.f32 %v1167, %v1168
          %v1170 = vrot.slane %v1169, 2
          %v1171 = vmax.f32 %v1169, %v1170
          %v1172 = vrot.slane %v1171, 1
          %v1173 = vmax.f32 %v1171, %v1172
          %v1174 = vld [vmem:[%s291] sm:$0xf]
          %v1175 = vld [vmem:[%s291 + $0x4] sm:$0xf]
          %v1176 = vld [vmem:[%s291 + $0x8] sm:$0xf]
          %v1177 = vld [vmem:[%s291 + $0xc] sm:$0xf]
          %v1178 = vpack.c.bf16 %v1124, %v1124
          %v1179 = vpack.c.bf16 %v1131, %v1131
          %v1180 = vpack.c.bf16 %v1138, %v1138
          %v1181 = vpack.c.bf16 %v1145, %v1145
          %v1182 = vpack.c.bf16 %v1152, %v1152
          %v1183 = vpack.c.bf16 %v1159, %v1159
          %v1184 = vpack.c.bf16 %v1166, %v1166
          %v1185 = vpack.c.bf16 %v1173, %v1173
          %v1186 = vld [vmem:[%s294] sm:$0x1]
          %v1188 = vperm.slane %v1186, 0
          %v1198 = vunpack.c.l.b16 %v1178
          %v1199 = vunpack.c.l.b16 %v1179
          %v1200 = vunpack.c.l.b16 %v1180
          %v1201 = vunpack.c.l.b16 %v1181
          %v1202 = vunpack.c.l.b16 %v1182
          %v1203 = vunpack.c.l.b16 %v1183
          %v1204 = vunpack.c.l.b16 %v1184
          %v1205 = vunpack.c.l.b16 %v1185
          %vm1206 = vcmask 1041409
          %v1207 = vsel %vm1206, %v1199, %v1198
          %vm1208 = vcmask 1042434
          %v1209 = vsel %vm1208, %v1200, %v1207
          %vm1210 = vcmask 1043459
          %v1211 = vsel %vm1210, %v1201, %v1209
          %vm1212 = vcmask 1044484
          %v1213 = vsel %vm1212, %v1202, %v1211
          %vm1214 = vcmask 1045509
          %v1215 = vsel %vm1214, %v1203, %v1213
          %vm1216 = vcmask 1046534
          %v1217 = vsel %vm1216, %v1204, %v1215
          %vm1218 = vcmask 1047559
          %v1219 = vsel %vm1218, %v1205, %v1217
          %v1220 = vpack.c.b16 %v1219, %v1219
          %v1225 = vunpack.c.l.b16 %v1174
          %v1226 = vunpack.c.l.b16 %v1175
          %v1227 = vunpack.c.l.b16 %v1176
          %v1228 = vunpack.c.l.b16 %v1177
          %v1229 = vpack.c.b16 %v1226, %v1225
          %v1230 = vpack.c.b16 %v1228, %v1227
          %vm1233 = vcmask 261120
          %v1235 = vsel %vm1233, %v1220, 0
          %1237 = vmatpush.bf16.msra.mxu0 0
          %1238 = vmatpush.bf16.msra.mxu0 0
          %1239 = vmatpush.bf16.msra.mxu0 0
          %1240 = vmatpush.bf16.msra.mxu0 0
          %1241 = vmatpush.bf16.msra.mxu0 0
          %1242 = vmatpush.bf16.msra.mxu0 0
          %1243 = vmatpush.bf16.msra.mxu0 %v1230
          %1244 = vmatpush.bf16.msra.mxu0 %v1229
          %1245 = vmatmul.bf16.gmra.mxu0 %v1235
          %v1246 = vpop.f32.mrf.mxu0
          %v1247 = vadd.f32 %v1188, %v1246
          %v1248 = vpop.f32.mrf.mxu0
          %1249 = vdwg.mxu0
          %v1250 = vpack.c.bf16 %v1247, %v1247
          %1252 = vrot.lane.b32.xlu0 %v1250, 96
          %v1253 = vpop.permute.xlu0 %1252
          %vm1254 = vcmask 31744
          %v1256 = vsel %vm1254, %v1250, 0
          %v1259 = vsel %vm1254, %v1253, 0
          %1261 = vmatpush.bf16.xpose.msra.mxu0 0
          %1262 = vmatpush.bf16.xpose.msra.mxu0 0
          %1263 = vmatpush.bf16.xpose.msra.mxu0 0
          %1264 = vmatpush.bf16.xpose.msra.mxu0 0
          %1265 = vmatpush.bf16.xpose.msra.mxu0 0
          %1266 = vmatpush.bf16.xpose.msra.mxu0 0
          %1267 = vmatpush.bf16.xpose.msra.mxu0 0
          %1268 = vmatpush.bf16.xpose.msra.mxu0 %v1259
          %1269 = vmatmul.bf16.gmra.mxu0 %v1256
          %v1270 = vpop.f32.mrf.mxu0
          %v1271 = vadd.f32 0.0, %v1270
          %v1272 = vpop.f32.mrf.mxu0
          %1273 = vdwg.mxu0
          %v1274 = vmul.f32 %v1271, 0.5
          %vm1275 = vcmask 64512
          %v1276 = vsel %vm1275, %v1274, -inf
          %1277 = vmax.xlane.f32.xlu0 %v1276
          %v1278 = vpop.xlane.xlu0 %1277
          %v1279 = vsub.f32 %v1274, %v1278
          %v1280 = vmul.f32 %v1279, 1.442695
          %v1281 = vpow.pop %v1280
          %v1282 = vsel %vm1275, %v1281, 0.0
          %1283 = vadd.xlane.f32.xlu0 %v1282
          %v1284 = vpop.xlane.xlu0 %1283
          %v1285 = vrcp.pop %v1284
          %v1286 = vmul.f32 %v1281, %v1285
          %v1287 = vpack.c.bf16 %v1286, %v1286
          %1288 = vrot.lane.b32.xlu0 %v1250, 64
          %v1289 = vpop.permute.xlu0 %1288
          %v1291 = vsel %vm1275, %v1287, 0
          %vm1293 = vcmask 1043456
          %v1295 = vsel %vm1293, %v1289, 0
          %1297 = vmatpush.bf16.msra.mxu0 0
          %1298 = vmatpush.bf16.msra.mxu0 0
          %1299 = vmatpush.bf16.msra.mxu0 0
          %1300 = vmatpush.bf16.msra.mxu0 0
          %1301 = vmatpush.bf16.msra.mxu0 0
          %1302 = vmatpush.bf16.msra.mxu0 0
          %1303 = vmatpush.bf16.msra.mxu0 0
          %1304 = vmatpush.bf16.msra.mxu0 %v1295
          %1305 = vmatmul.bf16.gmra.mxu0 %v1291
          %v1306 = vpop.f32.mrf.mxu0
          %v1307 = vadd.f32 0.0, %v1306
          %v1308 = vpop.f32.mrf.mxu0
          %1309 = vdwg.mxu0
          %1310 = vrot.lane.b32.xlu0 %v1250, 124
          %v1311 = vpop.permute.xlu0 %1310
          %1312 = vrot.lane.b32.xlu0 %v1250, 92
          %v1313 = vpop.permute.xlu0 %1312
          %v1315 = vsel %vm1254, %v1311, 0
          %v1318 = vsel %vm1254, %v1313, 0
          %1320 = vmatpush.bf16.xpose.msra.mxu0 0
          %1321 = vmatpush.bf16.xpose.msra.mxu0 0
          %1322 = vmatpush.bf16.xpose.msra.mxu0 0
          %1323 = vmatpush.bf16.xpose.msra.mxu0 0
          %1324 = vmatpush.bf16.xpose.msra.mxu0 0
          %1325 = vmatpush.bf16.xpose.msra.mxu0 0
          %1326 = vmatpush.bf16.xpose.msra.mxu0 0
          %1327 = vmatpush.bf16.xpose.msra.mxu0 %v1318
          %1328 = vmatmul.bf16.gmra.mxu0 %v1315
          %v1329 = vpop.f32.mrf.mxu0
          %v1330 = vadd.f32 0.0, %v1329
          %v1331 = vpop.f32.mrf.mxu0
          %1332 = vdwg.mxu0
          %v1333 = vmul.f32 %v1330, 0.5
          %v1334 = vsel %vm1275, %v1333, -inf
          %1335 = vmax.xlane.f32.xlu0 %v1334
          %v1336 = vpop.xlane.xlu0 %1335
          %v1337 = vsub.f32 %v1333, %v1336
          %v1338 = vmul.f32 %v1337, 1.442695
          %v1339 = vpow.pop %v1338
          %v1340 = vsel %vm1275, %v1339, 0.0
          %1341 = vadd.xlane.f32.xlu0 %v1340
          %v1342 = vpop.xlane.xlu0 %1341
          %v1343 = vrcp.pop %v1342
          %v1344 = vmul.f32 %v1339, %v1343
          %v1345 = vpack.c.bf16 %v1344, %v1344
          %1346 = vrot.lane.b32.xlu0 %v1250, 60
          %v1347 = vpop.permute.xlu0 %1346
          %v1349 = vsel %vm1275, %v1345, 0
          %v1352 = vsel %vm1293, %v1347, 0
          %1354 = vmatpush.bf16.msra.mxu0 0
          %1355 = vmatpush.bf16.msra.mxu0 0
          %1356 = vmatpush.bf16.msra.mxu0 0
          %1357 = vmatpush.bf16.msra.mxu0 0
          %1358 = vmatpush.bf16.msra.mxu0 0
          %1359 = vmatpush.bf16.msra.mxu0 0
          %1360 = vmatpush.bf16.msra.mxu0 0
          %1361 = vmatpush.bf16.msra.mxu0 %v1352
          %1362 = vmatmul.bf16.gmra.mxu0 %v1349
          %v1363 = vpop.f32.mrf.mxu0
          %v1364 = vadd.f32 0.0, %v1363
          %v1365 = vpop.f32.mrf.mxu0
          %1366 = vdwg.mxu0
          %1367 = vrot.lane.b32.xlu0 %v1250, 120
          %v1368 = vpop.permute.xlu0 %1367
          %1369 = vrot.lane.b32.xlu0 %v1250, 88
          %v1370 = vpop.permute.xlu0 %1369
          %v1372 = vsel %vm1254, %v1368, 0
          %v1375 = vsel %vm1254, %v1370, 0
          %1377 = vmatpush.bf16.xpose.msra.mxu0 0
          %1378 = vmatpush.bf16.xpose.msra.mxu0 0
          %1379 = vmatpush.bf16.xpose.msra.mxu0 0
          %1380 = vmatpush.bf16.xpose.msra.mxu0 0
          %1381 = vmatpush.bf16.xpose.msra.mxu0 0
          %1382 = vmatpush.bf16.xpose.msra.mxu0 0
          %1383 = vmatpush.bf16.xpose.msra.mxu0 0
          %1384 = vmatpush.bf16.xpose.msra.mxu0 %v1375
          %1385 = vmatmul.bf16.gmra.mxu0 %v1372
          %v1386 = vpop.f32.mrf.mxu0
          %v1387 = vadd.f32 0.0, %v1386
          %v1388 = vpop.f32.mrf.mxu0
          %1389 = vdwg.mxu0
          %v1390 = vmul.f32 %v1387, 0.5
          %v1391 = vsel %vm1275, %v1390, -inf
          %1392 = vmax.xlane.f32.xlu0 %v1391
          %v1393 = vpop.xlane.xlu0 %1392
          %v1394 = vsub.f32 %v1390, %v1393
          %v1395 = vmul.f32 %v1394, 1.442695
          %v1396 = vpow.pop %v1395
          %v1397 = vsel %vm1275, %v1396, 0.0
          %1398 = vadd.xlane.f32.xlu0 %v1397
          %v1399 = vpop.xlane.xlu0 %1398
          %v1400 = vrcp.pop %v1399
          %v1401 = vmul.f32 %v1396, %v1400
          %v1402 = vpack.c.bf16 %v1401, %v1401
          %1403 = vrot.lane.b32.xlu0 %v1250, 56
          %v1404 = vpop.permute.xlu0 %1403
          %v1406 = vsel %vm1275, %v1402, 0
          %v1409 = vsel %vm1293, %v1404, 0
          %1411 = vmatpush.bf16.msra.mxu0 0
          %1412 = vmatpush.bf16.msra.mxu0 0
          %1413 = vmatpush.bf16.msra.mxu0 0
          %1414 = vmatpush.bf16.msra.mxu0 0
          %1415 = vmatpush.bf16.msra.mxu0 0
          %1416 = vmatpush.bf16.msra.mxu0 0
          %1417 = vmatpush.bf16.msra.mxu0 0
          %1418 = vmatpush.bf16.msra.mxu0 %v1409
          %1419 = vmatmul.bf16.gmra.mxu0 %v1406
          %v1420 = vpop.f32.mrf.mxu0
          %v1421 = vadd.f32 0.0, %v1420
          %v1422 = vpop.f32.mrf.mxu0
          %1423 = vdwg.mxu0
          %1424 = vrot.lane.b32.xlu0 %v1250, 116
          %v1425 = vpop.permute.xlu0 %1424
          %1426 = vrot.lane.b32.xlu0 %v1250, 84
          %v1427 = vpop.permute.xlu0 %1426
          %v1429 = vsel %vm1254, %v1425, 0
          %v1432 = vsel %vm1254, %v1427, 0
          %1434 = vmatpush.bf16.xpose.msra.mxu0 0
          %1435 = vmatpush.bf16.xpose.msra.mxu0 0
          %1436 = vmatpush.bf16.xpose.msra.mxu0 0
          %1437 = vmatpush.bf16.xpose.msra.mxu0 0
          %1438 = vmatpush.bf16.xpose.msra.mxu0 0
          %1439 = vmatpush.bf16.xpose.msra.mxu0 0
          %1440 = vmatpush.bf16.xpose.msra.mxu0 0
          %1441 = vmatpush.bf16.xpose.msra.mxu0 %v1432
          %1442 = vmatmul.bf16.gmra.mxu0 %v1429
          %v1443 = vpop.f32.mrf.mxu0
          %v1444 = vadd.f32 0.0, %v1443
          %v1445 = vpop.f32.mrf.mxu0
          %1446 = vdwg.mxu0
          %v1447 = vmul.f32 %v1444, 0.5
          %v1448 = vsel %vm1275, %v1447, -inf
          %1449 = vmax.xlane.f32.xlu0 %v1448
          %v1450 = vpop.xlane.xlu0 %1449
          %v1451 = vsub.f32 %v1447, %v1450
          %v1452 = vmul.f32 %v1451, 1.442695
          %v1453 = vpow.pop %v1452
          %v1454 = vsel %vm1275, %v1453, 0.0
          %1455 = vadd.xlane.f32.xlu0 %v1454
          %v1456 = vpop.xlane.xlu0 %1455
          %v1457 = vrcp.pop %v1456
          %v1458 = vmul.f32 %v1453, %v1457
          %v1459 = vpack.c.bf16 %v1458, %v1458
          %1460 = vrot.lane.b32.xlu0 %v1250, 52
          %v1461 = vpop.permute.xlu0 %1460
          %v1463 = vsel %vm1275, %v1459, 0
          %v1466 = vsel %vm1293, %v1461, 0
          %1468 = vmatpush.bf16.msra.mxu0 0
          %1469 = vmatpush.bf16.msra.mxu0 0
          %1470 = vmatpush.bf16.msra.mxu0 0
          %1471 = vmatpush.bf16.msra.mxu0 0
          %1472 = vmatpush.bf16.msra.mxu0 0
          %1473 = vmatpush.bf16.msra.mxu0 0
          %1474 = vmatpush.bf16.msra.mxu0 0
          %1475 = vmatpush.bf16.msra.mxu0 %v1466
          %1476 = vmatmul.bf16.gmra.mxu0 %v1463
          %v1477 = vpop.f32.mrf.mxu0
          %v1478 = vadd.f32 0.0, %v1477
          %v1479 = vpop.f32.mrf.mxu0
          %1480 = vdwg.mxu0
          %1481 = vrot.lane.b32.xlu0 %v1250, 112
          %v1482 = vpop.permute.xlu0 %1481
          %1483 = vrot.lane.b32.xlu0 %v1250, 80
          %v1484 = vpop.permute.xlu0 %1483
          %v1486 = vsel %vm1254, %v1482, 0
          %v1489 = vsel %vm1254, %v1484, 0
          %1491 = vmatpush.bf16.xpose.msra.mxu0 0
          %1492 = vmatpush.bf16.xpose.msra.mxu0 0
          %1493 = vmatpush.bf16.xpose.msra.mxu0 0
          %1494 = vmatpush.bf16.xpose.msra.mxu0 0
          %1495 = vmatpush.bf16.xpose.msra.mxu0 0
          %1496 = vmatpush.bf16.xpose.msra.mxu0 0
          %1497 = vmatpush.bf16.xpose.msra.mxu0 0
          %1498 = vmatpush.bf16.xpose.msra.mxu0 %v1489
          %1499 = vmatmul.bf16.gmra.mxu0 %v1486
          %v1500 = vpop.f32.mrf.mxu0
          %v1501 = vadd.f32 0.0, %v1500
          %v1502 = vpop.f32.mrf.mxu0
          %1503 = vdwg.mxu0
          %v1504 = vmul.f32 %v1501, 0.5
          %v1505 = vsel %vm1275, %v1504, -inf
          %1506 = vmax.xlane.f32.xlu0 %v1505
          %v1507 = vpop.xlane.xlu0 %1506
          %v1508 = vsub.f32 %v1504, %v1507
          %v1509 = vmul.f32 %v1508, 1.442695
          %v1510 = vpow.pop %v1509
          %v1511 = vsel %vm1275, %v1510, 0.0
          %1512 = vadd.xlane.f32.xlu0 %v1511
          %v1513 = vpop.xlane.xlu0 %1512
          %v1514 = vrcp.pop %v1513
          %v1515 = vmul.f32 %v1510, %v1514
          %v1516 = vpack.c.bf16 %v1515, %v1515
          %1517 = vrot.lane.b32.xlu0 %v1250, 48
          %v1518 = vpop.permute.xlu0 %1517
          %v1520 = vsel %vm1275, %v1516, 0
          %v1523 = vsel %vm1293, %v1518, 0
          %1525 = vmatpush.bf16.msra.mxu0 0
          %1526 = vmatpush.bf16.msra.mxu0 0
          %1527 = vmatpush.bf16.msra.mxu0 0
          %1528 = vmatpush.bf16.msra.mxu0 0
          %1529 = vmatpush.bf16.msra.mxu0 0
          %1530 = vmatpush.bf16.msra.mxu0 0
          %1531 = vmatpush.bf16.msra.mxu0 0
          %1532 = vmatpush.bf16.msra.mxu0 %v1523
          %1533 = vmatmul.bf16.gmra.mxu0 %v1520
          %v1534 = vpop.f32.mrf.mxu0
          %v1535 = vadd.f32 0.0, %v1534
          %v1536 = vpop.f32.mrf.mxu0
          %1537 = vdwg.mxu0
          %1538 = vrot.lane.b32.xlu0 %v1250, 108
          %v1539 = vpop.permute.xlu0 %1538
          %1540 = vrot.lane.b32.xlu0 %v1250, 76
          %v1541 = vpop.permute.xlu0 %1540
          %v1543 = vsel %vm1254, %v1539, 0
          %v1546 = vsel %vm1254, %v1541, 0
          %1548 = vmatpush.bf16.xpose.msra.mxu0 0
          %1549 = vmatpush.bf16.xpose.msra.mxu0 0
          %1550 = vmatpush.bf16.xpose.msra.mxu0 0
          %1551 = vmatpush.bf16.xpose.msra.mxu0 0
          %1552 = vmatpush.bf16.xpose.msra.mxu0 0
          %1553 = vmatpush.bf16.xpose.msra.mxu0 0
          %1554 = vmatpush.bf16.xpose.msra.mxu0 0
          %1555 = vmatpush.bf16.xpose.msra.mxu0 %v1546
          %1556 = vmatmul.bf16.gmra.mxu0 %v1543
          %v1557 = vpop.f32.mrf.mxu0
          %v1558 = vadd.f32 0.0, %v1557
          %v1559 = vpop.f32.mrf.mxu0
          %1560 = vdwg.mxu0
          %v1561 = vmul.f32 %v1558, 0.5
          %v1562 = vsel %vm1275, %v1561, -inf
          %1563 = vmax.xlane.f32.xlu0 %v1562
          %v1564 = vpop.xlane.xlu0 %1563
          %v1565 = vsub.f32 %v1561, %v1564
          %v1566 = vmul.f32 %v1565, 1.442695
          %v1567 = vpow.pop %v1566
          %v1568 = vsel %vm1275, %v1567, 0.0
          %1569 = vadd.xlane.f32.xlu0 %v1568
          %v1570 = vpop.xlane.xlu0 %1569
          %v1571 = vrcp.pop %v1570
          %v1572 = vmul.f32 %v1567, %v1571
          %v1573 = vpack.c.bf16 %v1572, %v1572
          %1574 = vrot.lane.b32.xlu0 %v1250, 44
          %v1575 = vpop.permute.xlu0 %1574
          %v1577 = vsel %vm1275, %v1573, 0
          %v1580 = vsel %vm1293, %v1575, 0
          %1582 = vmatpush.bf16.msra.mxu0 0
          %1583 = vmatpush.bf16.msra.mxu0 0
          %1584 = vmatpush.bf16.msra.mxu0 0
          %1585 = vmatpush.bf16.msra.mxu0 0
          %1586 = vmatpush.bf16.msra.mxu0 0
          %1587 = vmatpush.bf16.msra.mxu0 0
          %1588 = vmatpush.bf16.msra.mxu0 0
          %1589 = vmatpush.bf16.msra.mxu0 %v1580
          %1590 = vmatmul.bf16.gmra.mxu0 %v1577
          %v1591 = vpop.f32.mrf.mxu0
          %v1592 = vadd.f32 0.0, %v1591
          %v1593 = vpop.f32.mrf.mxu0
          %1594 = vdwg.mxu0
          %1595 = vrot.lane.b32.xlu0 %v1250, 104
          %v1596 = vpop.permute.xlu0 %1595
          %1597 = vrot.lane.b32.xlu0 %v1250, 72
          %v1598 = vpop.permute.xlu0 %1597
          %v1600 = vsel %vm1254, %v1596, 0
          %v1603 = vsel %vm1254, %v1598, 0
          %1605 = vmatpush.bf16.xpose.msra.mxu0 0
          %1606 = vmatpush.bf16.xpose.msra.mxu0 0
          %1607 = vmatpush.bf16.xpose.msra.mxu0 0
          %1608 = vmatpush.bf16.xpose.msra.mxu0 0
          %1609 = vmatpush.bf16.xpose.msra.mxu0 0
          %1610 = vmatpush.bf16.xpose.msra.mxu0 0
          %1611 = vmatpush.bf16.xpose.msra.mxu0 0
          %1612 = vmatpush.bf16.xpose.msra.mxu0 %v1603
          %1613 = vmatmul.bf16.gmra.mxu0 %v1600
          %v1614 = vpop.f32.mrf.mxu0
          %v1615 = vadd.f32 0.0, %v1614
          %v1616 = vpop.f32.mrf.mxu0
          %1617 = vdwg.mxu0
          %v1618 = vmul.f32 %v1615, 0.5
          %v1619 = vsel %vm1275, %v1618, -inf
          %1620 = vmax.xlane.f32.xlu0 %v1619
          %v1621 = vpop.xlane.xlu0 %1620
          %v1622 = vsub.f32 %v1618, %v1621
          %v1623 = vmul.f32 %v1622, 1.442695
          %v1624 = vpow.pop %v1623
          %v1625 = vsel %vm1275, %v1624, 0.0
          %1626 = vadd.xlane.f32.xlu0 %v1625
          %v1627 = vpop.xlane.xlu0 %1626
          %v1628 = vrcp.pop %v1627
          %v1629 = vmul.f32 %v1624, %v1628
          %v1630 = vpack.c.bf16 %v1629, %v1629
          %1631 = vrot.lane.b32.xlu0 %v1250, 40
          %v1632 = vpop.permute.xlu0 %1631
          %v1634 = vsel %vm1275, %v1630, 0
          %v1637 = vsel %vm1293, %v1632, 0
          %1639 = vmatpush.bf16.msra.mxu0 0
          %1640 = vmatpush.bf16.msra.mxu0 0
          %1641 = vmatpush.bf16.msra.mxu0 0
          %1642 = vmatpush.bf16.msra.mxu0 0
          %1643 = vmatpush.bf16.msra.mxu0 0
          %1644 = vmatpush.bf16.msra.mxu0 0
          %1645 = vmatpush.bf16.msra.mxu0 0
          %1646 = vmatpush.bf16.msra.mxu0 %v1637
          %1647 = vmatmul.bf16.gmra.mxu0 %v1634
          %v1648 = vpop.f32.mrf.mxu0
          %v1649 = vadd.f32 0.0, %v1648
          %v1650 = vpop.f32.mrf.mxu0
          %1651 = vdwg.mxu0
          %1652 = vrot.lane.b32.xlu0 %v1250, 100
          %v1653 = vpop.permute.xlu0 %1652
          %1654 = vrot.lane.b32.xlu0 %v1250, 68
          %v1655 = vpop.permute.xlu0 %1654
          %v1657 = vsel %vm1254, %v1653, 0
          %v1660 = vsel %vm1254, %v1655, 0
          %1662 = vmatpush.bf16.xpose.msra.mxu0 0
          %1663 = vmatpush.bf16.xpose.msra.mxu0 0
          %1664 = vmatpush.bf16.xpose.msra.mxu0 0
          %1665 = vmatpush.bf16.xpose.msra.mxu0 0
          %1666 = vmatpush.bf16.xpose.msra.mxu0 0
          %1667 = vmatpush.bf16.xpose.msra.mxu0 0
          %1668 = vmatpush.bf16.xpose.msra.mxu0 0
          %1669 = vmatpush.bf16.xpose.msra.mxu0 %v1660
          %1670 = vmatmul.bf16.gmra.mxu0 %v1657
          %v1671 = vpop.f32.mrf.mxu0
          %v1672 = vadd.f32 0.0, %v1671
          %v1673 = vpop.f32.mrf.mxu0
          %1674 = vdwg.mxu0
          %v1675 = vmul.f32 %v1672, 0.5
          %v1676 = vsel %vm1275, %v1675, -inf
          %1677 = vmax.xlane.f32.xlu0 %v1676
          %v1678 = vpop.xlane.xlu0 %1677
          %v1679 = vsub.f32 %v1675, %v1678
          %v1680 = vmul.f32 %v1679, 1.442695
          %v1681 = vpow.pop %v1680
          %v1682 = vsel %vm1275, %v1681, 0.0
          %1683 = vadd.xlane.f32.xlu0 %v1682
          %v1684 = vpop.xlane.xlu0 %1683
          %v1685 = vrcp.pop %v1684
          %v1686 = vmul.f32 %v1681, %v1685
          %v1687 = vpack.c.bf16 %v1686, %v1686
          %1688 = vrot.lane.b32.xlu0 %v1250, 36
          %v1689 = vpop.permute.xlu0 %1688
          %v1691 = vsel %vm1275, %v1687, 0
          %v1694 = vsel %vm1293, %v1689, 0
          %1696 = vmatpush.bf16.msra.mxu0 0
          %1697 = vmatpush.bf16.msra.mxu0 0
          %1698 = vmatpush.bf16.msra.mxu0 0
          %1699 = vmatpush.bf16.msra.mxu0 0
          %1700 = vmatpush.bf16.msra.mxu0 0
          %1701 = vmatpush.bf16.msra.mxu0 0
          %1702 = vmatpush.bf16.msra.mxu0 0
          %1703 = vmatpush.bf16.msra.mxu0 %v1694
          %1704 = vmatmul.bf16.gmra.mxu0 %v1691
          %v1705 = vpop.f32.mrf.mxu0
          %v1706 = vadd.f32 0.0, %v1705
          %v1707 = vpop.f32.mrf.mxu0
          %1708 = vdwg.mxu0
          %1710 = vrot.lane.b32.xlu0 %v1364, 4
          %v1711 = vpop.permute.xlu0 %1710
          %1714 = vrot.lane.b32.xlu0 %v1421, 8
          %v1715 = vpop.permute.xlu0 %1714
          %1718 = vrot.lane.b32.xlu0 %v1478, 12
          %v1719 = vpop.permute.xlu0 %1718
          %1722 = vrot.lane.b32.xlu0 %v1535, 16
          %v1723 = vpop.permute.xlu0 %1722
          %1726 = vrot.lane.b32.xlu0 %v1592, 20
          %v1727 = vpop.permute.xlu0 %1726
          %1730 = vrot.lane.b32.xlu0 %v1649, 24
          %v1731 = vpop.permute.xlu0 %1730
          %1734 = vrot.lane.b32.xlu0 %v1706, 28
          %v1735 = vpop.permute.xlu0 %1734
          %v1737 = vsel %vm1254, %v1307, %v1711
          %v1738 = vsel %vm1275, %v1737, %v1715
          %vm1739 = vcmask 97280
          %v1740 = vsel %vm1739, %v1738, %v1719
          %vm1741 = vcmask 130048
          %v1742 = vsel %vm1741, %v1740, %v1723
          %vm1743 = vcmask 162816
          %v1744 = vsel %vm1743, %v1742, %v1727
          %vm1745 = vcmask 195584
          %v1746 = vsel %vm1745, %v1744, %v1731
          %vm1747 = vcmask 228352
          %v1748 = vsel %vm1747, %v1746, %v1735
          %v1749 = vld [vmem:[%s299] sm:$0xf]
          %v1750 = vld [vmem:[%s299 + $0x4] sm:$0xf]
          %v1751 = vld [vmem:[%s299 + $0x8] sm:$0xf]
          %v1752 = vld [vmem:[%s299 + $0xc] sm:$0xf]
          %v1753 = vpack.c.bf16 %v1748, %v1748
          %v1754 = vld [vmem:[%s302] sm:$0x1]
          %v1756 = vperm.slane %v1754, 0
          %v1762 = vunpack.c.l.b16 %v1749
          %v1763 = vunpack.c.l.b16 %v1750
          %v1764 = vunpack.c.l.b16 %v1751
          %v1765 = vunpack.c.l.b16 %v1752
          %v1766 = vpack.c.b16 %v1763, %v1762
          %v1767 = vpack.c.b16 %v1765, %v1764
          %v1771 = vsel %vm1233, %v1753, 0
          %1773 = vmatpush.bf16.msra.mxu0 0
          %1774 = vmatpush.bf16.msra.mxu0 0
          %1775 = vmatpush.bf16.msra.mxu0 0
          %1776 = vmatpush.bf16.msra.mxu0 0
          %1777 = vmatpush.bf16.msra.mxu0 0
          %1778 = vmatpush.bf16.msra.mxu0 0
          %1779 = vmatpush.bf16.msra.mxu0 %v1767
          %1780 = vmatpush.bf16.msra.mxu0 %v1766
          %1781 = vmatmul.bf16.gmra.mxu0 %v1771
          %v1782 = vpop.f32.mrf.mxu0
          %v1783 = vadd.f32 %v1756, %v1782
          %v1784 = vpop.f32.mrf.mxu0
          %1785 = vdwg.mxu0
          %v1787 = vrot.slane %v1783, 1
          %v1788 = vrot.slane %v1783, 2
          %v1789 = vrot.slane %v1783, 3
          %v1790 = vrot.slane %v1783, 4
          %v1791 = vrot.slane %v1783, 5
          %v1792 = vrot.slane %v1783, 6
          %v1793 = vrot.slane %v1783, 7
          %v1794 = vperm.slane %v1783, 0
          %v1795 = vperm.slane %v1787, 0
          %v1796 = vperm.slane %v1788, 0
          %v1797 = vperm.slane %v1789, 0
          %v1798 = vperm.slane %v1790, 0
          %v1799 = vperm.slane %v1791, 0
          %v1800 = vperm.slane %v1792, 0
          %v1801 = vperm.slane %v1793, 0
          %v1802 = vld [vmem:[#allocation2] sm:$0xff]
          %v1803 = vld [vmem:[#allocation2 + $0x8] sm:$0xff]
          %v1804 = vld [vmem:[#allocation2 + $0x10] sm:$0xff]
          %v1805 = vld [vmem:[#allocation2 + $0x18] sm:$0xff]
          %1806 = vst [vmem:[#allocation1] ss:$2 sm:$0xff] %v1794
          %s1807 = scalar_lea.vmem [#allocation1], 1
          %1808 = vst [vmem:[%s1807] ss:$2 sm:$0xff] %v1795
          %s1809 = scalar_lea.vmem [#allocation1], 16
          %1810 = vst [vmem:[%s1809] ss:$2 sm:$0xff] %v1796
          %s1811 = scalar_lea.vmem [#allocation1], 17
          %1812 = vst [vmem:[%s1811] ss:$2 sm:$0xff] %v1797
          %s1813 = scalar_lea.vmem [#allocation1], 32
          %1814 = vst [vmem:[%s1813] ss:$2 sm:$0xff] %v1798
          %s1815 = scalar_lea.vmem [#allocation1], 33
          %1816 = vst [vmem:[%s1815] ss:$2 sm:$0xff] %v1799
          %s1817 = scalar_lea.vmem [#allocation1], 48
          %1818 = vst [vmem:[%s1817] ss:$2 sm:$0xff] %v1800
          %s1819 = scalar_lea.vmem [#allocation1], 49
          %1820 = vst [vmem:[%s1819] ss:$2 sm:$0xff] %v1801
          %v1821 = vld.sshfl [vmem:[#allocation1] sm:$0xff pattern:$0x75316420]
          %v1822 = vld.sshfl [vmem:[#allocation1 + $0x10] sm:$0xff pattern:$0x75316420]
          %v1823 = vld.sshfl [vmem:[#allocation1 + $0x20] sm:$0xff pattern:$0x75316420]
          %v1824 = vld.sshfl [vmem:[#allocation1 + $0x30] sm:$0xff pattern:$0x75316420]
          %v1829 = vadd.f32 %v1802, %v1821
          %v1830 = vadd.f32 %v1803, %v1822
          %v1831 = vadd.f32 %v1804, %v1823
          %v1832 = vadd.f32 %v1805, %v1824
          %1833 = vst.msk [vmem:[#allocation2] sm:$0xff] %vm1233, %v1829
          %1834 = vst.msk [vmem:[#allocation2 + $0x8] sm:$0xff] %vm1233, %v1830
          %1835 = vst.msk [vmem:[#allocation2 + $0x10] sm:$0xff] %vm1233, %v1831
          %1836 = vst.msk [vmem:[#allocation2 + $0x18] sm:$0xff] %vm1233, %v1832
        $region52: #{_lambda_.1} parent=39 // pred_fallthru
          _
        %p1837 = scmp.eq.s32.totalorder %s24, 2
        // Predicated region
        $region53: #{_lambda_.1} parent=39 // pred_check
          %p1838 = pneg %p1837
        $region54: #{_lambda_.1} parent=39 // pred_check_branch
          %1840 = sbr.rel (%p1838) target = $region56
        $region55: #{_lambda_.1} parent=39 // pred_region
          %v1843 = vrot.slane %v313, 4
          %v1844 = vrot.slane %v314, 4
          %vm1847 = vcmask 257024
          %v1848 = vsel %vm1847, %v313, -inf
          %v1849 = vrot.slane %v1848, 4
          %v1850 = vmax.f32 %v1848, %v1849
          %v1851 = vrot.slane %v1850, 2
          %v1852 = vmax.f32 %v1850, %v1851
          %v1853 = vrot.slane %v1852, 1
          %v1854 = vmax.f32 %v1852, %v1853
          %v1855 = vsel %vm1847, %v1843, -inf
          %v1856 = vrot.slane %v1855, 4
          %v1857 = vmax.f32 %v1855, %v1856
          %v1858 = vrot.slane %v1857, 2
          %v1859 = vmax.f32 %v1857, %v1858
          %v1860 = vrot.slane %v1859, 1
          %v1861 = vmax.f32 %v1859, %v1860
          %v1862 = vsel %vm1847, %v314, -inf
          %v1863 = vrot.slane %v1862, 4
          %v1864 = vmax.f32 %v1862, %v1863
          %v1865 = vrot.slane %v1864, 2
          %v1866 = vmax.f32 %v1864, %v1865
          %v1867 = vrot.slane %v1866, 1
          %v1868 = vmax.f32 %v1866, %v1867
          %v1869 = vsel %vm1847, %v1844, -inf
          %v1870 = vrot.slane %v1869, 4
          %v1871 = vmax.f32 %v1869, %v1870
          %v1872 = vrot.slane %v1871, 2
          %v1873 = vmax.f32 %v1871, %v1872
          %v1874 = vrot.slane %v1873, 1
          %v1875 = vmax.f32 %v1873, %v1874
          %v1876 = vld [vmem:[%s291] sm:$0xf]
          %v1877 = vld [vmem:[%s291 + $0x4] sm:$0xf]
          %v1878 = vld [vmem:[%s291 + $0x8] sm:$0xf]
          %v1879 = vld [vmem:[%s291 + $0xc] sm:$0xf]
          %v1880 = vpack.c.bf16 %v1854, %v1854
          %v1881 = vpack.c.bf16 %v1861, %v1861
          %v1882 = vpack.c.bf16 %v1868, %v1868
          %v1883 = vpack.c.bf16 %v1875, %v1875
          %v1884 = vld [vmem:[%s294] sm:$0x1]
          %v1886 = vperm.slane %v1884, 0
          %v1892 = vunpack.c.l.b16 %v1880
          %v1893 = vunpack.c.l.b16 %v1881
          %v1894 = vunpack.c.l.b16 %v1882
          %v1895 = vunpack.c.l.b16 %v1883
          %vm1896 = vcmask 1041409
          %v1897 = vsel %vm1896, %v1893, %v1892
          %vm1898 = vcmask 1042434
          %v1899 = vsel %vm1898, %v1894, %v1897
          %vm1900 = vcmask 1043459
          %v1901 = vsel %vm1900, %v1895, %v1899
          %v1902 = vpack.c.b16 %v1901, %v1901
          %v1907 = vunpack.c.l.b16 %v1876
          %v1908 = vunpack.c.l.b16 %v1877
          %v1909 = vunpack.c.l.b16 %v1878
          %v1910 = vunpack.c.l.b16 %v1879
          %v1911 = vpack.c.b16 %v1908, %v1907
          %v1912 = vpack.c.b16 %v1910, %v1909
          %vm1915 = vcmask 261120
          %v1917 = vsel %vm1915, %v1902, 0
          %1919 = vmatpush.bf16.msra.mxu0 0
          %1920 = vmatpush.bf16.msra.mxu0 0
          %1921 = vmatpush.bf16.msra.mxu0 0
          %1922 = vmatpush.bf16.msra.mxu0 0
          %1923 = vmatpush.bf16.msra.mxu0 0
          %1924 = vmatpush.bf16.msra.mxu0 0
          %1925 = vmatpush.bf16.msra.mxu0 %v1912
          %1926 = vmatpush.bf16.msra.mxu0 %v1911
          %1927 = vmatmul.bf16.gmra.mxu0 %v1917
          %v1928 = vpop.f32.mrf.mxu0
          %v1929 = vadd.f32 %v1886, %v1928
          %v1930 = vpop.f32.mrf.mxu0
          %1931 = vdwg.mxu0
          %v1932 = vpack.c.bf16 %v1929, %v1929
          %1934 = vrot.lane.b32.xlu0 %v1932, 96
          %v1935 = vpop.permute.xlu0 %1934
          %vm1936 = vcmask 31744
          %v1938 = vsel %vm1936, %v1932, 0
          %v1941 = vsel %vm1936, %v1935, 0
          %1943 = vmatpush.bf16.xpose.msra.mxu0 0
          %1944 = vmatpush.bf16.xpose.msra.mxu0 0
          %1945 = vmatpush.bf16.xpose.msra.mxu0 0
          %1946 = vmatpush.bf16.xpose.msra.mxu0 0
          %1947 = vmatpush.bf16.xpose.msra.mxu0 0
          %1948 = vmatpush.bf16.xpose.msra.mxu0 0
          %1949 = vmatpush.bf16.xpose.msra.mxu0 0
          %1950 = vmatpush.bf16.xpose.msra.mxu0 %v1941
          %1951 = vmatmul.bf16.gmra.mxu0 %v1938
          %v1952 = vpop.f32.mrf.mxu0
          %v1953 = vadd.f32 0.0, %v1952
          %v1954 = vpop.f32.mrf.mxu0
          %1955 = vdwg.mxu0
          %v1956 = vmul.f32 %v1953, 0.5
          %vm1957 = vcmask 27648
          %v1958 = vsel %vm1957, %v1956, -inf
          %1959 = vmax.xlane.f32.xlu0 %v1958
          %v1960 = vpop.xlane.xlu0 %1959
          %v1961 = vsub.f32 %v1956, %v1960
          %v1962 = vmul.f32 %v1961, 1.442695
          %v1963 = vpow.pop %v1962
          %v1964 = vsel %vm1957, %v1963, 0.0
          %1965 = vadd.xlane.f32.xlu0 %v1964
          %v1966 = vpop.xlane.xlu0 %1965
          %v1967 = vrcp.pop %v1966
          %v1968 = vmul.f32 %v1963, %v1967
          %v1969 = vpack.c.bf16 %v1968, %v1968
          %1970 = vrot.lane.b32.xlu0 %v1932, 64
          %v1971 = vpop.permute.xlu0 %1970
          %v1973 = vsel %vm1936, %v1969, 0
          %vm1975 = vcmask 1041408
          %v1977 = vsel %vm1975, %v1971, 0
          %1979 = vmatpush.bf16.msra.mxu0 0
          %1980 = vmatpush.bf16.msra.mxu0 0
          %1981 = vmatpush.bf16.msra.mxu0 0
          %1982 = vmatpush.bf16.msra.mxu0 0
          %1983 = vmatpush.bf16.msra.mxu0 0
          %1984 = vmatpush.bf16.msra.mxu0 0
          %1985 = vmatpush.bf16.msra.mxu0 0
          %1986 = vmatpush.bf16.msra.mxu0 %v1977
          %1987 = vmatmul.bf16.gmra.mxu0 %v1973
          %v1988 = vpop.f32.mrf.mxu0
          %v1989 = vadd.f32 0.0, %v1988
          %v1990 = vpop.f32.mrf.mxu0
          %1991 = vdwg.mxu0
          %1992 = vrot.lane.b32.xlu0 %v1932, 124
          %v1993 = vpop.permute.xlu0 %1992
          %1994 = vrot.lane.b32.xlu0 %v1932, 92
          %v1995 = vpop.permute.xlu0 %1994
          %v1997 = vsel %vm1936, %v1993, 0
          %v2000 = vsel %vm1936, %v1995, 0
          %2002 = vmatpush.bf16.xpose.msra.mxu0 0
          %2003 = vmatpush.bf16.xpose.msra.mxu0 0
          %2004 = vmatpush.bf16.xpose.msra.mxu0 0
          %2005 = vmatpush.bf16.xpose.msra.mxu0 0
          %2006 = vmatpush.bf16.xpose.msra.mxu0 0
          %2007 = vmatpush.bf16.xpose.msra.mxu0 0
          %2008 = vmatpush.bf16.xpose.msra.mxu0 0
          %2009 = vmatpush.bf16.xpose.msra.mxu0 %v2000
          %2010 = vmatmul.bf16.gmra.mxu0 %v1997
          %v2011 = vpop.f32.mrf.mxu0
          %v2012 = vadd.f32 0.0, %v2011
          %v2013 = vpop.f32.mrf.mxu0
          %2014 = vdwg.mxu0
          %v2015 = vmul.f32 %v2012, 0.5
          %v2016 = vsel %vm1957, %v2015, -inf
          %2017 = vmax.xlane.f32.xlu0 %v2016
          %v2018 = vpop.xlane.xlu0 %2017
          %v2019 = vsub.f32 %v2015, %v2018
          %v2020 = vmul.f32 %v2019, 1.442695
          %v2021 = vpow.pop %v2020
          %v2022 = vsel %vm1957, %v2021, 0.0
          %2023 = vadd.xlane.f32.xlu0 %v2022
          %v2024 = vpop.xlane.xlu0 %2023
          %v2025 = vrcp.pop %v2024
          %v2026 = vmul.f32 %v2021, %v2025
          %v2027 = vpack.c.bf16 %v2026, %v2026
          %2028 = vrot.lane.b32.xlu0 %v1932, 60
          %v2029 = vpop.permute.xlu0 %2028
          %v2031 = vsel %vm1936, %v2027, 0
          %v2034 = vsel %vm1975, %v2029, 0
          %2036 = vmatpush.bf16.msra.mxu0 0
          %2037 = vmatpush.bf16.msra.mxu0 0
          %2038 = vmatpush.bf16.msra.mxu0 0
          %2039 = vmatpush.bf16.msra.mxu0 0
          %2040 = vmatpush.bf16.msra.mxu0 0
          %2041 = vmatpush.bf16.msra.mxu0 0
          %2042 = vmatpush.bf16.msra.mxu0 0
          %2043 = vmatpush.bf16.msra.mxu0 %v2034
          %2044 = vmatmul.bf16.gmra.mxu0 %v2031
          %v2045 = vpop.f32.mrf.mxu0
          %v2046 = vadd.f32 0.0, %v2045
          %v2047 = vpop.f32.mrf.mxu0
          %2048 = vdwg.mxu0
          %2049 = vrot.lane.b32.xlu0 %v1932, 120
          %v2050 = vpop.permute.xlu0 %2049
          %2051 = vrot.lane.b32.xlu0 %v1932, 88
          %v2052 = vpop.permute.xlu0 %2051
          %v2054 = vsel %vm1936, %v2050, 0
          %v2057 = vsel %vm1936, %v2052, 0
          %2059 = vmatpush.bf16.xpose.msra.mxu0 0
          %2060 = vmatpush.bf16.xpose.msra.mxu0 0
          %2061 = vmatpush.bf16.xpose.msra.mxu0 0
          %2062 = vmatpush.bf16.xpose.msra.mxu0 0
          %2063 = vmatpush.bf16.xpose.msra.mxu0 0
          %2064 = vmatpush.bf16.xpose.msra.mxu0 0
          %2065 = vmatpush.bf16.xpose.msra.mxu0 0
          %2066 = vmatpush.bf16.xpose.msra.mxu0 %v2057
          %2067 = vmatmul.bf16.gmra.mxu0 %v2054
          %v2068 = vpop.f32.mrf.mxu0
          %v2069 = vadd.f32 0.0, %v2068
          %v2070 = vpop.f32.mrf.mxu0
          %2071 = vdwg.mxu0
          %v2072 = vmul.f32 %v2069, 0.5
          %v2073 = vsel %vm1957, %v2072, -inf
          %2074 = vmax.xlane.f32.xlu0 %v2073
          %v2075 = vpop.xlane.xlu0 %2074
          %v2076 = vsub.f32 %v2072, %v2075
          %v2077 = vmul.f32 %v2076, 1.442695
          %v2078 = vpow.pop %v2077
          %v2079 = vsel %vm1957, %v2078, 0.0
          %2080 = vadd.xlane.f32.xlu0 %v2079
          %v2081 = vpop.xlane.xlu0 %2080
          %v2082 = vrcp.pop %v2081
          %v2083 = vmul.f32 %v2078, %v2082
          %v2084 = vpack.c.bf16 %v2083, %v2083
          %2085 = vrot.lane.b32.xlu0 %v1932, 56
          %v2086 = vpop.permute.xlu0 %2085
          %v2088 = vsel %vm1936, %v2084, 0
          %v2091 = vsel %vm1975, %v2086, 0
          %2093 = vmatpush.bf16.msra.mxu0 0
          %2094 = vmatpush.bf16.msra.mxu0 0
          %2095 = vmatpush.bf16.msra.mxu0 0
          %2096 = vmatpush.bf16.msra.mxu0 0
          %2097 = vmatpush.bf16.msra.mxu0 0
          %2098 = vmatpush.bf16.msra.mxu0 0
          %2099 = vmatpush.bf16.msra.mxu0 0
          %2100 = vmatpush.bf16.msra.mxu0 %v2091
          %2101 = vmatmul.bf16.gmra.mxu0 %v2088
          %v2102 = vpop.f32.mrf.mxu0
          %v2103 = vadd.f32 0.0, %v2102
          %v2104 = vpop.f32.mrf.mxu0
          %2105 = vdwg.mxu0
          %2106 = vrot.lane.b32.xlu0 %v1932, 116
          %v2107 = vpop.permute.xlu0 %2106
          %2108 = vrot.lane.b32.xlu0 %v1932, 84
          %v2109 = vpop.permute.xlu0 %2108
          %v2111 = vsel %vm1936, %v2107, 0
          %v2114 = vsel %vm1936, %v2109, 0
          %2116 = vmatpush.bf16.xpose.msra.mxu0 0
          %2117 = vmatpush.bf16.xpose.msra.mxu0 0
          %2118 = vmatpush.bf16.xpose.msra.mxu0 0
          %2119 = vmatpush.bf16.xpose.msra.mxu0 0
          %2120 = vmatpush.bf16.xpose.msra.mxu0 0
          %2121 = vmatpush.bf16.xpose.msra.mxu0 0
          %2122 = vmatpush.bf16.xpose.msra.mxu0 0
          %2123 = vmatpush.bf16.xpose.msra.mxu0 %v2114
          %2124 = vmatmul.bf16.gmra.mxu0 %v2111
          %v2125 = vpop.f32.mrf.mxu0
          %v2126 = vadd.f32 0.0, %v2125
          %v2127 = vpop.f32.mrf.mxu0
          %2128 = vdwg.mxu0
          %v2129 = vmul.f32 %v2126, 0.5
          %v2130 = vsel %vm1957, %v2129, -inf
          %2131 = vmax.xlane.f32.xlu0 %v2130
          %v2132 = vpop.xlane.xlu0 %2131
          %v2133 = vsub.f32 %v2129, %v2132
          %v2134 = vmul.f32 %v2133, 1.442695
          %v2135 = vpow.pop %v2134
          %v2136 = vsel %vm1957, %v2135, 0.0
          %2137 = vadd.xlane.f32.xlu0 %v2136
          %v2138 = vpop.xlane.xlu0 %2137
          %v2139 = vrcp.pop %v2138
          %v2140 = vmul.f32 %v2135, %v2139
          %v2141 = vpack.c.bf16 %v2140, %v2140
          %2142 = vrot.lane.b32.xlu0 %v1932, 52
          %v2143 = vpop.permute.xlu0 %2142
          %v2145 = vsel %vm1936, %v2141, 0
          %v2148 = vsel %vm1975, %v2143, 0
          %2150 = vmatpush.bf16.msra.mxu0 0
          %2151 = vmatpush.bf16.msra.mxu0 0
          %2152 = vmatpush.bf16.msra.mxu0 0
          %2153 = vmatpush.bf16.msra.mxu0 0
          %2154 = vmatpush.bf16.msra.mxu0 0
          %2155 = vmatpush.bf16.msra.mxu0 0
          %2156 = vmatpush.bf16.msra.mxu0 0
          %2157 = vmatpush.bf16.msra.mxu0 %v2148
          %2158 = vmatmul.bf16.gmra.mxu0 %v2145
          %v2159 = vpop.f32.mrf.mxu0
          %v2160 = vadd.f32 0.0, %v2159
          %v2161 = vpop.f32.mrf.mxu0
          %2162 = vdwg.mxu0
          %2163 = vrot.lane.b32.xlu0 %v1932, 112
          %v2164 = vpop.permute.xlu0 %2163
          %2165 = vrot.lane.b32.xlu0 %v1932, 80
          %v2166 = vpop.permute.xlu0 %2165
          %v2168 = vsel %vm1936, %v2164, 0
          %v2171 = vsel %vm1936, %v2166, 0
          %2173 = vmatpush.bf16.xpose.msra.mxu0 0
          %2174 = vmatpush.bf16.xpose.msra.mxu0 0
          %2175 = vmatpush.bf16.xpose.msra.mxu0 0
          %2176 = vmatpush.bf16.xpose.msra.mxu0 0
          %2177 = vmatpush.bf16.xpose.msra.mxu0 0
          %2178 = vmatpush.bf16.xpose.msra.mxu0 0
          %2179 = vmatpush.bf16.xpose.msra.mxu0 0
          %2180 = vmatpush.bf16.xpose.msra.mxu0 %v2171
          %2181 = vmatmul.bf16.gmra.mxu0 %v2168
          %v2182 = vpop.f32.mrf.mxu0
          %v2183 = vadd.f32 0.0, %v2182
          %v2184 = vpop.f32.mrf.mxu0
          %2185 = vdwg.mxu0
          %v2186 = vmul.f32 %v2183, 0.5
          %v2187 = vsel %vm1957, %v2186, -inf
          %2188 = vmax.xlane.f32.xlu0 %v2187
          %v2189 = vpop.xlane.xlu0 %2188
          %v2190 = vsub.f32 %v2186, %v2189
          %v2191 = vmul.f32 %v2190, 1.442695
          %v2192 = vpow.pop %v2191
          %v2193 = vsel %vm1957, %v2192, 0.0
          %2194 = vadd.xlane.f32.xlu0 %v2193
          %v2195 = vpop.xlane.xlu0 %2194
          %v2196 = vrcp.pop %v2195
          %v2197 = vmul.f32 %v2192, %v2196
          %v2198 = vpack.c.bf16 %v2197, %v2197
          %2199 = vrot.lane.b32.xlu0 %v1932, 48
          %v2200 = vpop.permute.xlu0 %2199
          %v2202 = vsel %vm1936, %v2198, 0
          %v2205 = vsel %vm1975, %v2200, 0
          %2207 = vmatpush.bf16.msra.mxu0 0
          %2208 = vmatpush.bf16.msra.mxu0 0
          %2209 = vmatpush.bf16.msra.mxu0 0
          %2210 = vmatpush.bf16.msra.mxu0 0
          %2211 = vmatpush.bf16.msra.mxu0 0
          %2212 = vmatpush.bf16.msra.mxu0 0
          %2213 = vmatpush.bf16.msra.mxu0 0
          %2214 = vmatpush.bf16.msra.mxu0 %v2205
          %2215 = vmatmul.bf16.gmra.mxu0 %v2202
          %v2216 = vpop.f32.mrf.mxu0
          %v2217 = vadd.f32 0.0, %v2216
          %v2218 = vpop.f32.mrf.mxu0
          %2219 = vdwg.mxu0
          %2220 = vrot.lane.b32.xlu0 %v1932, 108
          %v2221 = vpop.permute.xlu0 %2220
          %2222 = vrot.lane.b32.xlu0 %v1932, 76
          %v2223 = vpop.permute.xlu0 %2222
          %v2225 = vsel %vm1936, %v2221, 0
          %v2228 = vsel %vm1936, %v2223, 0
          %2230 = vmatpush.bf16.xpose.msra.mxu0 0
          %2231 = vmatpush.bf16.xpose.msra.mxu0 0
          %2232 = vmatpush.bf16.xpose.msra.mxu0 0
          %2233 = vmatpush.bf16.xpose.msra.mxu0 0
          %2234 = vmatpush.bf16.xpose.msra.mxu0 0
          %2235 = vmatpush.bf16.xpose.msra.mxu0 0
          %2236 = vmatpush.bf16.xpose.msra.mxu0 0
          %2237 = vmatpush.bf16.xpose.msra.mxu0 %v2228
          %2238 = vmatmul.bf16.gmra.mxu0 %v2225
          %v2239 = vpop.f32.mrf.mxu0
          %v2240 = vadd.f32 0.0, %v2239
          %v2241 = vpop.f32.mrf.mxu0
          %2242 = vdwg.mxu0
          %v2243 = vmul.f32 %v2240, 0.5
          %v2244 = vsel %vm1957, %v2243, -inf
          %2245 = vmax.xlane.f32.xlu0 %v2244
          %v2246 = vpop.xlane.xlu0 %2245
          %v2247 = vsub.f32 %v2243, %v2246
          %v2248 = vmul.f32 %v2247, 1.442695
          %v2249 = vpow.pop %v2248
          %v2250 = vsel %vm1957, %v2249, 0.0
          %2251 = vadd.xlane.f32.xlu0 %v2250
          %v2252 = vpop.xlane.xlu0 %2251
          %v2253 = vrcp.pop %v2252
          %v2254 = vmul.f32 %v2249, %v2253
          %v2255 = vpack.c.bf16 %v2254, %v2254
          %2256 = vrot.lane.b32.xlu0 %v1932, 44
          %v2257 = vpop.permute.xlu0 %2256
          %v2259 = vsel %vm1936, %v2255, 0
          %v2262 = vsel %vm1975, %v2257, 0
          %2264 = vmatpush.bf16.msra.mxu0 0
          %2265 = vmatpush.bf16.msra.mxu0 0
          %2266 = vmatpush.bf16.msra.mxu0 0
          %2267 = vmatpush.bf16.msra.mxu0 0
          %2268 = vmatpush.bf16.msra.mxu0 0
          %2269 = vmatpush.bf16.msra.mxu0 0
          %2270 = vmatpush.bf16.msra.mxu0 0
          %2271 = vmatpush.bf16.msra.mxu0 %v2262
          %2272 = vmatmul.bf16.gmra.mxu0 %v2259
          %v2273 = vpop.f32.mrf.mxu0
          %v2274 = vadd.f32 0.0, %v2273
          %v2275 = vpop.f32.mrf.mxu0
          %2276 = vdwg.mxu0
          %2277 = vrot.lane.b32.xlu0 %v1932, 104
          %v2278 = vpop.permute.xlu0 %2277
          %2279 = vrot.lane.b32.xlu0 %v1932, 72
          %v2280 = vpop.permute.xlu0 %2279
          %v2282 = vsel %vm1936, %v2278, 0
          %v2285 = vsel %vm1936, %v2280, 0
          %2287 = vmatpush.bf16.xpose.msra.mxu0 0
          %2288 = vmatpush.bf16.xpose.msra.mxu0 0
          %2289 = vmatpush.bf16.xpose.msra.mxu0 0
          %2290 = vmatpush.bf16.xpose.msra.mxu0 0
          %2291 = vmatpush.bf16.xpose.msra.mxu0 0
          %2292 = vmatpush.bf16.xpose.msra.mxu0 0
          %2293 = vmatpush.bf16.xpose.msra.mxu0 0
          %2294 = vmatpush.bf16.xpose.msra.mxu0 %v2285
          %2295 = vmatmul.bf16.gmra.mxu0 %v2282
          %v2296 = vpop.f32.mrf.mxu0
          %v2297 = vadd.f32 0.0, %v2296
          %v2298 = vpop.f32.mrf.mxu0
          %2299 = vdwg.mxu0
          %v2300 = vmul.f32 %v2297, 0.5
          %v2301 = vsel %vm1957, %v2300, -inf
          %2302 = vmax.xlane.f32.xlu0 %v2301
          %v2303 = vpop.xlane.xlu0 %2302
          %v2304 = vsub.f32 %v2300, %v2303
          %v2305 = vmul.f32 %v2304, 1.442695
          %v2306 = vpow.pop %v2305
          %v2307 = vsel %vm1957, %v2306, 0.0
          %2308 = vadd.xlane.f32.xlu0 %v2307
          %v2309 = vpop.xlane.xlu0 %2308
          %v2310 = vrcp.pop %v2309
          %v2311 = vmul.f32 %v2306, %v2310
          %v2312 = vpack.c.bf16 %v2311, %v2311
          %2313 = vrot.lane.b32.xlu0 %v1932, 40
          %v2314 = vpop.permute.xlu0 %2313
          %v2316 = vsel %vm1936, %v2312, 0
          %v2319 = vsel %vm1975, %v2314, 0
          %2321 = vmatpush.bf16.msra.mxu0 0
          %2322 = vmatpush.bf16.msra.mxu0 0
          %2323 = vmatpush.bf16.msra.mxu0 0
          %2324 = vmatpush.bf16.msra.mxu0 0
          %2325 = vmatpush.bf16.msra.mxu0 0
          %2326 = vmatpush.bf16.msra.mxu0 0
          %2327 = vmatpush.bf16.msra.mxu0 0
          %2328 = vmatpush.bf16.msra.mxu0 %v2319
          %2329 = vmatmul.bf16.gmra.mxu0 %v2316
          %v2330 = vpop.f32.mrf.mxu0
          %v2331 = vadd.f32 0.0, %v2330
          %v2332 = vpop.f32.mrf.mxu0
          %2333 = vdwg.mxu0
          %2334 = vrot.lane.b32.xlu0 %v1932, 100
          %v2335 = vpop.permute.xlu0 %2334
          %2336 = vrot.lane.b32.xlu0 %v1932, 68
          %v2337 = vpop.permute.xlu0 %2336
          %v2339 = vsel %vm1936, %v2335, 0
          %v2342 = vsel %vm1936, %v2337, 0
          %2344 = vmatpush.bf16.xpose.msra.mxu0 0
          %2345 = vmatpush.bf16.xpose.msra.mxu0 0
          %2346 = vmatpush.bf16.xpose.msra.mxu0 0
          %2347 = vmatpush.bf16.xpose.msra.mxu0 0
          %2348 = vmatpush.bf16.xpose.msra.mxu0 0
          %2349 = vmatpush.bf16.xpose.msra.mxu0 0
          %2350 = vmatpush.bf16.xpose.msra.mxu0 0
          %2351 = vmatpush.bf16.xpose.msra.mxu0 %v2342
          %2352 = vmatmul.bf16.gmra.mxu0 %v2339
          %v2353 = vpop.f32.mrf.mxu0
          %v2354 = vadd.f32 0.0, %v2353
          %v2355 = vpop.f32.mrf.mxu0
          %2356 = vdwg.mxu0
          %v2357 = vmul.f32 %v2354, 0.5
          %v2358 = vsel %vm1957, %v2357, -inf
          %2359 = vmax.xlane.f32.xlu0 %v2358
          %v2360 = vpop.xlane.xlu0 %2359
          %v2361 = vsub.f32 %v2357, %v2360
          %v2362 = vmul.f32 %v2361, 1.442695
          %v2363 = vpow.pop %v2362
          %v2364 = vsel %vm1957, %v2363, 0.0
          %2365 = vadd.xlane.f32.xlu0 %v2364
          %v2366 = vpop.xlane.xlu0 %2365
          %v2367 = vrcp.pop %v2366
          %v2368 = vmul.f32 %v2363, %v2367
          %v2369 = vpack.c.bf16 %v2368, %v2368
          %2370 = vrot.lane.b32.xlu0 %v1932, 36
          %v2371 = vpop.permute.xlu0 %2370
          %v2373 = vsel %vm1936, %v2369, 0
          %v2376 = vsel %vm1975, %v2371, 0
          %2378 = vmatpush.bf16.msra.mxu0 0
          %2379 = vmatpush.bf16.msra.mxu0 0
          %2380 = vmatpush.bf16.msra.mxu0 0
          %2381 = vmatpush.bf16.msra.mxu0 0
          %2382 = vmatpush.bf16.msra.mxu0 0
          %2383 = vmatpush.bf16.msra.mxu0 0
          %2384 = vmatpush.bf16.msra.mxu0 0
          %2385 = vmatpush.bf16.msra.mxu0 %v2376
          %2386 = vmatmul.bf16.gmra.mxu0 %v2373
          %v2387 = vpop.f32.mrf.mxu0
          %v2388 = vadd.f32 0.0, %v2387
          %v2389 = vpop.f32.mrf.mxu0
          %2390 = vdwg.mxu0
          %2392 = vrot.lane.b32.xlu0 %v2046, 4
          %v2393 = vpop.permute.xlu0 %2392
          %2396 = vrot.lane.b32.xlu0 %v2103, 8
          %v2397 = vpop.permute.xlu0 %2396
          %2400 = vrot.lane.b32.xlu0 %v2160, 12
          %v2401 = vpop.permute.xlu0 %2400
          %2404 = vrot.lane.b32.xlu0 %v2217, 16
          %v2405 = vpop.permute.xlu0 %2404
          %2408 = vrot.lane.b32.xlu0 %v2274, 20
          %v2409 = vpop.permute.xlu0 %2408
          %2412 = vrot.lane.b32.xlu0 %v2331, 24
          %v2413 = vpop.permute.xlu0 %2412
          %2416 = vrot.lane.b32.xlu0 %v2388, 28
          %v2417 = vpop.permute.xlu0 %2416
          %v2419 = vsel %vm1936, %v1989, %v2393
          %vm2420 = vcmask 64512
          %v2421 = vsel %vm2420, %v2419, %v2397
          %vm2422 = vcmask 97280
          %v2423 = vsel %vm2422, %v2421, %v2401
          %vm2424 = vcmask 130048
          %v2425 = vsel %vm2424, %v2423, %v2405
          %vm2426 = vcmask 162816
          %v2427 = vsel %vm2426, %v2425, %v2409
          %vm2428 = vcmask 195584
          %v2429 = vsel %vm2428, %v2427, %v2413
          %vm2430 = vcmask 228352
          %v2431 = vsel %vm2430, %v2429, %v2417
          %v2432 = vld [vmem:[%s299] sm:$0xf]
          %v2433 = vld [vmem:[%s299 + $0x4] sm:$0xf]
          %v2434 = vld [vmem:[%s299 + $0x8] sm:$0xf]
          %v2435 = vld [vmem:[%s299 + $0xc] sm:$0xf]
          %v2436 = vpack.c.bf16 %v2431, %v2431
          %v2437 = vld [vmem:[%s302] sm:$0x1]
          %v2439 = vperm.slane %v2437, 0
          %v2445 = vunpack.c.l.b16 %v2432
          %v2446 = vunpack.c.l.b16 %v2433
          %v2447 = vunpack.c.l.b16 %v2434
          %v2448 = vunpack.c.l.b16 %v2435
          %v2449 = vpack.c.b16 %v2446, %v2445
          %v2450 = vpack.c.b16 %v2448, %v2447
          %v2454 = vsel %vm1915, %v2436, 0
          %2456 = vmatpush.bf16.msra.mxu0 0
          %2457 = vmatpush.bf16.msra.mxu0 0
          %2458 = vmatpush.bf16.msra.mxu0 0
          %2459 = vmatpush.bf16.msra.mxu0 0
          %2460 = vmatpush.bf16.msra.mxu0 0
          %2461 = vmatpush.bf16.msra.mxu0 0
          %2462 = vmatpush.bf16.msra.mxu0 %v2450
          %2463 = vmatpush.bf16.msra.mxu0 %v2449
          %2464 = vmatmul.bf16.gmra.mxu0 %v2454
          %v2465 = vpop.f32.mrf.mxu0
          %v2466 = vadd.f32 %v2439, %v2465
          %v2467 = vpop.f32.mrf.mxu0
          %2468 = vdwg.mxu0
          %v2470 = vrot.slane %v2466, 1
          %v2471 = vrot.slane %v2466, 2
          %v2472 = vrot.slane %v2466, 3
          %v2473 = vperm.slane %v2466, 0
          %v2474 = vperm.slane %v2470, 0
          %v2475 = vperm.slane %v2471, 0
          %v2476 = vperm.slane %v2472, 0
          %v2481 = vld [vmem:[#allocation2] sm:$0xff]
          %v2482 = vld [vmem:[#allocation2 + $0x8] sm:$0xff]
          %v2483 = vld [vmem:[#allocation2 + $0x10] sm:$0xff]
          %v2484 = vld [vmem:[#allocation2 + $0x18] sm:$0xff]
          %v2485 = vadd.f32 %v2481, %v2473
          %v2486 = vadd.f32 %v2482, %v2474
          %v2487 = vadd.f32 %v2483, %v2475
          %v2488 = vadd.f32 %v2484, %v2476
          %2489 = vst.msk [vmem:[#allocation2] sm:$0xff] %vm1915, %v2485
          %2490 = vst.msk [vmem:[#allocation2 + $0x8] sm:$0xff] %vm1915, %v2486
          %2491 = vst.msk [vmem:[#allocation2 + $0x10] sm:$0xff] %vm1915, %v2487
          %2492 = vst.msk [vmem:[#allocation2 + $0x18] sm:$0xff] %vm1915, %v2488
          %v2493 = vld [vmem:[#allocation2] sm:$0xff]
          %v2494 = vld [vmem:[#allocation2 + $0x8] sm:$0xff]
          %v2495 = vld [vmem:[#allocation2 + $0x10] sm:$0xff]
          %v2496 = vld [vmem:[#allocation2 + $0x18] sm:$0xff]
          %v2497 = vmul.f32 %v2493, 0.33333334
          %v2498 = vmul.f32 %v2494, 0.33333334
          %v2499 = vmul.f32 %v2495, 0.33333334
          %v2500 = vmul.f32 %v2496, 0.33333334
          %2501 = vst.msk [vmem:[%s281] sm:$0xff] %vm1915, %v2497
          %2502 = vst.msk [vmem:[%s281 + $0x8] sm:$0xff] %vm1915, %v2498
          %2503 = vst.msk [vmem:[%s281 + $0x10] sm:$0xff] %vm1915, %v2499
          %2504 = vst.msk [vmem:[%s281 + $0x18] sm:$0xff] %vm1915, %v2500
        $region56: #{_lambda_.1} parent=39 // pred_fallthru
          _
        %s2505 = sand.u32 %s169, 1
        %s2506 = scalar_lea.sflag [#allocation4], %s2505
        %s2507 = sand.u32 %s169, 1
        %s2508 = smul.addr %s2507, 32
        %s2509 = scalar_lea.vmem [#allocation3], %s2508
        // Predicated region
        $region57: #{_lambda_.1} parent=39 // pred_check
          %p2510 = pneg %p179
        $region58: #{_lambda_.1} parent=39 // pred_check_branch
          %2512 = sbr.rel (%p2510) target = $region60
        $region59: #{_lambda_.1} parent=39 // pred_region
          %2514 = vsyncadd %s2506, 0
          %s2515 = smul.addr %s23, 4
          %s2516 = smul.addr %s2515, 8
          %s2517 = scalar_lea.hbm %s5, %s2516
          %s2518 = sshll.u32 %s2509, 4
          %s2519 = int_to_ptr.vmem [resolvable:$true] %s2518
          %s2520 = sshll.u32 %s2517, 4
          %s2521 = int_to_ptr.hbm [resolvable:$true] %s2520
          %2526 = dma.vmem_to_hbm [thread:$0]  %s2519, 512, %s2521, %s2506, 128, 128, 8
        $region60: #{_lambda_.1} parent=39 // pred_fallthru
          _
      $region40: #{_lambda_.1} parent=5 // pred_fallthru
        _
      %p2527 = scmp.le.s32.totalorder 2, %s14
      // Predicated region
      $region61: #{_lambda_.1} parent=5 // pred_check
        %p2528 = pneg %p2527
      $region62: #{_lambda_.1} parent=5 // pred_check_branch
        %2530 = sbr.rel (%p2528) target = $region64
      $region63: #{_lambda_.1} parent=5 // pred_region
        %s2531 = ssub.s32 %s14, 2
        // Predicated region
        $region65: #{_lambda_.1} parent=63 // pred_check
          %p2532 = pneg %p185
        $region66: #{_lambda_.1} parent=63 // pred_check_branch
          %2534 = sbr.rel (%p2532) target = $region68
        $region67: #{_lambda_.1} parent=63 // pred_region
          %s2535 = sand.u32 %s170, 1
          %s2536 = scalar_lea.sflag [#allocation4], %s2535
          %s2537 = sand.u32 %s170, 1
          %s2538 = smul.addr %s2537, 32
          %s2539 = scalar_lea.vmem [#allocation3], %s2538
          %2541 = dma.done %s2536, 512
        $region68: #{_lambda_.1} parent=63 // pred_fallthru
          _
      $region64: #{_lambda_.1} parent=5 // pred_fallthru
        _
    $region6: #{_lambda_.1} parent=1 // loop_footer
      %s18 = sadd.s32 1, %s14
    $region7: #{_lambda_.1} parent=1 // loop_footer_branch
      %13 = sbr.rel target = $region3
    $region8: #{_lambda_.1} parent=1 // loop_exit
      _
    %2542 = vsyncpa [#allocation4], 1
    %s2543 = scalar_lea.sflag [#allocation4], 1
    %2544 = vsyncpa %s2543, 1

</llo_original>
